<compile_context>
chip_gen: v5e
topology: v5e:2x2
jax: 0.10.0
libtpu: 0.0.40
codegen_flags: <defaults>
</compile_context>

<pallas_src>
import functools
import math

import jax
import jax.numpy as jnp
from jax.experimental import pallas as pl
from jax.experimental.pallas import tpu as pltpu


# ----------------------------------------------------------------------------
# Kernel
# ----------------------------------------------------------------------------
def _transformer_kernel(x_ref, pe_ref, w_in_ref, b_in_ref, wq_ref, wk_ref,
                        wff_ref, b_ff_ref, o_ref, *, n_head, d_k, d_v):
    b_blk, T, c_in = x_ref.shape
    D = w_in_ref.shape[1]
    d_out = wff_ref.shape[1]

    # ---- in_emb (Linear) + positional encoding -----------------------------
    x2 = x_ref[...].reshape(b_blk * T, c_in)                       # (BT, Cin)
    h = jnp.dot(x2, w_in_ref[...], preferred_element_type=jnp.float32)
    h = h + b_in_ref[...]                                          # (1, D) broadcast
    h = h + pe_ref[...].reshape(b_blk * T, D)

    # ---- SelfAttention projections (scale pre-folded into Wq host-side) ----
    q = jnp.dot(h, wq_ref[...], preferred_element_type=jnp.float32)  # (BT, H*dk)
    k = jnp.dot(h, wk_ref[...], preferred_element_type=jnp.float32)  # (BT, H*dk)

    # ---- per-head attention, ff weight fused into the accumulation ---------
    # y = concat_h(att_out_h) @ Wff  ==  sum_h att_out_h @ Wff[h*dv:(h+1)*dv]
    y = jnp.zeros((b_blk * T, d_out), dtype=jnp.float32)
    for hh in range(n_head):
        qh = q[:, hh * d_k:(hh + 1) * d_k].reshape(b_blk, T, d_k)   # (B, T, dk)
        kh = k[:, hh * d_k:(hh + 1) * d_k].reshape(b_blk, T, d_k)
        vh = h[:, hh * d_v:(hh + 1) * d_v].reshape(b_blk, T, d_v)   # to_v = Identity

        dots = jnp.einsum('btd,bsd->bts', qh, kh,
                          preferred_element_type=jnp.float32)       # (B, T, T)
        m = jnp.max(dots, axis=-1, keepdims=True)
        e = jnp.exp(dots - m)
        attn = e * pl.reciprocal(jnp.sum(e, axis=-1, keepdims=True), approx=True)
        # dropout(p=0.1) == identity at inference

        oh = jnp.einsum('bts,bsd->btd', attn, vh,
                        preferred_element_type=jnp.float32)         # (B, T, dv)
        wff_h = wff_ref[hh * d_v:(hh + 1) * d_v, :]                 # (dv, d_out)
        y = y + jnp.dot(oh.reshape(b_blk * T, d_v), wff_h,
                        preferred_element_type=jnp.float32)

    # ---- max pool over time, then ff bias (constant over T -> commutes) ----
    pooled = jnp.max(y.reshape(b_blk, T, d_out), axis=1) + b_ff_ref[...]   # (B, d_out)
    o_ref[...] = pooled.reshape(b_blk, 1, d_out).astype(o_ref.dtype)


# ----------------------------------------------------------------------------
# Host-side helpers & wrapper
# ----------------------------------------------------------------------------
def _sinusoid_table(n_pos, d_model, T=1000.0):
    """Standard sinusoidal positional-encoding table (get_positional_encoding)."""
    pos = jnp.arange(n_pos, dtype=jnp.float32)[:, None]
    idx = jnp.arange(d_model, dtype=jnp.float32)[None, :]
    div = jnp.power(jnp.float32(T), -(2.0 * jnp.floor(idx / 2.0)) / d_model)
    angle = pos * div
    even = (jnp.arange(d_model) % 2 == 0)[None, :]
    return jnp.where(even, jnp.sin(angle), jnp.cos(angle)).astype(jnp.float32)


def transformer_forward_pallas(x, positions, gdd, params, *, n_head, d_k,
                               max_temporal_shift, b_block=None):
    """x: (B, T, Cin) f32, positions: (B, T) int32.  gdd unused (with_gdd_enc=False)."""
    del gdd
    B, T, c_in = x.shape
    w_in, b_in = params['w_in'], params['b_in']
    wq, wk = params['wq'], params['wk']
    wff, b_ff = params['wff'], params['b_ff']
    pos_table = params['pos_table']

    D = w_in.shape[1]
    HD = wq.shape[1]
    d_out = wff.shape[1]
    assert HD == n_head * d_k and D % n_head == 0
    d_v = D // n_head

    # host-side folds: attention scale into Wq; positional-encoding gather
    wq_scaled = (wq * (float(d_k) ** -0.5)).astype(jnp.float32)
    pe = jnp.take(pos_table, positions + max_temporal_shift, axis=0).astype(jnp.float32)

    # batch block: as large as possible while keeping >=2 grid steps (both TCs on v7x)
    if b_block is None:
        b_block = 1
        for cand in range(min(B, 8), 0, -1):
            if B % cand == 0 and (B // cand) >= min(2, B):
                b_block = cand
                break
    grid = (B // b_block,)

    b_in2 = b_in.reshape(1, D)
    b_ff2 = b_ff.reshape(1, d_out)

    kernel = functools.partial(_transformer_kernel, n_head=n_head, d_k=d_k, d_v=d_v)
    out = pl.pallas_call(
        kernel,
        out_shape=jax.ShapeDtypeStruct((B, 1, d_out), jnp.float32),
        grid=grid,
        in_specs=[
            pl.BlockSpec((b_block, T, c_in), lambda i: (i, 0, 0)),
            pl.BlockSpec((b_block, T, D), lambda i: (i, 0, 0)),
            pl.BlockSpec((c_in, D), lambda i: (0, 0)),
            pl.BlockSpec((1, D), lambda i: (0, 0)),
            pl.BlockSpec((D, HD), lambda i: (0, 0)),
            pl.BlockSpec((D, HD), lambda i: (0, 0)),
            pl.BlockSpec((D, d_out), lambda i: (0, 0)),
            pl.BlockSpec((1, d_out), lambda i: (0, 0)),
        ],
        out_specs=pl.BlockSpec((b_block, 1, d_out), lambda i: (i, 0, 0)),
        compiler_params=pltpu.CompilerParams(dimension_semantics=("parallel",)),
    )(x, pe, w_in, b_in2, wq_scaled, wk, wff, b_ff2)
    return out.reshape(B, d_out)


# ----------------------------------------------------------------------------
# Plain-JAX reference (mirrors the PyTorch forward, inference mode)
# ----------------------------------------------------------------------------
def transformer_forward_reference(x, positions, gdd, params, *, n_head, d_k,
                                  max_temporal_shift):
    del gdd
    B, T, _ = x.shape
    h = x @ params['w_in'] + params['b_in']
    h = h + params['pos_table'][positions + max_temporal_shift]
    D = h.shape[-1]
    d_v = D // n_head
    q = (h @ params['wq']).reshape(B, T, n_head, d_k).transpose(0, 2, 1, 3)
    k = (h @ params['wk']).reshape(B, T, n_head, d_k).transpose(0, 2, 1, 3)
    v = h.reshape(B, T, n_head, d_v).transpose(0, 2, 1, 3)
    dots = jnp.einsum('bhtd,bhsd->bhts', q, k) * (float(d_k) ** -0.5)
    attn = jax.nn.softmax(dots, axis=-1)
    out = jnp.einsum('bhts,bhsd->bhtd', attn, v)
    out = out.transpose(0, 2, 1, 3).reshape(B, T, D)
    y = out @ params['wff'] + params['b_ff']
    return jnp.max(y, axis=1)


# ----------------------------------------------------------------------------
if __name__ == "__main__":
    # Module defaults: in_channels=128, n_head=16, d_k=8, d_model=256, T=1000,
    # max_temporal_shift=60, pool_type='max'.  Small batch/sequence.
    B, T_seq = 2, 8
    in_channels, d_model, n_head, d_k = 128, 256, 16, 8
    d_out, max_temporal_shift, pe_T = 128, 60, 1000.0

    key = jax.random.PRNGKey(0)
    kx, kp, k1, k2, k3, k4, k5, k6, k7 = jax.random.split(key, 9)

    x = jax.random.normal(kx, (B, T_seq, in_channels), dtype=jnp.float32)
    positions = jax.random.randint(kp, (B, T_seq), 0, 365, dtype=jnp.int32)
    gdd = jnp.zeros((B, T_seq), dtype=jnp.float32)   # unused (with_gdd_enc=False)

    params = {
        'w_in': jax.random.normal(k1, (in_channels, d_model), jnp.float32) / math.sqrt(in_channels),
        'b_in': jax.random.normal(k2, (d_model,), jnp.float32) * 0.02,
        'wq': jax.random.normal(k3, (d_model, n_head * d_k), jnp.float32) / math.sqrt(d_model),
        'wk': jax.random.normal(k4, (d_model, n_head * d_k), jnp.float32) / math.sqrt(d_model),
        'wff': jax.random.normal(k5, (d_model, d_out), jnp.float32) / math.sqrt(d_model),
        'b_ff': jax.random.normal(k6, (d_out,), jnp.float32) * 0.02,
        'pos_table': _sinusoid_table(365 + 2 * max_temporal_shift, d_model, T=pe_T),
    }

    out = transformer_forward_pallas(x, positions, gdd, params, n_head=n_head,
                                     d_k=d_k, max_temporal_shift=max_temporal_shift)
    out = jax.block_until_ready(out)

    ref = transformer_forward_reference(x, positions, gdd, params, n_head=n_head,
                                        d_k=d_k, max_temporal_shift=max_temporal_shift)
    assert out.shape == (B, d_out), out.shape
    # tolerance accounts for the approximate (EUP) reciprocal in the softmax and
    # the host-side folding of the attention scale into Wq.
    assert jnp.allclose(out, ref, atol=5e-3, rtol=5e-3), float(jnp.max(jnp.abs(out - ref)))

    print("KERNEL_OK")
</pallas_src>

<mosaic_0001>
module attributes {stable_mosaic.version = 11 : i64} {
  func.func @_transformer_kernel(%arg0: i32, %arg1: memref<1x8x128xf32, #tpu.memory_space<vmem>>, %arg2: memref<1x8x256xf32, #tpu.memory_space<vmem>>, %arg3: memref<128x256xf32, #tpu.memory_space<vmem>>, %arg4: memref<1x256xf32, #tpu.memory_space<vmem>>, %arg5: memref<256x128xf32, #tpu.memory_space<vmem>>, %arg6: memref<256x128xf32, #tpu.memory_space<vmem>>, %arg7: memref<256x128xf32, #tpu.memory_space<vmem>>, %arg8: memref<1x128xf32, #tpu.memory_space<vmem>>, %arg9: memref<1x1x128xf32, #tpu.memory_space<vmem>>) attributes {dimension_semantics = [#tpu.dimension_semantics<parallel>], iteration_bounds = array<i64: 2>, scalar_prefetch = 0 : i64, scratch_operands = 0 : i64, tpu.core_type = #tpu.core_type<tc>, window_params = [{transform_indices = @transform_0, window_bounds = array<i64: 1, 8, 128>}, {transform_indices = @transform_1, window_bounds = array<i64: 1, 8, 256>}, {pipeline_mode = #tpu.pipeline_mode<synchronous>, transform_indices = @transform_2, window_bounds = array<i64: 128, 256>}, {pipeline_mode = #tpu.pipeline_mode<synchronous>, transform_indices = @transform_3, window_bounds = array<i64: 1, 256>}, {pipeline_mode = #tpu.pipeline_mode<synchronous>, transform_indices = @transform_4, window_bounds = array<i64: 256, 128>}, {pipeline_mode = #tpu.pipeline_mode<synchronous>, transform_indices = @transform_5, window_bounds = array<i64: 256, 128>}, {pipeline_mode = #tpu.pipeline_mode<synchronous>, transform_indices = @transform_6, window_bounds = array<i64: 256, 128>}, {pipeline_mode = #tpu.pipeline_mode<synchronous>, transform_indices = @transform_7, window_bounds = array<i64: 1, 128>}, {transform_indices = @transform_8, window_bounds = array<i64: 1, 1, 128>}]} {
    %c0 = arith.constant 0 : index
    %c0_0 = arith.constant 0 : index
    %c0_1 = arith.constant 0 : index
    %0 = vector.load %arg1[%c0, %c0_0, %c0_1] : memref<1x8x128xf32, #tpu.memory_space<vmem>>, vector<1x8x128xf32>
    %1 = vector.shape_cast %0 : vector<1x8x128xf32> to vector<8x128xf32>
    %c0_2 = arith.constant 0 : index
    %c0_3 = arith.constant 0 : index
    %2 = vector.load %arg3[%c0_2, %c0_3] : memref<128x256xf32, #tpu.memory_space<vmem>>, vector<128x256xf32>
    %cst = arith.constant dense<0.000000e+00> : vector<8x256xf32>
    %3 = tpu.matmul %1, %2, %cst {dimension_numbers = #tpu.dot_dimension_numbers<[1], [0], [0], [1], [0, 0, 1, 1], [], []>} : vector<8x128xf32>, vector<128x256xf32>, vector<8x256xf32> -> vector<8x256xf32>
    %c0_4 = arith.constant 0 : index
    %c0_5 = arith.constant 0 : index
    %4 = vector.load %arg4[%c0_4, %c0_5] : memref<1x256xf32, #tpu.memory_space<vmem>>, vector<1x256xf32>
    %5 = vector.broadcast %4 : vector<1x256xf32> to vector<8x256xf32>
    %6 = arith.addf %3, %5 : vector<8x256xf32>
    %c0_6 = arith.constant 0 : index
    %c0_7 = arith.constant 0 : index
    %c0_8 = arith.constant 0 : index
    %7 = vector.load %arg2[%c0_6, %c0_7, %c0_8] : memref<1x8x256xf32, #tpu.memory_space<vmem>>, vector<1x8x256xf32>
    %8 = vector.shape_cast %7 : vector<1x8x256xf32> to vector<8x256xf32>
    %9 = arith.addf %6, %8 : vector<8x256xf32>
    %c0_9 = arith.constant 0 : index
    %c0_10 = arith.constant 0 : index
    %10 = vector.load %arg5[%c0_9, %c0_10] : memref<256x128xf32, #tpu.memory_space<vmem>>, vector<256x128xf32>
    %cst_11 = arith.constant dense<0.000000e+00> : vector<8x128xf32>
    %11 = tpu.matmul %9, %10, %cst_11 {dimension_numbers = #tpu.dot_dimension_numbers<[1], [0], [0], [1], [0, 0, 1, 1], [], []>} : vector<8x256xf32>, vector<256x128xf32>, vector<8x128xf32> -> vector<8x128xf32>
    %c0_12 = arith.constant 0 : index
    %c0_13 = arith.constant 0 : index
    %12 = vector.load %arg6[%c0_12, %c0_13] : memref<256x128xf32, #tpu.memory_space<vmem>>, vector<256x128xf32>
    %cst_14 = arith.constant dense<0.000000e+00> : vector<8x128xf32>
    %13 = tpu.matmul %9, %12, %cst_14 {dimension_numbers = #tpu.dot_dimension_numbers<[1], [0], [0], [1], [0, 0, 1, 1], [], []>} : vector<8x256xf32>, vector<256x128xf32>, vector<8x128xf32> -> vector<8x128xf32>
    %cst_15 = arith.constant 0.000000e+00 : f32
    %14 = vector.broadcast %cst_15 : f32 to vector<8x128xf32>
    %15 = vector.extract_strided_slice %11 {offsets = [0, 0], sizes = [8, 8], strides = [1, 1]} : vector<8x128xf32> to vector<8x8xf32>
    %16 = vector.shape_cast %15 : vector<8x8xf32> to vector<1x8x8xf32>
    %17 = vector.extract_strided_slice %13 {offsets = [0, 0], sizes = [8, 8], strides = [1, 1]} : vector<8x128xf32> to vector<8x8xf32>
    %18 = vector.shape_cast %17 : vector<8x8xf32> to vector<1x8x8xf32>
    %19 = vector.extract_strided_slice %9 {offsets = [0, 0], sizes = [8, 16], strides = [1, 1]} : vector<8x256xf32> to vector<8x16xf32>
    %20 = vector.shape_cast %19 : vector<8x16xf32> to vector<1x8x16xf32>
    "tpu.trace_start"() <{level = 10 : i32, message = "btd,bsd->bts"}> : () -> ()
    %cst_16 = arith.constant dense<0.000000e+00> : vector<1x8x8xf32>
    %21 = tpu.matmul %16, %18, %cst_16 {dimension_numbers = #tpu.dot_dimension_numbers<[2], [2], [1], [1], [0, 0, 0, 1, 1, 1], [0], [0]>} : vector<1x8x8xf32>, vector<1x8x8xf32>, vector<1x8x8xf32> -> vector<1x8x8xf32>
    "tpu.trace_stop"() : () -> ()
    %cst_17 = arith.constant dense<0xFF800000> : vector<1x8xf32>
    %22 = vector.multi_reduction <maximumf>, %21, %cst_17 [2] : vector<1x8x8xf32> to vector<1x8xf32>
    %23 = vector.shape_cast %22 : vector<1x8xf32> to vector<1x8x1xf32>
    %24 = vector.broadcast %23 : vector<1x8x1xf32> to vector<1x8x8xf32>
    %25 = arith.subf %21, %24 : vector<1x8x8xf32>
    %26 = math.exp %25 : vector<1x8x8xf32>
    %cst_18 = arith.constant dense<0.000000e+00> : vector<1x8xf32>
    %27 = vector.multi_reduction <add>, %26, %cst_18 [2] : vector<1x8x8xf32> to vector<1x8xf32>
    %28 = vector.shape_cast %27 : vector<1x8xf32> to vector<1x8x1xf32>
    %29 = tpu.reciprocal %28 {approx = true} : vector<1x8x1xf32> -> vector<1x8x1xf32>
    %30 = vector.broadcast %29 : vector<1x8x1xf32> to vector<1x8x8xf32>
    %31 = arith.mulf %26, %30 : vector<1x8x8xf32>
    "tpu.trace_start"() <{level = 10 : i32, message = "bts,bsd->btd"}> : () -> ()
    %cst_19 = arith.constant dense<0.000000e+00> : vector<1x8x16xf32>
    %32 = tpu.matmul %31, %20, %cst_19 {dimension_numbers = #tpu.dot_dimension_numbers<[2], [1], [1], [2], [0, 0, 0, 1, 1, 2], [0], [0]>} : vector<1x8x8xf32>, vector<1x8x16xf32>, vector<1x8x16xf32> -> vector<1x8x16xf32>
    "tpu.trace_stop"() : () -> ()
    %c0_20 = arith.constant 0 : index
    %c0_21 = arith.constant 0 : index
    %33 = vector.load %arg7[%c0_20, %c0_21] : memref<256x128xf32, #tpu.memory_space<vmem>>, vector<16x128xf32>
    %34 = vector.shape_cast %32 : vector<1x8x16xf32> to vector<8x16xf32>
    %cst_22 = arith.constant dense<0.000000e+00> : vector<8x128xf32>
    %35 = tpu.matmul %34, %33, %cst_22 {dimension_numbers = #tpu.dot_dimension_numbers<[1], [0], [0], [1], [0, 0, 1, 1], [], []>} : vector<8x16xf32>, vector<16x128xf32>, vector<8x128xf32> -> vector<8x128xf32>
    %36 = arith.addf %14, %35 : vector<8x128xf32>
    %37 = vector.extract_strided_slice %11 {offsets = [0, 8], sizes = [8, 8], strides = [1, 1]} : vector<8x128xf32> to vector<8x8xf32>
    %38 = vector.shape_cast %37 : vector<8x8xf32> to vector<1x8x8xf32>
    %39 = vector.extract_strided_slice %13 {offsets = [0, 8], sizes = [8, 8], strides = [1, 1]} : vector<8x128xf32> to vector<8x8xf32>
    %40 = vector.shape_cast %39 : vector<8x8xf32> to vector<1x8x8xf32>
    %41 = vector.extract_strided_slice %9 {offsets = [0, 16], sizes = [8, 16], strides = [1, 1]} : vector<8x256xf32> to vector<8x16xf32>
    %42 = vector.shape_cast %41 : vector<8x16xf32> to vector<1x8x16xf32>
    "tpu.trace_start"() <{level = 10 : i32, message = "btd,bsd->bts"}> : () -> ()
    %cst_23 = arith.constant dense<0.000000e+00> : vector<1x8x8xf32>
    %43 = tpu.matmul %38, %40, %cst_23 {dimension_numbers = #tpu.dot_dimension_numbers<[2], [2], [1], [1], [0, 0, 0, 1, 1, 1], [0], [0]>} : vector<1x8x8xf32>, vector<1x8x8xf32>, vector<1x8x8xf32> -> vector<1x8x8xf32>
    "tpu.trace_stop"() : () -> ()
    %cst_24 = arith.constant dense<0xFF800000> : vector<1x8xf32>
    %44 = vector.multi_reduction <maximumf>, %43, %cst_24 [2] : vector<1x8x8xf32> to vector<1x8xf32>
    %45 = vector.shape_cast %44 : vector<1x8xf32> to vector<1x8x1xf32>
    %46 = vector.broadcast %45 : vector<1x8x1xf32> to vector<1x8x8xf32>
    %47 = arith.subf %43, %46 : vector<1x8x8xf32>
    %48 = math.exp %47 : vector<1x8x8xf32>
    %cst_25 = arith.constant dense<0.000000e+00> : vector<1x8xf32>
    %49 = vector.multi_reduction <add>, %48, %cst_25 [2] : vector<1x8x8xf32> to vector<1x8xf32>
    %50 = vector.shape_cast %49 : vector<1x8xf32> to vector<1x8x1xf32>
    %51 = tpu.reciprocal %50 {approx = true} : vector<1x8x1xf32> -> vector<1x8x1xf32>
    %52 = vector.broadcast %51 : vector<1x8x1xf32> to vector<1x8x8xf32>
    %53 = arith.mulf %48, %52 : vector<1x8x8xf32>
    "tpu.trace_start"() <{level = 10 : i32, message = "bts,bsd->btd"}> : () -> ()
    %cst_26 = arith.constant dense<0.000000e+00> : vector<1x8x16xf32>
    %54 = tpu.matmul %53, %42, %cst_26 {dimension_numbers = #tpu.dot_dimension_numbers<[2], [1], [1], [2], [0, 0, 0, 1, 1, 2], [0], [0]>} : vector<1x8x8xf32>, vector<1x8x16xf32>, vector<1x8x16xf32> -> vector<1x8x16xf32>
    "tpu.trace_stop"() : () -> ()
    %c16 = arith.constant 16 : index
    %c0_27 = arith.constant 0 : index
    %55 = vector.load %arg7[%c16, %c0_27] : memref<256x128xf32, #tpu.memory_space<vmem>>, vector<16x128xf32>
    %56 = vector.shape_cast %54 : vector<1x8x16xf32> to vector<8x16xf32>
    %cst_28 = arith.constant dense<0.000000e+00> : vector<8x128xf32>
    %57 = tpu.matmul %56, %55, %cst_28 {dimension_numbers = #tpu.dot_dimension_numbers<[1], [0], [0], [1], [0, 0, 1, 1], [], []>} : vector<8x16xf32>, vector<16x128xf32>, vector<8x128xf32> -> vector<8x128xf32>
    %58 = arith.addf %36, %57 : vector<8x128xf32>
    %59 = vector.extract_strided_slice %11 {offsets = [0, 16], sizes = [8, 8], strides = [1, 1]} : vector<8x128xf32> to vector<8x8xf32>
    %60 = vector.shape_cast %59 : vector<8x8xf32> to vector<1x8x8xf32>
    %61 = vector.extract_strided_slice %13 {offsets = [0, 16], sizes = [8, 8], strides = [1, 1]} : vector<8x128xf32> to vector<8x8xf32>
    %62 = vector.shape_cast %61 : vector<8x8xf32> to vector<1x8x8xf32>
    %63 = vector.extract_strided_slice %9 {offsets = [0, 32], sizes = [8, 16], strides = [1, 1]} : vector<8x256xf32> to vector<8x16xf32>
    %64 = vector.shape_cast %63 : vector<8x16xf32> to vector<1x8x16xf32>
    "tpu.trace_start"() <{level = 10 : i32, message = "btd,bsd->bts"}> : () -> ()
    %cst_29 = arith.constant dense<0.000000e+00> : vector<1x8x8xf32>
    %65 = tpu.matmul %60, %62, %cst_29 {dimension_numbers = #tpu.dot_dimension_numbers<[2], [2], [1], [1], [0, 0, 0, 1, 1, 1], [0], [0]>} : vector<1x8x8xf32>, vector<1x8x8xf32>, vector<1x8x8xf32> -> vector<1x8x8xf32>
    "tpu.trace_stop"() : () -> ()
    %cst_30 = arith.constant dense<0xFF800000> : vector<1x8xf32>
    %66 = vector.multi_reduction <maximumf>, %65, %cst_30 [2] : vector<1x8x8xf32> to vector<1x8xf32>
    %67 = vector.shape_cast %66 : vector<1x8xf32> to vector<1x8x1xf32>
    %68 = vector.broadcast %67 : vector<1x8x1xf32> to vector<1x8x8xf32>
    %69 = arith.subf %65, %68 : vector<1x8x8xf32>
    %70 = math.exp %69 : vector<1x8x8xf32>
    %cst_31 = arith.constant dense<0.000000e+00> : vector<1x8xf32>
    %71 = vector.multi_reduction <add>, %70, %cst_31 [2] : vector<1x8x8xf32> to vector<1x8xf32>
    %72 = vector.shape_cast %71 : vector<1x8xf32> to vector<1x8x1xf32>
    %73 = tpu.reciprocal %72 {approx = true} : vector<1x8x1xf32> -> vector<1x8x1xf32>
    %74 = vector.broadcast %73 : vector<1x8x1xf32> to vector<1x8x8xf32>
    %75 = arith.mulf %70, %74 : vector<1x8x8xf32>
    "tpu.trace_start"() <{level = 10 : i32, message = "bts,bsd->btd"}> : () -> ()
    %cst_32 = arith.constant dense<0.000000e+00> : vector<1x8x16xf32>
    %76 = tpu.matmul %75, %64, %cst_32 {dimension_numbers = #tpu.dot_dimension_numbers<[2], [1], [1], [2], [0, 0, 0, 1, 1, 2], [0], [0]>} : vector<1x8x8xf32>, vector<1x8x16xf32>, vector<1x8x16xf32> -> vector<1x8x16xf32>
    "tpu.trace_stop"() : () -> ()
    %c32 = arith.constant 32 : index
    %c0_33 = arith.constant 0 : index
    %77 = vector.load %arg7[%c32, %c0_33] : memref<256x128xf32, #tpu.memory_space<vmem>>, vector<16x128xf32>
    %78 = vector.shape_cast %76 : vector<1x8x16xf32> to vector<8x16xf32>
    %cst_34 = arith.constant dense<0.000000e+00> : vector<8x128xf32>
    %79 = tpu.matmul %78, %77, %cst_34 {dimension_numbers = #tpu.dot_dimension_numbers<[1], [0], [0], [1], [0, 0, 1, 1], [], []>} : vector<8x16xf32>, vector<16x128xf32>, vector<8x128xf32> -> vector<8x128xf32>
    %80 = arith.addf %58, %79 : vector<8x128xf32>
    %81 = vector.extract_strided_slice %11 {offsets = [0, 24], sizes = [8, 8], strides = [1, 1]} : vector<8x128xf32> to vector<8x8xf32>
    %82 = vector.shape_cast %81 : vector<8x8xf32> to vector<1x8x8xf32>
    %83 = vector.extract_strided_slice %13 {offsets = [0, 24], sizes = [8, 8], strides = [1, 1]} : vector<8x128xf32> to vector<8x8xf32>
    %84 = vector.shape_cast %83 : vector<8x8xf32> to vector<1x8x8xf32>
    %85 = vector.extract_strided_slice %9 {offsets = [0, 48], sizes = [8, 16], strides = [1, 1]} : vector<8x256xf32> to vector<8x16xf32>
    %86 = vector.shape_cast %85 : vector<8x16xf32> to vector<1x8x16xf32>
    "tpu.trace_start"() <{level = 10 : i32, message = "btd,bsd->bts"}> : () -> ()
    %cst_35 = arith.constant dense<0.000000e+00> : vector<1x8x8xf32>
    %87 = tpu.matmul %82, %84, %cst_35 {dimension_numbers = #tpu.dot_dimension_numbers<[2], [2], [1], [1], [0, 0, 0, 1, 1, 1], [0], [0]>} : vector<1x8x8xf32>, vector<1x8x8xf32>, vector<1x8x8xf32> -> vector<1x8x8xf32>
    "tpu.trace_stop"() : () -> ()
    %cst_36 = arith.constant dense<0xFF800000> : vector<1x8xf32>
    %88 = vector.multi_reduction <maximumf>, %87, %cst_36 [2] : vector<1x8x8xf32> to vector<1x8xf32>
    %89 = vector.shape_cast %88 : vector<1x8xf32> to vector<1x8x1xf32>
    %90 = vector.broadcast %89 : vector<1x8x1xf32> to vector<1x8x8xf32>
    %91 = arith.subf %87, %90 : vector<1x8x8xf32>
    %92 = math.exp %91 : vector<1x8x8xf32>
    %cst_37 = arith.constant dense<0.000000e+00> : vector<1x8xf32>
    %93 = vector.multi_reduction <add>, %92, %cst_37 [2] : vector<1x8x8xf32> to vector<1x8xf32>
    %94 = vector.shape_cast %93 : vector<1x8xf32> to vector<1x8x1xf32>
    %95 = tpu.reciprocal %94 {approx = true} : vector<1x8x1xf32> -> vector<1x8x1xf32>
    %96 = vector.broadcast %95 : vector<1x8x1xf32> to vector<1x8x8xf32>
    %97 = arith.mulf %92, %96 : vector<1x8x8xf32>
    "tpu.trace_start"() <{level = 10 : i32, message = "bts,bsd->btd"}> : () -> ()
    %cst_38 = arith.constant dense<0.000000e+00> : vector<1x8x16xf32>
    %98 = tpu.matmul %97, %86, %cst_38 {dimension_numbers = #tpu.dot_dimension_numbers<[2], [1], [1], [2], [0, 0, 0, 1, 1, 2], [0], [0]>} : vector<1x8x8xf32>, vector<1x8x16xf32>, vector<1x8x16xf32> -> vector<1x8x16xf32>
    "tpu.trace_stop"() : () -> ()
    %c48 = arith.constant 48 : index
    %c0_39 = arith.constant 0 : index
    %99 = vector.load %arg7[%c48, %c0_39] : memref<256x128xf32, #tpu.memory_space<vmem>>, vector<16x128xf32>
    %100 = vector.shape_cast %98 : vector<1x8x16xf32> to vector<8x16xf32>
    %cst_40 = arith.constant dense<0.000000e+00> : vector<8x128xf32>
    %101 = tpu.matmul %100, %99, %cst_40 {dimension_numbers = #tpu.dot_dimension_numbers<[1], [0], [0], [1], [0, 0, 1, 1], [], []>} : vector<8x16xf32>, vector<16x128xf32>, vector<8x128xf32> -> vector<8x128xf32>
    %102 = arith.addf %80, %101 : vector<8x128xf32>
    %103 = vector.extract_strided_slice %11 {offsets = [0, 32], sizes = [8, 8], strides = [1, 1]} : vector<8x128xf32> to vector<8x8xf32>
    %104 = vector.shape_cast %103 : vector<8x8xf32> to vector<1x8x8xf32>
    %105 = vector.extract_strided_slice %13 {offsets = [0, 32], sizes = [8, 8], strides = [1, 1]} : vector<8x128xf32> to vector<8x8xf32>
    %106 = vector.shape_cast %105 : vector<8x8xf32> to vector<1x8x8xf32>
    %107 = vector.extract_strided_slice %9 {offsets = [0, 64], sizes = [8, 16], strides = [1, 1]} : vector<8x256xf32> to vector<8x16xf32>
    %108 = vector.shape_cast %107 : vector<8x16xf32> to vector<1x8x16xf32>
    "tpu.trace_start"() <{level = 10 : i32, message = "btd,bsd->bts"}> : () -> ()
    %cst_41 = arith.constant dense<0.000000e+00> : vector<1x8x8xf32>
    %109 = tpu.matmul %104, %106, %cst_41 {dimension_numbers = #tpu.dot_dimension_numbers<[2], [2], [1], [1], [0, 0, 0, 1, 1, 1], [0], [0]>} : vector<1x8x8xf32>, vector<1x8x8xf32>, vector<1x8x8xf32> -> vector<1x8x8xf32>
    "tpu.trace_stop"() : () -> ()
    %cst_42 = arith.constant dense<0xFF800000> : vector<1x8xf32>
    %110 = vector.multi_reduction <maximumf>, %109, %cst_42 [2] : vector<1x8x8xf32> to vector<1x8xf32>
    %111 = vector.shape_cast %110 : vector<1x8xf32> to vector<1x8x1xf32>
    %112 = vector.broadcast %111 : vector<1x8x1xf32> to vector<1x8x8xf32>
    %113 = arith.subf %109, %112 : vector<1x8x8xf32>
    %114 = math.exp %113 : vector<1x8x8xf32>
    %cst_43 = arith.constant dense<0.000000e+00> : vector<1x8xf32>
    %115 = vector.multi_reduction <add>, %114, %cst_43 [2] : vector<1x8x8xf32> to vector<1x8xf32>
    %116 = vector.shape_cast %115 : vector<1x8xf32> to vector<1x8x1xf32>
    %117 = tpu.reciprocal %116 {approx = true} : vector<1x8x1xf32> -> vector<1x8x1xf32>
    %118 = vector.broadcast %117 : vector<1x8x1xf32> to vector<1x8x8xf32>
    %119 = arith.mulf %114, %118 : vector<1x8x8xf32>
    "tpu.trace_start"() <{level = 10 : i32, message = "bts,bsd->btd"}> : () -> ()
    %cst_44 = arith.constant dense<0.000000e+00> : vector<1x8x16xf32>
    %120 = tpu.matmul %119, %108, %cst_44 {dimension_numbers = #tpu.dot_dimension_numbers<[2], [1], [1], [2], [0, 0, 0, 1, 1, 2], [0], [0]>} : vector<1x8x8xf32>, vector<1x8x16xf32>, vector<1x8x16xf32> -> vector<1x8x16xf32>
    "tpu.trace_stop"() : () -> ()
    %c64 = arith.constant 64 : index
    %c0_45 = arith.constant 0 : index
    %121 = vector.load %arg7[%c64, %c0_45] : memref<256x128xf32, #tpu.memory_space<vmem>>, vector<16x128xf32>
    %122 = vector.shape_cast %120 : vector<1x8x16xf32> to vector<8x16xf32>
    %cst_46 = arith.constant dense<0.000000e+00> : vector<8x128xf32>
    %123 = tpu.matmul %122, %121, %cst_46 {dimension_numbers = #tpu.dot_dimension_numbers<[1], [0], [0], [1], [0, 0, 1, 1], [], []>} : vector<8x16xf32>, vector<16x128xf32>, vector<8x128xf32> -> vector<8x128xf32>
    %124 = arith.addf %102, %123 : vector<8x128xf32>
    %125 = vector.extract_strided_slice %11 {offsets = [0, 40], sizes = [8, 8], strides = [1, 1]} : vector<8x128xf32> to vector<8x8xf32>
    %126 = vector.shape_cast %125 : vector<8x8xf32> to vector<1x8x8xf32>
    %127 = vector.extract_strided_slice %13 {offsets = [0, 40], sizes = [8, 8], strides = [1, 1]} : vector<8x128xf32> to vector<8x8xf32>
    %128 = vector.shape_cast %127 : vector<8x8xf32> to vector<1x8x8xf32>
    %129 = vector.extract_strided_slice %9 {offsets = [0, 80], sizes = [8, 16], strides = [1, 1]} : vector<8x256xf32> to vector<8x16xf32>
    %130 = vector.shape_cast %129 : vector<8x16xf32> to vector<1x8x16xf32>
    "tpu.trace_start"() <{level = 10 : i32, message = "btd,bsd->bts"}> : () -> ()
    %cst_47 = arith.constant dense<0.000000e+00> : vector<1x8x8xf32>
    %131 = tpu.matmul %126, %128, %cst_47 {dimension_numbers = #tpu.dot_dimension_numbers<[2], [2], [1], [1], [0, 0, 0, 1, 1, 1], [0], [0]>} : vector<1x8x8xf32>, vector<1x8x8xf32>, vector<1x8x8xf32> -> vector<1x8x8xf32>
    "tpu.trace_stop"() : () -> ()
    %cst_48 = arith.constant dense<0xFF800000> : vector<1x8xf32>
    %132 = vector.multi_reduction <maximumf>, %131, %cst_48 [2] : vector<1x8x8xf32> to vector<1x8xf32>
    %133 = vector.shape_cast %132 : vector<1x8xf32> to vector<1x8x1xf32>
    %134 = vector.broadcast %133 : vector<1x8x1xf32> to vector<1x8x8xf32>
    %135 = arith.subf %131, %134 : vector<1x8x8xf32>
    %136 = math.exp %135 : vector<1x8x8xf32>
    %cst_49 = arith.constant dense<0.000000e+00> : vector<1x8xf32>
    %137 = vector.multi_reduction <add>, %136, %cst_49 [2] : vector<1x8x8xf32> to vector<1x8xf32>
    %138 = vector.shape_cast %137 : vector<1x8xf32> to vector<1x8x1xf32>
    %139 = tpu.reciprocal %138 {approx = true} : vector<1x8x1xf32> -> vector<1x8x1xf32>
    %140 = vector.broadcast %139 : vector<1x8x1xf32> to vector<1x8x8xf32>
    %141 = arith.mulf %136, %140 : vector<1x8x8xf32>
    "tpu.trace_start"() <{level = 10 : i32, message = "bts,bsd->btd"}> : () -> ()
    %cst_50 = arith.constant dense<0.000000e+00> : vector<1x8x16xf32>
    %142 = tpu.matmul %141, %130, %cst_50 {dimension_numbers = #tpu.dot_dimension_numbers<[2], [1], [1], [2], [0, 0, 0, 1, 1, 2], [0], [0]>} : vector<1x8x8xf32>, vector<1x8x16xf32>, vector<1x8x16xf32> -> vector<1x8x16xf32>
    "tpu.trace_stop"() : () -> ()
    %c80 = arith.constant 80 : index
    %c0_51 = arith.constant 0 : index
    %143 = vector.load %arg7[%c80, %c0_51] : memref<256x128xf32, #tpu.memory_space<vmem>>, vector<16x128xf32>
    %144 = vector.shape_cast %142 : vector<1x8x16xf32> to vector<8x16xf32>
    %cst_52 = arith.constant dense<0.000000e+00> : vector<8x128xf32>
    %145 = tpu.matmul %144, %143, %cst_52 {dimension_numbers = #tpu.dot_dimension_numbers<[1], [0], [0], [1], [0, 0, 1, 1], [], []>} : vector<8x16xf32>, vector<16x128xf32>, vector<8x128xf32> -> vector<8x128xf32>
    %146 = arith.addf %124, %145 : vector<8x128xf32>
    %147 = vector.extract_strided_slice %11 {offsets = [0, 48], sizes = [8, 8], strides = [1, 1]} : vector<8x128xf32> to vector<8x8xf32>
    %148 = vector.shape_cast %147 : vector<8x8xf32> to vector<1x8x8xf32>
    %149 = vector.extract_strided_slice %13 {offsets = [0, 48], sizes = [8, 8], strides = [1, 1]} : vector<8x128xf32> to vector<8x8xf32>
    %150 = vector.shape_cast %149 : vector<8x8xf32> to vector<1x8x8xf32>
    %151 = vector.extract_strided_slice %9 {offsets = [0, 96], sizes = [8, 16], strides = [1, 1]} : vector<8x256xf32> to vector<8x16xf32>
    %152 = vector.shape_cast %151 : vector<8x16xf32> to vector<1x8x16xf32>
    "tpu.trace_start"() <{level = 10 : i32, message = "btd,bsd->bts"}> : () -> ()
    %cst_53 = arith.constant dense<0.000000e+00> : vector<1x8x8xf32>
    %153 = tpu.matmul %148, %150, %cst_53 {dimension_numbers = #tpu.dot_dimension_numbers<[2], [2], [1], [1], [0, 0, 0, 1, 1, 1], [0], [0]>} : vector<1x8x8xf32>, vector<1x8x8xf32>, vector<1x8x8xf32> -> vector<1x8x8xf32>
    "tpu.trace_stop"() : () -> ()
    %cst_54 = arith.constant dense<0xFF800000> : vector<1x8xf32>
    %154 = vector.multi_reduction <maximumf>, %153, %cst_54 [2] : vector<1x8x8xf32> to vector<1x8xf32>
    %155 = vector.shape_cast %154 : vector<1x8xf32> to vector<1x8x1xf32>
    %156 = vector.broadcast %155 : vector<1x8x1xf32> to vector<1x8x8xf32>
    %157 = arith.subf %153, %156 : vector<1x8x8xf32>
    %158 = math.exp %157 : vector<1x8x8xf32>
    %cst_55 = arith.constant dense<0.000000e+00> : vector<1x8xf32>
    %159 = vector.multi_reduction <add>, %158, %cst_55 [2] : vector<1x8x8xf32> to vector<1x8xf32>
    %160 = vector.shape_cast %159 : vector<1x8xf32> to vector<1x8x1xf32>
    %161 = tpu.reciprocal %160 {approx = true} : vector<1x8x1xf32> -> vector<1x8x1xf32>
    %162 = vector.broadcast %161 : vector<1x8x1xf32> to vector<1x8x8xf32>
    %163 = arith.mulf %158, %162 : vector<1x8x8xf32>
    "tpu.trace_start"() <{level = 10 : i32, message = "bts,bsd->btd"}> : () -> ()
    %cst_56 = arith.constant dense<0.000000e+00> : vector<1x8x16xf32>
    %164 = tpu.matmul %163, %152, %cst_56 {dimension_numbers = #tpu.dot_dimension_numbers<[2], [1], [1], [2], [0, 0, 0, 1, 1, 2], [0], [0]>} : vector<1x8x8xf32>, vector<1x8x16xf32>, vector<1x8x16xf32> -> vector<1x8x16xf32>
    "tpu.trace_stop"() : () -> ()
    %c96 = arith.constant 96 : index
    %c0_57 = arith.constant 0 : index
    %165 = vector.load %arg7[%c96, %c0_57] : memref<256x128xf32, #tpu.memory_space<vmem>>, vector<16x128xf32>
    %166 = vector.shape_cast %164 : vector<1x8x16xf32> to vector<8x16xf32>
    %cst_58 = arith.constant dense<0.000000e+00> : vector<8x128xf32>
    %167 = tpu.matmul %166, %165, %cst_58 {dimension_numbers = #tpu.dot_dimension_numbers<[1], [0], [0], [1], [0, 0, 1, 1], [], []>} : vector<8x16xf32>, vector<16x128xf32>, vector<8x128xf32> -> vector<8x128xf32>
    %168 = arith.addf %146, %167 : vector<8x128xf32>
    %169 = vector.extract_strided_slice %11 {offsets = [0, 56], sizes = [8, 8], strides = [1, 1]} : vector<8x128xf32> to vector<8x8xf32>
    %170 = vector.shape_cast %169 : vector<8x8xf32> to vector<1x8x8xf32>
    %171 = vector.extract_strided_slice %13 {offsets = [0, 56], sizes = [8, 8], strides = [1, 1]} : vector<8x128xf32> to vector<8x8xf32>
    %172 = vector.shape_cast %171 : vector<8x8xf32> to vector<1x8x8xf32>
    %173 = vector.extract_strided_slice %9 {offsets = [0, 112], sizes = [8, 16], strides = [1, 1]} : vector<8x256xf32> to vector<8x16xf32>
    %174 = vector.shape_cast %173 : vector<8x16xf32> to vector<1x8x16xf32>
    "tpu.trace_start"() <{level = 10 : i32, message = "btd,bsd->bts"}> : () -> ()
    %cst_59 = arith.constant dense<0.000000e+00> : vector<1x8x8xf32>
    %175 = tpu.matmul %170, %172, %cst_59 {dimension_numbers = #tpu.dot_dimension_numbers<[2], [2], [1], [1], [0, 0, 0, 1, 1, 1], [0], [0]>} : vector<1x8x8xf32>, vector<1x8x8xf32>, vector<1x8x8xf32> -> vector<1x8x8xf32>
    "tpu.trace_stop"() : () -> ()
    %cst_60 = arith.constant dense<0xFF800000> : vector<1x8xf32>
    %176 = vector.multi_reduction <maximumf>, %175, %cst_60 [2] : vector<1x8x8xf32> to vector<1x8xf32>
    %177 = vector.shape_cast %176 : vector<1x8xf32> to vector<1x8x1xf32>
    %178 = vector.broadcast %177 : vector<1x8x1xf32> to vector<1x8x8xf32>
    %179 = arith.subf %175, %178 : vector<1x8x8xf32>
    %180 = math.exp %179 : vector<1x8x8xf32>
    %cst_61 = arith.constant dense<0.000000e+00> : vector<1x8xf32>
    %181 = vector.multi_reduction <add>, %180, %cst_61 [2] : vector<1x8x8xf32> to vector<1x8xf32>
    %182 = vector.shape_cast %181 : vector<1x8xf32> to vector<1x8x1xf32>
    %183 = tpu.reciprocal %182 {approx = true} : vector<1x8x1xf32> -> vector<1x8x1xf32>
    %184 = vector.broadcast %183 : vector<1x8x1xf32> to vector<1x8x8xf32>
    %185 = arith.mulf %180, %184 : vector<1x8x8xf32>
    "tpu.trace_start"() <{level = 10 : i32, message = "bts,bsd->btd"}> : () -> ()
    %cst_62 = arith.constant dense<0.000000e+00> : vector<1x8x16xf32>
    %186 = tpu.matmul %185, %174, %cst_62 {dimension_numbers = #tpu.dot_dimension_numbers<[2], [1], [1], [2], [0, 0, 0, 1, 1, 2], [0], [0]>} : vector<1x8x8xf32>, vector<1x8x16xf32>, vector<1x8x16xf32> -> vector<1x8x16xf32>
    "tpu.trace_stop"() : () -> ()
    %c112 = arith.constant 112 : index
    %c0_63 = arith.constant 0 : index
    %187 = vector.load %arg7[%c112, %c0_63] : memref<256x128xf32, #tpu.memory_space<vmem>>, vector<16x128xf32>
    %188 = vector.shape_cast %186 : vector<1x8x16xf32> to vector<8x16xf32>
    %cst_64 = arith.constant dense<0.000000e+00> : vector<8x128xf32>
    %189 = tpu.matmul %188, %187, %cst_64 {dimension_numbers = #tpu.dot_dimension_numbers<[1], [0], [0], [1], [0, 0, 1, 1], [], []>} : vector<8x16xf32>, vector<16x128xf32>, vector<8x128xf32> -> vector<8x128xf32>
    %190 = arith.addf %168, %189 : vector<8x128xf32>
    %191 = vector.extract_strided_slice %11 {offsets = [0, 64], sizes = [8, 8], strides = [1, 1]} : vector<8x128xf32> to vector<8x8xf32>
    %192 = vector.shape_cast %191 : vector<8x8xf32> to vector<1x8x8xf32>
    %193 = vector.extract_strided_slice %13 {offsets = [0, 64], sizes = [8, 8], strides = [1, 1]} : vector<8x128xf32> to vector<8x8xf32>
    %194 = vector.shape_cast %193 : vector<8x8xf32> to vector<1x8x8xf32>
    %195 = vector.extract_strided_slice %9 {offsets = [0, 128], sizes = [8, 16], strides = [1, 1]} : vector<8x256xf32> to vector<8x16xf32>
    %196 = vector.shape_cast %195 : vector<8x16xf32> to vector<1x8x16xf32>
    "tpu.trace_start"() <{level = 10 : i32, message = "btd,bsd->bts"}> : () -> ()
    %cst_65 = arith.constant dense<0.000000e+00> : vector<1x8x8xf32>
    %197 = tpu.matmul %192, %194, %cst_65 {dimension_numbers = #tpu.dot_dimension_numbers<[2], [2], [1], [1], [0, 0, 0, 1, 1, 1], [0], [0]>} : vector<1x8x8xf32>, vector<1x8x8xf32>, vector<1x8x8xf32> -> vector<1x8x8xf32>
    "tpu.trace_stop"() : () -> ()
    %cst_66 = arith.constant dense<0xFF800000> : vector<1x8xf32>
    %198 = vector.multi_reduction <maximumf>, %197, %cst_66 [2] : vector<1x8x8xf32> to vector<1x8xf32>
    %199 = vector.shape_cast %198 : vector<1x8xf32> to vector<1x8x1xf32>
    %200 = vector.broadcast %199 : vector<1x8x1xf32> to vector<1x8x8xf32>
    %201 = arith.subf %197, %200 : vector<1x8x8xf32>
    %202 = math.exp %201 : vector<1x8x8xf32>
    %cst_67 = arith.constant dense<0.000000e+00> : vector<1x8xf32>
    %203 = vector.multi_reduction <add>, %202, %cst_67 [2] : vector<1x8x8xf32> to vector<1x8xf32>
    %204 = vector.shape_cast %203 : vector<1x8xf32> to vector<1x8x1xf32>
    %205 = tpu.reciprocal %204 {approx = true} : vector<1x8x1xf32> -> vector<1x8x1xf32>
    %206 = vector.broadcast %205 : vector<1x8x1xf32> to vector<1x8x8xf32>
    %207 = arith.mulf %202, %206 : vector<1x8x8xf32>
    "tpu.trace_start"() <{level = 10 : i32, message = "bts,bsd->btd"}> : () -> ()
    %cst_68 = arith.constant dense<0.000000e+00> : vector<1x8x16xf32>
    %208 = tpu.matmul %207, %196, %cst_68 {dimension_numbers = #tpu.dot_dimension_numbers<[2], [1], [1], [2], [0, 0, 0, 1, 1, 2], [0], [0]>} : vector<1x8x8xf32>, vector<1x8x16xf32>, vector<1x8x16xf32> -> vector<1x8x16xf32>
    "tpu.trace_stop"() : () -> ()
    %c128 = arith.constant 128 : index
    %c0_69 = arith.constant 0 : index
    %209 = vector.load %arg7[%c128, %c0_69] : memref<256x128xf32, #tpu.memory_space<vmem>>, vector<16x128xf32>
    %210 = vector.shape_cast %208 : vector<1x8x16xf32> to vector<8x16xf32>
    %cst_70 = arith.constant dense<0.000000e+00> : vector<8x128xf32>
    %211 = tpu.matmul %210, %209, %cst_70 {dimension_numbers = #tpu.dot_dimension_numbers<[1], [0], [0], [1], [0, 0, 1, 1], [], []>} : vector<8x16xf32>, vector<16x128xf32>, vector<8x128xf32> -> vector<8x128xf32>
    %212 = arith.addf %190, %211 : vector<8x128xf32>
    %213 = vector.extract_strided_slice %11 {offsets = [0, 72], sizes = [8, 8], strides = [1, 1]} : vector<8x128xf32> to vector<8x8xf32>
    %214 = vector.shape_cast %213 : vector<8x8xf32> to vector<1x8x8xf32>
    %215 = vector.extract_strided_slice %13 {offsets = [0, 72], sizes = [8, 8], strides = [1, 1]} : vector<8x128xf32> to vector<8x8xf32>
    %216 = vector.shape_cast %215 : vector<8x8xf32> to vector<1x8x8xf32>
    %217 = vector.extract_strided_slice %9 {offsets = [0, 144], sizes = [8, 16], strides = [1, 1]} : vector<8x256xf32> to vector<8x16xf32>
    %218 = vector.shape_cast %217 : vector<8x16xf32> to vector<1x8x16xf32>
    "tpu.trace_start"() <{level = 10 : i32, message = "btd,bsd->bts"}> : () -> ()
    %cst_71 = arith.constant dense<0.000000e+00> : vector<1x8x8xf32>
    %219 = tpu.matmul %214, %216, %cst_71 {dimension_numbers = #tpu.dot_dimension_numbers<[2], [2], [1], [1], [0, 0, 0, 1, 1, 1], [0], [0]>} : vector<1x8x8xf32>, vector<1x8x8xf32>, vector<1x8x8xf32> -> vector<1x8x8xf32>
    "tpu.trace_stop"() : () -> ()
    %cst_72 = arith.constant dense<0xFF800000> : vector<1x8xf32>
    %220 = vector.multi_reduction <maximumf>, %219, %cst_72 [2] : vector<1x8x8xf32> to vector<1x8xf32>
    %221 = vector.shape_cast %220 : vector<1x8xf32> to vector<1x8x1xf32>
    %222 = vector.broadcast %221 : vector<1x8x1xf32> to vector<1x8x8xf32>
    %223 = arith.subf %219, %222 : vector<1x8x8xf32>
    %224 = math.exp %223 : vector<1x8x8xf32>
    %cst_73 = arith.constant dense<0.000000e+00> : vector<1x8xf32>
    %225 = vector.multi_reduction <add>, %224, %cst_73 [2] : vector<1x8x8xf32> to vector<1x8xf32>
    %226 = vector.shape_cast %225 : vector<1x8xf32> to vector<1x8x1xf32>
    %227 = tpu.reciprocal %226 {approx = true} : vector<1x8x1xf32> -> vector<1x8x1xf32>
    %228 = vector.broadcast %227 : vector<1x8x1xf32> to vector<1x8x8xf32>
    %229 = arith.mulf %224, %228 : vector<1x8x8xf32>
    "tpu.trace_start"() <{level = 10 : i32, message = "bts,bsd->btd"}> : () -> ()
    %cst_74 = arith.constant dense<0.000000e+00> : vector<1x8x16xf32>
    %230 = tpu.matmul %229, %218, %cst_74 {dimension_numbers = #tpu.dot_dimension_numbers<[2], [1], [1], [2], [0, 0, 0, 1, 1, 2], [0], [0]>} : vector<1x8x8xf32>, vector<1x8x16xf32>, vector<1x8x16xf32> -> vector<1x8x16xf32>
    "tpu.trace_stop"() : () -> ()
    %c144 = arith.constant 144 : index
    %c0_75 = arith.constant 0 : index
    %231 = vector.load %arg7[%c144, %c0_75] : memref<256x128xf32, #tpu.memory_space<vmem>>, vector<16x128xf32>
    %232 = vector.shape_cast %230 : vector<1x8x16xf32> to vector<8x16xf32>
    %cst_76 = arith.constant dense<0.000000e+00> : vector<8x128xf32>
    %233 = tpu.matmul %232, %231, %cst_76 {dimension_numbers = #tpu.dot_dimension_numbers<[1], [0], [0], [1], [0, 0, 1, 1], [], []>} : vector<8x16xf32>, vector<16x128xf32>, vector<8x128xf32> -> vector<8x128xf32>
    %234 = arith.addf %212, %233 : vector<8x128xf32>
    %235 = vector.extract_strided_slice %11 {offsets = [0, 80], sizes = [8, 8], strides = [1, 1]} : vector<8x128xf32> to vector<8x8xf32>
    %236 = vector.shape_cast %235 : vector<8x8xf32> to vector<1x8x8xf32>
    %237 = vector.extract_strided_slice %13 {offsets = [0, 80], sizes = [8, 8], strides = [1, 1]} : vector<8x128xf32> to vector<8x8xf32>
    %238 = vector.shape_cast %237 : vector<8x8xf32> to vector<1x8x8xf32>
    %239 = vector.extract_strided_slice %9 {offsets = [0, 160], sizes = [8, 16], strides = [1, 1]} : vector<8x256xf32> to vector<8x16xf32>
    %240 = vector.shape_cast %239 : vector<8x16xf32> to vector<1x8x16xf32>
    "tpu.trace_start"() <{level = 10 : i32, message = "btd,bsd->bts"}> : () -> ()
    %cst_77 = arith.constant dense<0.000000e+00> : vector<1x8x8xf32>
    %241 = tpu.matmul %236, %238, %cst_77 {dimension_numbers = #tpu.dot_dimension_numbers<[2], [2], [1], [1], [0, 0, 0, 1, 1, 1], [0], [0]>} : vector<1x8x8xf32>, vector<1x8x8xf32>, vector<1x8x8xf32> -> vector<1x8x8xf32>
    "tpu.trace_stop"() : () -> ()
    %cst_78 = arith.constant dense<0xFF800000> : vector<1x8xf32>
    %242 = vector.multi_reduction <maximumf>, %241, %cst_78 [2] : vector<1x8x8xf32> to vector<1x8xf32>
    %243 = vector.shape_cast %242 : vector<1x8xf32> to vector<1x8x1xf32>
    %244 = vector.broadcast %243 : vector<1x8x1xf32> to vector<1x8x8xf32>
    %245 = arith.subf %241, %244 : vector<1x8x8xf32>
    %246 = math.exp %245 : vector<1x8x8xf32>
    %cst_79 = arith.constant dense<0.000000e+00> : vector<1x8xf32>
    %247 = vector.multi_reduction <add>, %246, %cst_79 [2] : vector<1x8x8xf32> to vector<1x8xf32>
    %248 = vector.shape_cast %247 : vector<1x8xf32> to vector<1x8x1xf32>
    %249 = tpu.reciprocal %248 {approx = true} : vector<1x8x1xf32> -> vector<1x8x1xf32>
    %250 = vector.broadcast %249 : vector<1x8x1xf32> to vector<1x8x8xf32>
    %251 = arith.mulf %246, %250 : vector<1x8x8xf32>
    "tpu.trace_start"() <{level = 10 : i32, message = "bts,bsd->btd"}> : () -> ()
    %cst_80 = arith.constant dense<0.000000e+00> : vector<1x8x16xf32>
    %252 = tpu.matmul %251, %240, %cst_80 {dimension_numbers = #tpu.dot_dimension_numbers<[2], [1], [1], [2], [0, 0, 0, 1, 1, 2], [0], [0]>} : vector<1x8x8xf32>, vector<1x8x16xf32>, vector<1x8x16xf32> -> vector<1x8x16xf32>
    "tpu.trace_stop"() : () -> ()
    %c160 = arith.constant 160 : index
    %c0_81 = arith.constant 0 : index
    %253 = vector.load %arg7[%c160, %c0_81] : memref<256x128xf32, #tpu.memory_space<vmem>>, vector<16x128xf32>
    %254 = vector.shape_cast %252 : vector<1x8x16xf32> to vector<8x16xf32>
    %cst_82 = arith.constant dense<0.000000e+00> : vector<8x128xf32>
    %255 = tpu.matmul %254, %253, %cst_82 {dimension_numbers = #tpu.dot_dimension_numbers<[1], [0], [0], [1], [0, 0, 1, 1], [], []>} : vector<8x16xf32>, vector<16x128xf32>, vector<8x128xf32> -> vector<8x128xf32>
    %256 = arith.addf %234, %255 : vector<8x128xf32>
    %257 = vector.extract_strided_slice %11 {offsets = [0, 88], sizes = [8, 8], strides = [1, 1]} : vector<8x128xf32> to vector<8x8xf32>
    %258 = vector.shape_cast %257 : vector<8x8xf32> to vector<1x8x8xf32>
    %259 = vector.extract_strided_slice %13 {offsets = [0, 88], sizes = [8, 8], strides = [1, 1]} : vector<8x128xf32> to vector<8x8xf32>
    %260 = vector.shape_cast %259 : vector<8x8xf32> to vector<1x8x8xf32>
    %261 = vector.extract_strided_slice %9 {offsets = [0, 176], sizes = [8, 16], strides = [1, 1]} : vector<8x256xf32> to vector<8x16xf32>
    %262 = vector.shape_cast %261 : vector<8x16xf32> to vector<1x8x16xf32>
    "tpu.trace_start"() <{level = 10 : i32, message = "btd,bsd->bts"}> : () -> ()
    %cst_83 = arith.constant dense<0.000000e+00> : vector<1x8x8xf32>
    %263 = tpu.matmul %258, %260, %cst_83 {dimension_numbers = #tpu.dot_dimension_numbers<[2], [2], [1], [1], [0, 0, 0, 1, 1, 1], [0], [0]>} : vector<1x8x8xf32>, vector<1x8x8xf32>, vector<1x8x8xf32> -> vector<1x8x8xf32>
    "tpu.trace_stop"() : () -> ()
    %cst_84 = arith.constant dense<0xFF800000> : vector<1x8xf32>
    %264 = vector.multi_reduction <maximumf>, %263, %cst_84 [2] : vector<1x8x8xf32> to vector<1x8xf32>
    %265 = vector.shape_cast %264 : vector<1x8xf32> to vector<1x8x1xf32>
    %266 = vector.broadcast %265 : vector<1x8x1xf32> to vector<1x8x8xf32>
    %267 = arith.subf %263, %266 : vector<1x8x8xf32>
    %268 = math.exp %267 : vector<1x8x8xf32>
    %cst_85 = arith.constant dense<0.000000e+00> : vector<1x8xf32>
    %269 = vector.multi_reduction <add>, %268, %cst_85 [2] : vector<1x8x8xf32> to vector<1x8xf32>
    %270 = vector.shape_cast %269 : vector<1x8xf32> to vector<1x8x1xf32>
    %271 = tpu.reciprocal %270 {approx = true} : vector<1x8x1xf32> -> vector<1x8x1xf32>
    %272 = vector.broadcast %271 : vector<1x8x1xf32> to vector<1x8x8xf32>
    %273 = arith.mulf %268, %272 : vector<1x8x8xf32>
    "tpu.trace_start"() <{level = 10 : i32, message = "bts,bsd->btd"}> : () -> ()
    %cst_86 = arith.constant dense<0.000000e+00> : vector<1x8x16xf32>
    %274 = tpu.matmul %273, %262, %cst_86 {dimension_numbers = #tpu.dot_dimension_numbers<[2], [1], [1], [2], [0, 0, 0, 1, 1, 2], [0], [0]>} : vector<1x8x8xf32>, vector<1x8x16xf32>, vector<1x8x16xf32> -> vector<1x8x16xf32>
    "tpu.trace_stop"() : () -> ()
    %c176 = arith.constant 176 : index
    %c0_87 = arith.constant 0 : index
    %275 = vector.load %arg7[%c176, %c0_87] : memref<256x128xf32, #tpu.memory_space<vmem>>, vector<16x128xf32>
    %276 = vector.shape_cast %274 : vector<1x8x16xf32> to vector<8x16xf32>
    %cst_88 = arith.constant dense<0.000000e+00> : vector<8x128xf32>
    %277 = tpu.matmul %276, %275, %cst_88 {dimension_numbers = #tpu.dot_dimension_numbers<[1], [0], [0], [1], [0, 0, 1, 1], [], []>} : vector<8x16xf32>, vector<16x128xf32>, vector<8x128xf32> -> vector<8x128xf32>
    %278 = arith.addf %256, %277 : vector<8x128xf32>
    %279 = vector.extract_strided_slice %11 {offsets = [0, 96], sizes = [8, 8], strides = [1, 1]} : vector<8x128xf32> to vector<8x8xf32>
    %280 = vector.shape_cast %279 : vector<8x8xf32> to vector<1x8x8xf32>
    %281 = vector.extract_strided_slice %13 {offsets = [0, 96], sizes = [8, 8], strides = [1, 1]} : vector<8x128xf32> to vector<8x8xf32>
    %282 = vector.shape_cast %281 : vector<8x8xf32> to vector<1x8x8xf32>
    %283 = vector.extract_strided_slice %9 {offsets = [0, 192], sizes = [8, 16], strides = [1, 1]} : vector<8x256xf32> to vector<8x16xf32>
    %284 = vector.shape_cast %283 : vector<8x16xf32> to vector<1x8x16xf32>
    "tpu.trace_start"() <{level = 10 : i32, message = "btd,bsd->bts"}> : () -> ()
    %cst_89 = arith.constant dense<0.000000e+00> : vector<1x8x8xf32>
    %285 = tpu.matmul %280, %282, %cst_89 {dimension_numbers = #tpu.dot_dimension_numbers<[2], [2], [1], [1], [0, 0, 0, 1, 1, 1], [0], [0]>} : vector<1x8x8xf32>, vector<1x8x8xf32>, vector<1x8x8xf32> -> vector<1x8x8xf32>
    "tpu.trace_stop"() : () -> ()
    %cst_90 = arith.constant dense<0xFF800000> : vector<1x8xf32>
    %286 = vector.multi_reduction <maximumf>, %285, %cst_90 [2] : vector<1x8x8xf32> to vector<1x8xf32>
    %287 = vector.shape_cast %286 : vector<1x8xf32> to vector<1x8x1xf32>
    %288 = vector.broadcast %287 : vector<1x8x1xf32> to vector<1x8x8xf32>
    %289 = arith.subf %285, %288 : vector<1x8x8xf32>
    %290 = math.exp %289 : vector<1x8x8xf32>
    %cst_91 = arith.constant dense<0.000000e+00> : vector<1x8xf32>
    %291 = vector.multi_reduction <add>, %290, %cst_91 [2] : vector<1x8x8xf32> to vector<1x8xf32>
    %292 = vector.shape_cast %291 : vector<1x8xf32> to vector<1x8x1xf32>
    %293 = tpu.reciprocal %292 {approx = true} : vector<1x8x1xf32> -> vector<1x8x1xf32>
    %294 = vector.broadcast %293 : vector<1x8x1xf32> to vector<1x8x8xf32>
    %295 = arith.mulf %290, %294 : vector<1x8x8xf32>
    "tpu.trace_start"() <{level = 10 : i32, message = "bts,bsd->btd"}> : () -> ()
    %cst_92 = arith.constant dense<0.000000e+00> : vector<1x8x16xf32>
    %296 = tpu.matmul %295, %284, %cst_92 {dimension_numbers = #tpu.dot_dimension_numbers<[2], [1], [1], [2], [0, 0, 0, 1, 1, 2], [0], [0]>} : vector<1x8x8xf32>, vector<1x8x16xf32>, vector<1x8x16xf32> -> vector<1x8x16xf32>
    "tpu.trace_stop"() : () -> ()
    %c192 = arith.constant 192 : index
    %c0_93 = arith.constant 0 : index
    %297 = vector.load %arg7[%c192, %c0_93] : memref<256x128xf32, #tpu.memory_space<vmem>>, vector<16x128xf32>
    %298 = vector.shape_cast %296 : vector<1x8x16xf32> to vector<8x16xf32>
    %cst_94 = arith.constant dense<0.000000e+00> : vector<8x128xf32>
    %299 = tpu.matmul %298, %297, %cst_94 {dimension_numbers = #tpu.dot_dimension_numbers<[1], [0], [0], [1], [0, 0, 1, 1], [], []>} : vector<8x16xf32>, vector<16x128xf32>, vector<8x128xf32> -> vector<8x128xf32>
    %300 = arith.addf %278, %299 : vector<8x128xf32>
    %301 = vector.extract_strided_slice %11 {offsets = [0, 104], sizes = [8, 8], strides = [1, 1]} : vector<8x128xf32> to vector<8x8xf32>
    %302 = vector.shape_cast %301 : vector<8x8xf32> to vector<1x8x8xf32>
    %303 = vector.extract_strided_slice %13 {offsets = [0, 104], sizes = [8, 8], strides = [1, 1]} : vector<8x128xf32> to vector<8x8xf32>
    %304 = vector.shape_cast %303 : vector<8x8xf32> to vector<1x8x8xf32>
    %305 = vector.extract_strided_slice %9 {offsets = [0, 208], sizes = [8, 16], strides = [1, 1]} : vector<8x256xf32> to vector<8x16xf32>
    %306 = vector.shape_cast %305 : vector<8x16xf32> to vector<1x8x16xf32>
    "tpu.trace_start"() <{level = 10 : i32, message = "btd,bsd->bts"}> : () -> ()
    %cst_95 = arith.constant dense<0.000000e+00> : vector<1x8x8xf32>
    %307 = tpu.matmul %302, %304, %cst_95 {dimension_numbers = #tpu.dot_dimension_numbers<[2], [2], [1], [1], [0, 0, 0, 1, 1, 1], [0], [0]>} : vector<1x8x8xf32>, vector<1x8x8xf32>, vector<1x8x8xf32> -> vector<1x8x8xf32>
    "tpu.trace_stop"() : () -> ()
    %cst_96 = arith.constant dense<0xFF800000> : vector<1x8xf32>
    %308 = vector.multi_reduction <maximumf>, %307, %cst_96 [2] : vector<1x8x8xf32> to vector<1x8xf32>
    %309 = vector.shape_cast %308 : vector<1x8xf32> to vector<1x8x1xf32>
    %310 = vector.broadcast %309 : vector<1x8x1xf32> to vector<1x8x8xf32>
    %311 = arith.subf %307, %310 : vector<1x8x8xf32>
    %312 = math.exp %311 : vector<1x8x8xf32>
    %cst_97 = arith.constant dense<0.000000e+00> : vector<1x8xf32>
    %313 = vector.multi_reduction <add>, %312, %cst_97 [2] : vector<1x8x8xf32> to vector<1x8xf32>
    %314 = vector.shape_cast %313 : vector<1x8xf32> to vector<1x8x1xf32>
    %315 = tpu.reciprocal %314 {approx = true} : vector<1x8x1xf32> -> vector<1x8x1xf32>
    %316 = vector.broadcast %315 : vector<1x8x1xf32> to vector<1x8x8xf32>
    %317 = arith.mulf %312, %316 : vector<1x8x8xf32>
    "tpu.trace_start"() <{level = 10 : i32, message = "bts,bsd->btd"}> : () -> ()
    %cst_98 = arith.constant dense<0.000000e+00> : vector<1x8x16xf32>
    %318 = tpu.matmul %317, %306, %cst_98 {dimension_numbers = #tpu.dot_dimension_numbers<[2], [1], [1], [2], [0, 0, 0, 1, 1, 2], [0], [0]>} : vector<1x8x8xf32>, vector<1x8x16xf32>, vector<1x8x16xf32> -> vector<1x8x16xf32>
    "tpu.trace_stop"() : () -> ()
    %c208 = arith.constant 208 : index
    %c0_99 = arith.constant 0 : index
    %319 = vector.load %arg7[%c208, %c0_99] : memref<256x128xf32, #tpu.memory_space<vmem>>, vector<16x128xf32>
    %320 = vector.shape_cast %318 : vector<1x8x16xf32> to vector<8x16xf32>
    %cst_100 = arith.constant dense<0.000000e+00> : vector<8x128xf32>
    %321 = tpu.matmul %320, %319, %cst_100 {dimension_numbers = #tpu.dot_dimension_numbers<[1], [0], [0], [1], [0, 0, 1, 1], [], []>} : vector<8x16xf32>, vector<16x128xf32>, vector<8x128xf32> -> vector<8x128xf32>
    %322 = arith.addf %300, %321 : vector<8x128xf32>
    %323 = vector.extract_strided_slice %11 {offsets = [0, 112], sizes = [8, 8], strides = [1, 1]} : vector<8x128xf32> to vector<8x8xf32>
    %324 = vector.shape_cast %323 : vector<8x8xf32> to vector<1x8x8xf32>
    %325 = vector.extract_strided_slice %13 {offsets = [0, 112], sizes = [8, 8], strides = [1, 1]} : vector<8x128xf32> to vector<8x8xf32>
    %326 = vector.shape_cast %325 : vector<8x8xf32> to vector<1x8x8xf32>
    %327 = vector.extract_strided_slice %9 {offsets = [0, 224], sizes = [8, 16], strides = [1, 1]} : vector<8x256xf32> to vector<8x16xf32>
    %328 = vector.shape_cast %327 : vector<8x16xf32> to vector<1x8x16xf32>
    "tpu.trace_start"() <{level = 10 : i32, message = "btd,bsd->bts"}> : () -> ()
    %cst_101 = arith.constant dense<0.000000e+00> : vector<1x8x8xf32>
    %329 = tpu.matmul %324, %326, %cst_101 {dimension_numbers = #tpu.dot_dimension_numbers<[2], [2], [1], [1], [0, 0, 0, 1, 1, 1], [0], [0]>} : vector<1x8x8xf32>, vector<1x8x8xf32>, vector<1x8x8xf32> -> vector<1x8x8xf32>
    "tpu.trace_stop"() : () -> ()
    %cst_102 = arith.constant dense<0xFF800000> : vector<1x8xf32>
    %330 = vector.multi_reduction <maximumf>, %329, %cst_102 [2] : vector<1x8x8xf32> to vector<1x8xf32>
    %331 = vector.shape_cast %330 : vector<1x8xf32> to vector<1x8x1xf32>
    %332 = vector.broadcast %331 : vector<1x8x1xf32> to vector<1x8x8xf32>
    %333 = arith.subf %329, %332 : vector<1x8x8xf32>
    %334 = math.exp %333 : vector<1x8x8xf32>
    %cst_103 = arith.constant dense<0.000000e+00> : vector<1x8xf32>
    %335 = vector.multi_reduction <add>, %334, %cst_103 [2] : vector<1x8x8xf32> to vector<1x8xf32>
    %336 = vector.shape_cast %335 : vector<1x8xf32> to vector<1x8x1xf32>
    %337 = tpu.reciprocal %336 {approx = true} : vector<1x8x1xf32> -> vector<1x8x1xf32>
    %338 = vector.broadcast %337 : vector<1x8x1xf32> to vector<1x8x8xf32>
    %339 = arith.mulf %334, %338 : vector<1x8x8xf32>
    "tpu.trace_start"() <{level = 10 : i32, message = "bts,bsd->btd"}> : () -> ()
    %cst_104 = arith.constant dense<0.000000e+00> : vector<1x8x16xf32>
    %340 = tpu.matmul %339, %328, %cst_104 {dimension_numbers = #tpu.dot_dimension_numbers<[2], [1], [1], [2], [0, 0, 0, 1, 1, 2], [0], [0]>} : vector<1x8x8xf32>, vector<1x8x16xf32>, vector<1x8x16xf32> -> vector<1x8x16xf32>
    "tpu.trace_stop"() : () -> ()
    %c224 = arith.constant 224 : index
    %c0_105 = arith.constant 0 : index
    %341 = vector.load %arg7[%c224, %c0_105] : memref<256x128xf32, #tpu.memory_space<vmem>>, vector<16x128xf32>
    %342 = vector.shape_cast %340 : vector<1x8x16xf32> to vector<8x16xf32>
    %cst_106 = arith.constant dense<0.000000e+00> : vector<8x128xf32>
    %343 = tpu.matmul %342, %341, %cst_106 {dimension_numbers = #tpu.dot_dimension_numbers<[1], [0], [0], [1], [0, 0, 1, 1], [], []>} : vector<8x16xf32>, vector<16x128xf32>, vector<8x128xf32> -> vector<8x128xf32>
    %344 = arith.addf %322, %343 : vector<8x128xf32>
    %345 = vector.extract_strided_slice %11 {offsets = [0, 120], sizes = [8, 8], strides = [1, 1]} : vector<8x128xf32> to vector<8x8xf32>
    %346 = vector.shape_cast %345 : vector<8x8xf32> to vector<1x8x8xf32>
    %347 = vector.extract_strided_slice %13 {offsets = [0, 120], sizes = [8, 8], strides = [1, 1]} : vector<8x128xf32> to vector<8x8xf32>
    %348 = vector.shape_cast %347 : vector<8x8xf32> to vector<1x8x8xf32>
    %349 = vector.extract_strided_slice %9 {offsets = [0, 240], sizes = [8, 16], strides = [1, 1]} : vector<8x256xf32> to vector<8x16xf32>
    %350 = vector.shape_cast %349 : vector<8x16xf32> to vector<1x8x16xf32>
    "tpu.trace_start"() <{level = 10 : i32, message = "btd,bsd->bts"}> : () -> ()
    %cst_107 = arith.constant dense<0.000000e+00> : vector<1x8x8xf32>
    %351 = tpu.matmul %346, %348, %cst_107 {dimension_numbers = #tpu.dot_dimension_numbers<[2], [2], [1], [1], [0, 0, 0, 1, 1, 1], [0], [0]>} : vector<1x8x8xf32>, vector<1x8x8xf32>, vector<1x8x8xf32> -> vector<1x8x8xf32>
    "tpu.trace_stop"() : () -> ()
    %cst_108 = arith.constant dense<0xFF800000> : vector<1x8xf32>
    %352 = vector.multi_reduction <maximumf>, %351, %cst_108 [2] : vector<1x8x8xf32> to vector<1x8xf32>
    %353 = vector.shape_cast %352 : vector<1x8xf32> to vector<1x8x1xf32>
    %354 = vector.broadcast %353 : vector<1x8x1xf32> to vector<1x8x8xf32>
    %355 = arith.subf %351, %354 : vector<1x8x8xf32>
    %356 = math.exp %355 : vector<1x8x8xf32>
    %cst_109 = arith.constant dense<0.000000e+00> : vector<1x8xf32>
    %357 = vector.multi_reduction <add>, %356, %cst_109 [2] : vector<1x8x8xf32> to vector<1x8xf32>
    %358 = vector.shape_cast %357 : vector<1x8xf32> to vector<1x8x1xf32>
    %359 = tpu.reciprocal %358 {approx = true} : vector<1x8x1xf32> -> vector<1x8x1xf32>
    %360 = vector.broadcast %359 : vector<1x8x1xf32> to vector<1x8x8xf32>
    %361 = arith.mulf %356, %360 : vector<1x8x8xf32>
    "tpu.trace_start"() <{level = 10 : i32, message = "bts,bsd->btd"}> : () -> ()
    %cst_110 = arith.constant dense<0.000000e+00> : vector<1x8x16xf32>
    %362 = tpu.matmul %361, %350, %cst_110 {dimension_numbers = #tpu.dot_dimension_numbers<[2], [1], [1], [2], [0, 0, 0, 1, 1, 2], [0], [0]>} : vector<1x8x8xf32>, vector<1x8x16xf32>, vector<1x8x16xf32> -> vector<1x8x16xf32>
    "tpu.trace_stop"() : () -> ()
    %c240 = arith.constant 240 : index
    %c0_111 = arith.constant 0 : index
    %363 = vector.load %arg7[%c240, %c0_111] : memref<256x128xf32, #tpu.memory_space<vmem>>, vector<16x128xf32>
    %364 = vector.shape_cast %362 : vector<1x8x16xf32> to vector<8x16xf32>
    %cst_112 = arith.constant dense<0.000000e+00> : vector<8x128xf32>
    %365 = tpu.matmul %364, %363, %cst_112 {dimension_numbers = #tpu.dot_dimension_numbers<[1], [0], [0], [1], [0, 0, 1, 1], [], []>} : vector<8x16xf32>, vector<16x128xf32>, vector<8x128xf32> -> vector<8x128xf32>
    %366 = arith.addf %344, %365 : vector<8x128xf32>
    %367 = vector.shape_cast %366 : vector<8x128xf32> to vector<1x8x128xf32>
    %cst_113 = arith.constant dense<0xFF800000> : vector<1x128xf32>
    %368 = vector.multi_reduction <maximumf>, %367, %cst_113 [1] : vector<1x8x128xf32> to vector<1x128xf32>
    %c0_114 = arith.constant 0 : index
    %c0_115 = arith.constant 0 : index
    %369 = vector.load %arg8[%c0_114, %c0_115] : memref<1x128xf32, #tpu.memory_space<vmem>>, vector<1x128xf32>
    %370 = arith.addf %368, %369 : vector<1x128xf32>
    %371 = vector.shape_cast %370 : vector<1x128xf32> to vector<1x1x128xf32>
    %c0_116 = arith.constant 0 : index
    %c0_117 = arith.constant 0 : index
    %c0_118 = arith.constant 0 : index
    %372 = vector.load %arg9[%c0_116, %c0_117, %c0_118] : memref<1x1x128xf32, #tpu.memory_space<vmem>>, vector<1x1x128xf32>
    tpu.vector_store %arg9[%c0_116, %c0_117, %c0_118], %371 {strides = array<i32>} : memref<1x1x128xf32, #tpu.memory_space<vmem>>, vector<1x1x128xf32>,
    return
  }
  func.func @transform_0(%arg0: i32) -> (i32, i32, i32) {
    %c0_i32 = arith.constant 0 : i32
    %c0_i32_0 = arith.constant 0 : i32
    %c0_i32_1 = arith.constant 0 : i32
    return %arg0, %c0_i32, %c0_i32_0 : i32, i32, i32
  }
  func.func @transform_1(%arg0: i32) -> (i32, i32, i32) {
    %c0_i32 = arith.constant 0 : i32
    %c0_i32_0 = arith.constant 0 : i32
    %c0_i32_1 = arith.constant 0 : i32
    return %arg0, %c0_i32, %c0_i32_0 : i32, i32, i32
  }
  func.func @transform_2(%arg0: i32) -> (i32, i32) {
    %c0_i32 = arith.constant 0 : i32
    %c0_i32_0 = arith.constant 0 : i32
    %c0_i32_1 = arith.constant 0 : i32
    return %c0_i32, %c0_i32_0 : i32, i32
  }
  func.func @transform_3(%arg0: i32) -> (i32, i32) {
    %c0_i32 = arith.constant 0 : i32
    %c0_i32_0 = arith.constant 0 : i32
    %c0_i32_1 = arith.constant 0 : i32
    return %c0_i32, %c0_i32_0 : i32, i32
  }
  func.func @transform_4(%arg0: i32) -> (i32, i32) {
    %c0_i32 = arith.constant 0 : i32
    %c0_i32_0 = arith.constant 0 : i32
    %c0_i32_1 = arith.constant 0 : i32
    return %c0_i32, %c0_i32_0 : i32, i32
  }
  func.func @transform_5(%arg0: i32) -> (i32, i32) {
    %c0_i32 = arith.constant 0 : i32
    %c0_i32_0 = arith.constant 0 : i32
    %c0_i32_1 = arith.constant 0 : i32
    return %c0_i32, %c0_i32_0 : i32, i32
  }
  func.func @transform_6(%arg0: i32) -> (i32, i32) {
    %c0_i32 = arith.constant 0 : i32
    %c0_i32_0 = arith.constant 0 : i32
    %c0_i32_1 = arith.constant 0 : i32
    return %c0_i32, %c0_i32_0 : i32, i32
  }
  func.func @transform_7(%arg0: i32) -> (i32, i32) {
    %c0_i32 = arith.constant 0 : i32
    %c0_i32_0 = arith.constant 0 : i32
    %c0_i32_1 = arith.constant 0 : i32
    return %c0_i32, %c0_i32_0 : i32, i32
  }
  func.func @transform_8(%arg0: i32) -> (i32, i32, i32) {
    %c0_i32 = arith.constant 0 : i32
    %c0_i32_0 = arith.constant 0 : i32
    %c0_i32_1 = arith.constant 0 : i32
    return %arg0, %c0_i32, %c0_i32_0 : i32, i32, i32
  }
}

</mosaic_0001>

<llo_original>
// kernel: tpu_custom_call.1
$region0: #{tpu_custom_call.1}
  #allocation0 [shape = 'u32[]', space=smem, size = 0x4, offset = 0x4, fixed_abs, tag = 'smem constant byte address 0x4 - core index']
  #allocation1 [shape = 'u32[72,128]{1,0:T(1,128)}', space=vmem, size = 0x9000, scoped, tag = 'internal scratch']
  %s0 = inlined_call_operand.hbm [shape: f32[2,8,128], index: 0, kind: input, shape index: {}]
  %s1 = inlined_call_operand.hbm [shape: f32[2,8,256], index: 1, kind: input, shape index: {}]
  %s2 = inlined_call_operand.hbm [shape: f32[128,256], index: 2, kind: input, shape index: {}]
  %s3 = inlined_call_operand.vmem [shape: f32[1,256], index: 3, kind: input, shape index: {}]
  %s4 = inlined_call_operand.hbm [shape: f32[256,128], index: 4, kind: input, shape index: {}]
  %s5 = inlined_call_operand.hbm [shape: f32[256,128], index: 5, kind: input, shape index: {}]
  %s6 = inlined_call_operand.hbm [shape: f32[256,128], index: 6, kind: input, shape index: {}]
  %s7 = inlined_call_operand.vmem [shape: f32[1,128], index: 7, kind: input, shape index: {}]
  %s8 = inlined_call_operand.hbm [shape: f32[2,1,128], index: 8, kind: output, shape index: {}]
  %s9 = sld [smem:[#allocation0]]
  $region89: #{tpu_custom_call.1} parent=0
    _
  %s11 = ssub.s32 1, %s9
  %s12 = scalar_select 0, %s11, %s9
  $region1: #{tpu_custom_call.1} parent=0
    #allocation2 [shape = 'u8[8192]{0}', space=vmem, size = 0x2000, scoped, tag = 'input window, operand 0']
    #allocation3 [shape = 's32[2]{0}', space=sflag, size = 0x8, scoped, tag = 'scoped memory for tpu_custom_call.1']
    #allocation4 [shape = 's32[2]{0}', space=sflag, size = 0x8, scoped, tag = 'scoped memory for tpu_custom_call.1']
    #allocation5 [shape = 'u8[16384]{0}', space=vmem, size = 0x4000, scoped, tag = 'input window, operand 1']
    #allocation6 [shape = 's32[2]{0}', space=sflag, size = 0x8, scoped, tag = 'scoped memory for tpu_custom_call.1']
    #allocation7 [shape = 'u8[131072]{0}', space=vmem, size = 0x20000, scoped, tag = 'input window, operand 2, single buffered']
    #allocation8 [shape = 'u8[131072]{0}', space=vmem, size = 0x20000, scoped, tag = 'input window, operand 4, single buffered']
    #allocation9 [shape = 's32[1]{0}', space=sflag, size = 0x4, scoped, tag = 'scoped memory for tpu_custom_call.1']
    #allocation10 [shape = 'u8[131072]{0}', space=vmem, size = 0x20000, scoped, tag = 'input window, operand 5, single buffered']
    #allocation11 [shape = 'u8[131072]{0}', space=vmem, size = 0x20000, scoped, tag = 'input window, operand 6, single buffered']
    #allocation12 [shape = 's32[1]{0}', space=sflag, size = 0x4, scoped, tag = 'scoped memory for tpu_custom_call.1']
    #allocation13 [shape = 'u8[1024]{0}', space=vmem, size = 0x400, scoped, tag = 'output window, operand 0']
    %13 = vsyncpa [#allocation3], 0
    %s14 = scalar_lea.sflag [#allocation3], 1
    %15 = vsyncpa %s14, 0
    %16 = vsyncpa [#allocation6], 0
    %s17 = scalar_lea.sflag [#allocation6], 1
    %18 = vsyncpa %s17, 0
    %19 = vsyncpa [#allocation9], 0
    %20 = vsyncpa [#allocation12], 0
    %21 = vsyncpa [#allocation4], 0
    %s22 = scalar_lea.sflag [#allocation4], 1
    %23 = vsyncpa %s22, 0
    loop: start=0, step=1, limit=4
    $region2: #{tpu_custom_call.1} parent=1 // loop_pre_header
      _
    $region3: #{tpu_custom_call.1} parent=1 // loop_header
      %s25 = sphi 0, %s29
      %p26 = scmp.ge.s32.totalorder %s25, 4
      %s35 = sphi 0, %s37
      %s38 = sphi 0, %s35
      %s39 = sphi 0, %s38
      %s55 = sphi 0, %s39
      %s61 = sphi 0, %s63
      %s64 = sphi 0, %s61
      %s65 = sphi 0, %s64
      %s81 = sphi 0, %s65
      %s85 = sphi 0, %s85
      %s87 = sphi 0, %s85
      %s88 = sphi 0, %s87
      %s102 = sphi 0, %s88
      %s106 = sphi 0, %s106
      %s108 = sphi 0, %s106
      %s109 = sphi 0, %s108
      %s123 = sphi 0, %s109
      %s127 = sphi 0, %s127
      %s129 = sphi 0, %s127
      %s130 = sphi 0, %s129
      %s144 = sphi 0, %s130
      %s148 = sphi 0, %s148
      %s150 = sphi 0, %s148
      %s151 = sphi 0, %s150
      %s165 = sphi 0, %s151
      %s169 = sphi 0, %s169
      %s171 = sphi 0, %s169
      %s172 = sphi 0, %s171
      %s186 = sphi 0, %s172
      %s190 = sphi 0, %s190
      %s192 = sphi 0, %s190
      %s193 = sphi 0, %s192
      %s207 = sphi 0, %s193
      %s213 = sphi 0, %s215
      %s216 = sphi 0, %s213
      %s217 = sphi 0, %s216
      %s233 = sphi 0, %s217
    $region4: #{tpu_custom_call.1} parent=1 // loop_header_branch
      %28 = sbr.rel (%p26) target = $region8
    $region5: #{tpu_custom_call.1} parent=1 // loop_body
      %s30 = ssub.s32 %s25, 1
      %s31 = ssub.s32 %s25, 2
      %s32 = sadd.s32 %s25, 1
      %s33 = ssub.s32 %s25, %s32
      %p34 = scmp.eq.s32.totalorder %s33, 0
      %s36 = sadd.s32 %s35, 1
      %s37 = scalar_select %p34, %s35, %s36
      %p40 = pneg %p34
      %p41 = scmp.eq.s32.totalorder %s25, 1
      %p42 = por %p40, %p41
      %p43 = scmp.ne.s32.totalorder %s35, %s38
      %p44 = scmp.eq.s32.totalorder %s25, 0
      %p45 = por %p43, %p44
      %p46 = scmp.ne.s32.totalorder %s35, %s38
      %p47 = scmp.eq.s32.totalorder %s30, 1
      %p48 = por %p46, %p47
      %p49 = scmp.ne.s32.totalorder %s38, %s39
      %p50 = scmp.eq.s32.totalorder %s30, 0
      %p51 = por %p49, %p50
      %p52 = scmp.ne.s32.totalorder %s38, %s39
      %p53 = scmp.eq.s32.totalorder %s31, 1
      %p54 = por %p52, %p53
      %p56 = scmp.ne.s32.totalorder %s39, %s55
      %p57 = scmp.eq.s32.totalorder %s31, 0
      %p58 = por %p56, %p57
      %s59 = ssub.s32 %s25, %s32
      %p60 = scmp.eq.s32.totalorder %s59, 0
      %s62 = sadd.s32 %s61, 1
      %s63 = scalar_select %p60, %s61, %s62
      %p66 = pneg %p60
      %p67 = scmp.eq.s32.totalorder %s25, 1
      %p68 = por %p66, %p67
      %p69 = scmp.ne.s32.totalorder %s61, %s64
      %p70 = scmp.eq.s32.totalorder %s25, 0
      %p71 = por %p69, %p70
      %p72 = scmp.ne.s32.totalorder %s61, %s64
      %p73 = scmp.eq.s32.totalorder %s30, 1
      %p74 = por %p72, %p73
      %p75 = scmp.ne.s32.totalorder %s64, %s65
      %p76 = scmp.eq.s32.totalorder %s30, 0
      %p77 = por %p75, %p76
      %p78 = scmp.ne.s32.totalorder %s64, %s65
      %p79 = scmp.eq.s32.totalorder %s31, 1
      %p80 = por %p78, %p79
      %p82 = scmp.ne.s32.totalorder %s65, %s81
      %p83 = scmp.eq.s32.totalorder %s31, 0
      %p84 = por %p82, %p83
      %s86 = sadd.s32 %s85, 1
      %p89 = scmp.eq.s32.totalorder %s25, 1
      %p90 = scmp.ne.s32.totalorder %s85, %s87
      %p91 = scmp.eq.s32.totalorder %s25, 0
      %p92 = por %p90, %p91
      %p93 = scmp.ne.s32.totalorder %s85, %s87
      %p94 = scmp.eq.s32.totalorder %s30, 1
      %p95 = por %p93, %p94
      %p96 = scmp.ne.s32.totalorder %s87, %s88
      %p97 = scmp.eq.s32.totalorder %s30, 0
      %p98 = por %p96, %p97
      %p99 = scmp.ne.s32.totalorder %s87, %s88
      %p100 = scmp.eq.s32.totalorder %s31, 1
      %p101 = por %p99, %p100
      %p103 = scmp.ne.s32.totalorder %s88, %s102
      %p104 = scmp.eq.s32.totalorder %s31, 0
      %p105 = por %p103, %p104
      %s107 = sadd.s32 %s106, 1
      %p110 = scmp.eq.s32.totalorder %s25, 1
      %p111 = scmp.ne.s32.totalorder %s106, %s108
      %p112 = scmp.eq.s32.totalorder %s25, 0
      %p113 = por %p111, %p112
      %p114 = scmp.ne.s32.totalorder %s106, %s108
      %p115 = scmp.eq.s32.totalorder %s30, 1
      %p116 = por %p114, %p115
      %p117 = scmp.ne.s32.totalorder %s108, %s109
      %p118 = scmp.eq.s32.totalorder %s30, 0
      %p119 = por %p117, %p118
      %p120 = scmp.ne.s32.totalorder %s108, %s109
      %p121 = scmp.eq.s32.totalorder %s31, 1
      %p122 = por %p120, %p121
      %p124 = scmp.ne.s32.totalorder %s109, %s123
      %p125 = scmp.eq.s32.totalorder %s31, 0
      %p126 = por %p124, %p125
      %s128 = sadd.s32 %s127, 1
      %p131 = scmp.eq.s32.totalorder %s25, 1
      %p132 = scmp.ne.s32.totalorder %s127, %s129
      %p133 = scmp.eq.s32.totalorder %s25, 0
      %p134 = por %p132, %p133
      %p135 = scmp.ne.s32.totalorder %s127, %s129
      %p136 = scmp.eq.s32.totalorder %s30, 1
      %p137 = por %p135, %p136
      %p138 = scmp.ne.s32.totalorder %s129, %s130
      %p139 = scmp.eq.s32.totalorder %s30, 0
      %p140 = por %p138, %p139
      %p141 = scmp.ne.s32.totalorder %s129, %s130
      %p142 = scmp.eq.s32.totalorder %s31, 1
      %p143 = por %p141, %p142
      %p145 = scmp.ne.s32.totalorder %s130, %s144
      %p146 = scmp.eq.s32.totalorder %s31, 0
      %p147 = por %p145, %p146
      %s149 = sadd.s32 %s148, 1
      %p152 = scmp.eq.s32.totalorder %s25, 1
      %p153 = scmp.ne.s32.totalorder %s148, %s150
      %p154 = scmp.eq.s32.totalorder %s25, 0
      %p155 = por %p153, %p154
      %p156 = scmp.ne.s32.totalorder %s148, %s150
      %p157 = scmp.eq.s32.totalorder %s30, 1
      %p158 = por %p156, %p157
      %p159 = scmp.ne.s32.totalorder %s150, %s151
      %p160 = scmp.eq.s32.totalorder %s30, 0
      %p161 = por %p159, %p160
      %p162 = scmp.ne.s32.totalorder %s150, %s151
      %p163 = scmp.eq.s32.totalorder %s31, 1
      %p164 = por %p162, %p163
      %p166 = scmp.ne.s32.totalorder %s151, %s165
      %p167 = scmp.eq.s32.totalorder %s31, 0
      %p168 = por %p166, %p167
      %s170 = sadd.s32 %s169, 1
      %p173 = scmp.eq.s32.totalorder %s25, 1
      %p174 = scmp.ne.s32.totalorder %s169, %s171
      %p175 = scmp.eq.s32.totalorder %s25, 0
      %p176 = por %p174, %p175
      %p177 = scmp.ne.s32.totalorder %s169, %s171
      %p178 = scmp.eq.s32.totalorder %s30, 1
      %p179 = por %p177, %p178
      %p180 = scmp.ne.s32.totalorder %s171, %s172
      %p181 = scmp.eq.s32.totalorder %s30, 0
      %p182 = por %p180, %p181
      %p183 = scmp.ne.s32.totalorder %s171, %s172
      %p184 = scmp.eq.s32.totalorder %s31, 1
      %p185 = por %p183, %p184
      %p187 = scmp.ne.s32.totalorder %s172, %s186
      %p188 = scmp.eq.s32.totalorder %s31, 0
      %p189 = por %p187, %p188
      %s191 = sadd.s32 %s190, 1
      %p194 = scmp.eq.s32.totalorder %s25, 1
      %p195 = scmp.ne.s32.totalorder %s190, %s192
      %p196 = scmp.eq.s32.totalorder %s25, 0
      %p197 = por %p195, %p196
      %p198 = scmp.ne.s32.totalorder %s190, %s192
      %p199 = scmp.eq.s32.totalorder %s30, 1
      %p200 = por %p198, %p199
      %p201 = scmp.ne.s32.totalorder %s192, %s193
      %p202 = scmp.eq.s32.totalorder %s30, 0
      %p203 = por %p201, %p202
      %p204 = scmp.ne.s32.totalorder %s192, %s193
      %p205 = scmp.eq.s32.totalorder %s31, 1
      %p206 = por %p204, %p205
      %p208 = scmp.ne.s32.totalorder %s193, %s207
      %p209 = scmp.eq.s32.totalorder %s31, 0
      %p210 = por %p208, %p209
      %s211 = ssub.s32 %s25, %s32
      %p212 = scmp.eq.s32.totalorder %s211, 0
      %s214 = sadd.s32 %s213, 1
      %s215 = scalar_select %p212, %s213, %s214
      %p218 = pneg %p212
      %p219 = scmp.eq.s32.totalorder %s25, 1
      %p220 = por %p218, %p219
      %p221 = scmp.ne.s32.totalorder %s213, %s216
      %p222 = scmp.eq.s32.totalorder %s25, 0
      %p223 = por %p221, %p222
      %p224 = scmp.ne.s32.totalorder %s213, %s216
      %p225 = scmp.eq.s32.totalorder %s30, 1
      %p226 = por %p224, %p225
      %p227 = scmp.ne.s32.totalorder %s216, %s217
      %p228 = scmp.eq.s32.totalorder %s30, 0
      %p229 = por %p227, %p228
      %p230 = scmp.ne.s32.totalorder %s216, %s217
      %p231 = scmp.eq.s32.totalorder %s31, 1
      %p232 = por %p230, %p231
      %p234 = scmp.ne.s32.totalorder %s217, %s233
      %p235 = scmp.eq.s32.totalorder %s31, 0
      %p236 = por %p234, %p235
      %p237 = scmp.le.s32.totalorder 1, %s25
      %p238 = scmp.lt.s32.totalorder %s25, 3
      %p239 = pnand %p237, %p238
      %p240 = pneg %p239
      // Predicated region
      $region9: #{tpu_custom_call.1} parent=5 // pred_check
        _
      $region10: #{tpu_custom_call.1} parent=5 // pred_check_branch
        %242 = sbr.rel (%p239) target = $region12
      $region11: #{tpu_custom_call.1} parent=5 // pred_region
        %s243 = ssub.s32 %s25, 1
        // Predicated region
        $region13: #{tpu_custom_call.1} parent=11 // pred_check
          %p244 = pneg %p98
        $region14: #{tpu_custom_call.1} parent=11 // pred_check_branch
          %246 = sbr.rel (%p244) target = $region16
        $region15: #{tpu_custom_call.1} parent=11 // pred_region
          %248 = vsyncadd [#allocation6], 0
          %s249 = sshll.u32 %s2, 4
          %s250 = int_to_ptr.hbm [resolvable:$true] %s249
          %s251 = sshll.u32 [#allocation7], 4
          %s252 = int_to_ptr.vmem [resolvable:$true] %s251
          %257 = dma.hbm_to_vmem [thread:$0]  %s250, 4096, %s252, [#allocation6], 256, 256, 16
        $region16: #{tpu_custom_call.1} parent=11 // pred_fallthru
          _
        // Predicated region
        $region17: #{tpu_custom_call.1} parent=11 // pred_check
          %p258 = pneg %p119
        $region18: #{tpu_custom_call.1} parent=11 // pred_check_branch
          %260 = sbr.rel (%p258) target = $region20
        $region19: #{tpu_custom_call.1} parent=11 // pred_region
          _
        $region20: #{tpu_custom_call.1} parent=11 // pred_fallthru
          _
        // Predicated region
        $region21: #{tpu_custom_call.1} parent=11 // pred_check
          %p261 = pneg %p140
        $region22: #{tpu_custom_call.1} parent=11 // pred_check_branch
          %263 = sbr.rel (%p261) target = $region24
        $region23: #{tpu_custom_call.1} parent=11 // pred_region
          %265 = vsyncadd [#allocation9], 0
          %s266 = sshll.u32 %s4, 4
          %s267 = int_to_ptr.hbm [resolvable:$true] %s266
          %s268 = sshll.u32 [#allocation8], 4
          %s269 = int_to_ptr.vmem [resolvable:$true] %s268
          %274 = dma.hbm_to_vmem [thread:$0]  %s267, 4096, %s269, [#allocation9], 128, 128, 8
        $region24: #{tpu_custom_call.1} parent=11 // pred_fallthru
          _
        // Predicated region
        $region25: #{tpu_custom_call.1} parent=11 // pred_check
          %p275 = pneg %p161
        $region26: #{tpu_custom_call.1} parent=11 // pred_check_branch
          %277 = sbr.rel (%p275) target = $region28
        $region27: #{tpu_custom_call.1} parent=11 // pred_region
          %279 = vsyncadd [#allocation9], 0
          %s280 = sshll.u32 %s5, 4
          %s281 = int_to_ptr.hbm [resolvable:$true] %s280
          %s282 = sshll.u32 [#allocation10], 4
          %s283 = int_to_ptr.vmem [resolvable:$true] %s282
          %288 = dma.hbm_to_vmem [thread:$0]  %s281, 4096, %s283, [#allocation9], 128, 128, 8
        $region28: #{tpu_custom_call.1} parent=11 // pred_fallthru
          _
        // Predicated region
        $region29: #{tpu_custom_call.1} parent=11 // pred_check
          %p289 = pneg %p182
        $region30: #{tpu_custom_call.1} parent=11 // pred_check_branch
          %291 = sbr.rel (%p289) target = $region32
        $region31: #{tpu_custom_call.1} parent=11 // pred_region
          %293 = vsyncadd [#allocation12], 0
          %s294 = sshll.u32 %s6, 4
          %s295 = int_to_ptr.hbm [resolvable:$true] %s294
          %s296 = sshll.u32 [#allocation11], 4
          %s297 = int_to_ptr.vmem [resolvable:$true] %s296
          %302 = dma.hbm_to_vmem [thread:$0]  %s295, 4096, %s297, [#allocation12], 128, 128, 8
        $region32: #{tpu_custom_call.1} parent=11 // pred_fallthru
          _
        // Predicated region
        $region33: #{tpu_custom_call.1} parent=11 // pred_check
          %p303 = pneg %p203
        $region34: #{tpu_custom_call.1} parent=11 // pred_check_branch
          %305 = sbr.rel (%p303) target = $region36
        $region35: #{tpu_custom_call.1} parent=11 // pred_region
          _
        $region36: #{tpu_custom_call.1} parent=11 // pred_fallthru
          _
      $region12: #{tpu_custom_call.1} parent=5 // pred_fallthru
        _
      %p306 = scmp.lt.s32.totalorder %s25, 2
      // Predicated region
      $region37: #{tpu_custom_call.1} parent=5 // pred_check
        %p307 = pneg %p306
      $region38: #{tpu_custom_call.1} parent=5 // pred_check_branch
        %309 = sbr.rel (%p307) target = $region40
      $region39: #{tpu_custom_call.1} parent=5 // pred_region
        // Predicated region
        $region41: #{tpu_custom_call.1} parent=39 // pred_check
          %p310 = pneg %p45
        $region42: #{tpu_custom_call.1} parent=39 // pred_check_branch
          %312 = sbr.rel (%p310) target = $region44
        $region43: #{tpu_custom_call.1} parent=39 // pred_region
          %s313 = sand.u32 %s35, 1
          %s314 = scalar_lea.sflag [#allocation3], %s313
          %s315 = sand.u32 %s35, 1
          %s316 = smul.addr %s315, 8
          %s317 = scalar_lea.vmem [#allocation2], %s316
          %319 = vsyncadd %s314, 0
          %s320 = smul.addr %s25, 8
          %s321 = scalar_lea.hbm %s0, %s320
          %s323 = sshll.u32 %s321, 4
          %s324 = int_to_ptr.hbm [resolvable:$true] %s323
          %s325 = sshll.u32 %s317, 4
          %s326 = int_to_ptr.vmem [resolvable:$true] %s325
          %328 = dma.hbm_to_vmem [thread:$0]  %s324, 128, %s326, %s314
        $region44: #{tpu_custom_call.1} parent=39 // pred_fallthru
          _
        // Predicated region
        $region45: #{tpu_custom_call.1} parent=39 // pred_check
          %p329 = pneg %p71
        $region46: #{tpu_custom_call.1} parent=39 // pred_check_branch
          %331 = sbr.rel (%p329) target = $region48
        $region47: #{tpu_custom_call.1} parent=39 // pred_region
          %s332 = sand.u32 %s25, 1
          %s333 = scalar_lea.sflag [#allocation6], %s332
          %s334 = sand.u32 %s61, 1
          %s335 = smul.addr %s334, 16
          %s336 = scalar_lea.vmem [#allocation5], %s335
          %338 = vsyncadd %s333, 0
          %s339 = smul.addr %s25, 2
          %s340 = smul.addr %s339, 8
          %s341 = scalar_lea.hbm %s1, %s340
          %s343 = sshll.u32 %s341, 4
          %s344 = int_to_ptr.hbm [resolvable:$true] %s343
          %s345 = sshll.u32 %s336, 4
          %s346 = int_to_ptr.vmem [resolvable:$true] %s345
          %348 = dma.hbm_to_vmem [thread:$0]  %s344, 256, %s346, %s333
        $region48: #{tpu_custom_call.1} parent=39 // pred_fallthru
          _
      $region40: #{tpu_custom_call.1} parent=5 // pred_fallthru
        _
      %p349 = scmp.le.s32.totalorder 1, %s25
      %p350 = scmp.lt.s32.totalorder %s25, 3
      %p351 = pnand %p349, %p350
      %p352 = pneg %p351
      // Predicated region
      $region49: #{tpu_custom_call.1} parent=5 // pred_check
        _
      $region50: #{tpu_custom_call.1} parent=5 // pred_check_branch
        %354 = sbr.rel (%p351) target = $region52
      $region51: #{tpu_custom_call.1} parent=5 // pred_region
        %s355 = ssub.s32 %s25, 1
        %s356 = sand.u32 %s38, 1
        %s357 = scalar_lea.sflag [#allocation3], %s356
        %s358 = sand.u32 %s38, 1
        %s359 = smul.addr %s358, 8
        %s360 = scalar_lea.vmem [#allocation2], %s359
        // Predicated region
        $region53: #{tpu_custom_call.1} parent=51 // pred_check
          %p361 = pneg %p51
        $region54: #{tpu_custom_call.1} parent=51 // pred_check_branch
          %363 = sbr.rel (%p361) target = $region56
        $region55: #{tpu_custom_call.1} parent=51 // pred_region
          %365 = dma.done %s357, 128
        $region56: #{tpu_custom_call.1} parent=51 // pred_fallthru
          _
        %s366 = sand.u32 %s30, 1
        %s367 = scalar_lea.sflag [#allocation6], %s366
        %s368 = sand.u32 %s64, 1
        %s369 = smul.addr %s368, 16
        %s370 = scalar_lea.vmem [#allocation5], %s369
        // Predicated region
        $region57: #{tpu_custom_call.1} parent=51 // pred_check
          %p371 = pneg %p77
        $region58: #{tpu_custom_call.1} parent=51 // pred_check_branch
          %373 = sbr.rel (%p371) target = $region60
        $region59: #{tpu_custom_call.1} parent=51 // pred_region
          %375 = dma.done %s367, 256
        $region60: #{tpu_custom_call.1} parent=51 // pred_fallthru
          _
        // Predicated region
        $region61: #{tpu_custom_call.1} parent=51 // pred_check
          %p376 = pneg %p98
        $region62: #{tpu_custom_call.1} parent=51 // pred_check_branch
          %378 = sbr.rel (%p376) target = $region64
        $region63: #{tpu_custom_call.1} parent=51 // pred_region
          %380 = dma.done [#allocation6], 4096
        $region64: #{tpu_custom_call.1} parent=51 // pred_fallthru
          _
        // Predicated region
        $region65: #{tpu_custom_call.1} parent=51 // pred_check
          %p381 = pneg %p140
        $region66: #{tpu_custom_call.1} parent=51 // pred_check_branch
          %383 = sbr.rel (%p381) target = $region68
        $region67: #{tpu_custom_call.1} parent=51 // pred_region
          %385 = dma.done [#allocation9], 4096
        $region68: #{tpu_custom_call.1} parent=51 // pred_fallthru
          _
        // Predicated region
        $region69: #{tpu_custom_call.1} parent=51 // pred_check
          %p386 = pneg %p161
        $region70: #{tpu_custom_call.1} parent=51 // pred_check_branch
          %388 = sbr.rel (%p386) target = $region72
        $region71: #{tpu_custom_call.1} parent=51 // pred_region
          %390 = dma.done [#allocation9], 4096
        $region72: #{tpu_custom_call.1} parent=51 // pred_fallthru
          _
        // Predicated region
        $region73: #{tpu_custom_call.1} parent=51 // pred_check
          %p391 = pneg %p182
        $region74: #{tpu_custom_call.1} parent=51 // pred_check_branch
          %393 = sbr.rel (%p391) target = $region76
        $region75: #{tpu_custom_call.1} parent=51 // pred_region
          %395 = dma.done [#allocation12], 4096
        $region76: #{tpu_custom_call.1} parent=51 // pred_fallthru
          _
        %s396 = sand.u32 %s38, 1
        %s397 = scalar_lea.sflag [#allocation3], %s396
        %s398 = sand.u32 %s38, 1
        %s399 = smul.addr %s398, 8
        %s400 = scalar_lea.vmem [#allocation2], %s399
        %p401 = pneg %p51
        %p402 = pneg %p48
        %s403 = sand.u32 %s30, 1
        %s404 = scalar_lea.sflag [#allocation6], %s403
        %s405 = sand.u32 %s64, 1
        %s406 = smul.addr %s405, 16
        %s407 = scalar_lea.vmem [#allocation5], %s406
        %p408 = pneg %p77
        %p409 = pneg %p74
        %p410 = pneg %p98
        %p411 = pneg %p95
        %p412 = pneg %p119
        %p413 = pneg %p116
        %p414 = pneg %p140
        %p415 = pneg %p137
        %p416 = pneg %p161
        %p417 = pneg %p158
        %p418 = pneg %p182
        %p419 = pneg %p179
        %p420 = pneg %p203
        %p421 = pneg %p200
        %p422 = pneg %p229
        %p423 = pneg %p226
        %s424 = sand.u32 %s216, 1
        %s425 = scalar_lea.sflag [#allocation4], %s424
        %s426 = sand.u32 %s216, 1
        %s427 = scalar_lea.vmem [#allocation13], %s426
        %v428 = vld [vmem:[%s360] sm:$0xff]
        %v429 = vld [vmem:[#allocation7] sm:$0xff]
        %v430 = vld [vmem:[#allocation7 + $0x8] sm:$0xff]
        %v431 = vld [vmem:[#allocation7 + $0x10] sm:$0xff]
        %v432 = vld [vmem:[#allocation7 + $0x18] sm:$0xff]
        %v433 = vld [vmem:[#allocation7 + $0x20] sm:$0xff]
        %v434 = vld [vmem:[#allocation7 + $0x28] sm:$0xff]
        %v435 = vld [vmem:[#allocation7 + $0x30] sm:$0xff]
        %v436 = vld [vmem:[#allocation7 + $0x38] sm:$0xff]
        %v437 = vld [vmem:[#allocation7 + $0x40] sm:$0xff]
        %v438 = vld [vmem:[#allocation7 + $0x48] sm:$0xff]
        %v439 = vld [vmem:[#allocation7 + $0x50] sm:$0xff]
        %v440 = vld [vmem:[#allocation7 + $0x58] sm:$0xff]
        %v441 = vld [vmem:[#allocation7 + $0x60] sm:$0xff]
        %v442 = vld [vmem:[#allocation7 + $0x68] sm:$0xff]
        %v443 = vld [vmem:[#allocation7 + $0x70] sm:$0xff]
        %v444 = vld [vmem:[#allocation7 + $0x78] sm:$0xff]
        %v445 = vld [vmem:[#allocation7 + $0x80] sm:$0xff]
        %v446 = vld [vmem:[#allocation7 + $0x88] sm:$0xff]
        %v447 = vld [vmem:[#allocation7 + $0x90] sm:$0xff]
        %v448 = vld [vmem:[#allocation7 + $0x98] sm:$0xff]
        %v449 = vld [vmem:[#allocation7 + $0xa0] sm:$0xff]
        %v450 = vld [vmem:[#allocation7 + $0xa8] sm:$0xff]
        %v451 = vld [vmem:[#allocation7 + $0xb0] sm:$0xff]
        %v452 = vld [vmem:[#allocation7 + $0xb8] sm:$0xff]
        %v453 = vld [vmem:[#allocation7 + $0xc0] sm:$0xff]
        %v454 = vld [vmem:[#allocation7 + $0xc8] sm:$0xff]
        %v455 = vld [vmem:[#allocation7 + $0xd0] sm:$0xff]
        %v456 = vld [vmem:[#allocation7 + $0xd8] sm:$0xff]
        %v457 = vld [vmem:[#allocation7 + $0xe0] sm:$0xff]
        %v458 = vld [vmem:[#allocation7 + $0xe8] sm:$0xff]
        %v459 = vld [vmem:[#allocation7 + $0xf0] sm:$0xff]
        %v460 = vld [vmem:[#allocation7 + $0xf8] sm:$0xff]
        %v461 = vld [vmem:[%s3] sm:$0x3]
        %v463 = vperm.slane %v461, 0
        %v464 = vperm.slane %v461, 1
        %467 = vmatpush.msra.mxu0 %v459
        %468 = vmatpush.msra.mxu0 %v457
        %469 = vmatpush.msra.mxu0 %v455
        %470 = vmatpush.msra.mxu0 %v453
        %471 = vmatpush.msra.mxu0 %v451
        %472 = vmatpush.msra.mxu0 %v449
        %473 = vmatpush.msra.mxu0 %v447
        %474 = vmatpush.msra.mxu0 %v445
        %475 = vmatpush.msra.mxu0 %v443
        %476 = vmatpush.msra.mxu0 %v441
        %477 = vmatpush.msra.mxu0 %v439
        %478 = vmatpush.msra.mxu0 %v437
        %479 = vmatpush.msra.mxu0 %v435
        %480 = vmatpush.msra.mxu0 %v433
        %481 = vmatpush.msra.mxu0 %v431
        %482 = vmatpush.msra.mxu0 %v429
        %483 = vmatmul.f32.gmra.mxu0 %v428
        %v484 = vpop.f32.mrf.mxu0
        %v485 = vadd.f32 %v463, %v484
        %486 = vdwg.mxu0
        %487 = vmatpush.msra.mxu0 %v460
        %488 = vmatpush.msra.mxu0 %v458
        %489 = vmatpush.msra.mxu0 %v456
        %490 = vmatpush.msra.mxu0 %v454
        %491 = vmatpush.msra.mxu0 %v452
        %492 = vmatpush.msra.mxu0 %v450
        %493 = vmatpush.msra.mxu0 %v448
        %494 = vmatpush.msra.mxu0 %v446
        %495 = vmatpush.msra.mxu0 %v444
        %496 = vmatpush.msra.mxu0 %v442
        %497 = vmatpush.msra.mxu0 %v440
        %498 = vmatpush.msra.mxu0 %v438
        %499 = vmatpush.msra.mxu0 %v436
        %500 = vmatpush.msra.mxu0 %v434
        %501 = vmatpush.msra.mxu0 %v432
        %502 = vmatpush.msra.mxu0 %v430
        %503 = vmatmul.f32.gmra.mxu0 %v428
        %v504 = vpop.f32.mrf.mxu0
        %v505 = vadd.f32 %v464, %v504
        %506 = vdwg.mxu0
        %v507 = vld [vmem:[%s370] sm:$0xff]
        %v508 = vld [vmem:[%s370 + $0x8] sm:$0xff]
        %v509 = vadd.f32 %v485, %v507
        %v510 = vadd.f32 %v505, %v508
        %v511 = vld [vmem:[#allocation8] sm:$0xff]
        %v512 = vld [vmem:[#allocation8 + $0x8] sm:$0xff]
        %v513 = vld [vmem:[#allocation8 + $0x10] sm:$0xff]
        %v514 = vld [vmem:[#allocation8 + $0x18] sm:$0xff]
        %v515 = vld [vmem:[#allocation8 + $0x20] sm:$0xff]
        %v516 = vld [vmem:[#allocation8 + $0x28] sm:$0xff]
        %v517 = vld [vmem:[#allocation8 + $0x30] sm:$0xff]
        %v518 = vld [vmem:[#allocation8 + $0x38] sm:$0xff]
        %v519 = vld [vmem:[#allocation8 + $0x40] sm:$0xff]
        %v520 = vld [vmem:[#allocation8 + $0x48] sm:$0xff]
        %v521 = vld [vmem:[#allocation8 + $0x50] sm:$0xff]
        %v522 = vld [vmem:[#allocation8 + $0x58] sm:$0xff]
        %v523 = vld [vmem:[#allocation8 + $0x60] sm:$0xff]
        %v524 = vld [vmem:[#allocation8 + $0x68] sm:$0xff]
        %v525 = vld [vmem:[#allocation8 + $0x70] sm:$0xff]
        %v526 = vld [vmem:[#allocation8 + $0x78] sm:$0xff]
        %v527 = vld [vmem:[#allocation8 + $0x80] sm:$0xff]
        %v528 = vld [vmem:[#allocation8 + $0x88] sm:$0xff]
        %v529 = vld [vmem:[#allocation8 + $0x90] sm:$0xff]
        %v530 = vld [vmem:[#allocation8 + $0x98] sm:$0xff]
        %v531 = vld [vmem:[#allocation8 + $0xa0] sm:$0xff]
        %v532 = vld [vmem:[#allocation8 + $0xa8] sm:$0xff]
        %v533 = vld [vmem:[#allocation8 + $0xb0] sm:$0xff]
        %v534 = vld [vmem:[#allocation8 + $0xb8] sm:$0xff]
        %v535 = vld [vmem:[#allocation8 + $0xc0] sm:$0xff]
        %v536 = vld [vmem:[#allocation8 + $0xc8] sm:$0xff]
        %v537 = vld [vmem:[#allocation8 + $0xd0] sm:$0xff]
        %v538 = vld [vmem:[#allocation8 + $0xd8] sm:$0xff]
        %v539 = vld [vmem:[#allocation8 + $0xe0] sm:$0xff]
        %v540 = vld [vmem:[#allocation8 + $0xe8] sm:$0xff]
        %v541 = vld [vmem:[#allocation8 + $0xf0] sm:$0xff]
        %v542 = vld [vmem:[#allocation8 + $0xf8] sm:$0xff]
        %543 = vmatpush.msra.mxu0 %v526
        %544 = vmatpush.msra.mxu0 %v525
        %545 = vmatpush.msra.mxu0 %v524
        %546 = vmatpush.msra.mxu0 %v523
        %547 = vmatpush.msra.mxu0 %v522
        %548 = vmatpush.msra.mxu0 %v521
        %549 = vmatpush.msra.mxu0 %v520
        %550 = vmatpush.msra.mxu0 %v519
        %551 = vmatpush.msra.mxu0 %v518
        %552 = vmatpush.msra.mxu0 %v517
        %553 = vmatpush.msra.mxu0 %v516
        %554 = vmatpush.msra.mxu0 %v515
        %555 = vmatpush.msra.mxu0 %v514
        %556 = vmatpush.msra.mxu0 %v513
        %557 = vmatpush.msra.mxu0 %v512
        %558 = vmatpush.msra.mxu0 %v511
        %559 = vmatmul.f32.gmra.mxu0 %v509
        %v560 = vpop.f32.mrf.mxu0
        %v561 = vadd.f32 0.0, %v560
        %562 = vdwg.mxu0
        %563 = vmatpush.msra.mxu0 %v542
        %564 = vmatpush.msra.mxu0 %v541
        %565 = vmatpush.msra.mxu0 %v540
        %566 = vmatpush.msra.mxu0 %v539
        %567 = vmatpush.msra.mxu0 %v538
        %568 = vmatpush.msra.mxu0 %v537
        %569 = vmatpush.msra.mxu0 %v536
        %570 = vmatpush.msra.mxu0 %v535
        %571 = vmatpush.msra.mxu0 %v534
        %572 = vmatpush.msra.mxu0 %v533
        %573 = vmatpush.msra.mxu0 %v532
        %574 = vmatpush.msra.mxu0 %v531
        %575 = vmatpush.msra.mxu0 %v530
        %576 = vmatpush.msra.mxu0 %v529
        %577 = vmatpush.msra.mxu0 %v528
        %578 = vmatpush.msra.mxu0 %v527
        %579 = vmatmul.f32.gmra.mxu0 %v510
        %v580 = vpop.f32.mrf.mxu0
        %v581 = vadd.f32 %v561, %v580
        %582 = vdwg.mxu0
        %v583 = vld [vmem:[#allocation10] sm:$0xff]
        %v584 = vld [vmem:[#allocation10 + $0x8] sm:$0xff]
        %v585 = vld [vmem:[#allocation10 + $0x10] sm:$0xff]
        %v586 = vld [vmem:[#allocation10 + $0x18] sm:$0xff]
        %v587 = vld [vmem:[#allocation10 + $0x20] sm:$0xff]
        %v588 = vld [vmem:[#allocation10 + $0x28] sm:$0xff]
        %v589 = vld [vmem:[#allocation10 + $0x30] sm:$0xff]
        %v590 = vld [vmem:[#allocation10 + $0x38] sm:$0xff]
        %v591 = vld [vmem:[#allocation10 + $0x40] sm:$0xff]
        %v592 = vld [vmem:[#allocation10 + $0x48] sm:$0xff]
        %v593 = vld [vmem:[#allocation10 + $0x50] sm:$0xff]
        %v594 = vld [vmem:[#allocation10 + $0x58] sm:$0xff]
        %v595 = vld [vmem:[#allocation10 + $0x60] sm:$0xff]
        %v596 = vld [vmem:[#allocation10 + $0x68] sm:$0xff]
        %v597 = vld [vmem:[#allocation10 + $0x70] sm:$0xff]
        %v598 = vld [vmem:[#allocation10 + $0x78] sm:$0xff]
        %v599 = vld [vmem:[#allocation10 + $0x80] sm:$0xff]
        %v600 = vld [vmem:[#allocation10 + $0x88] sm:$0xff]
        %v601 = vld [vmem:[#allocation10 + $0x90] sm:$0xff]
        %v602 = vld [vmem:[#allocation10 + $0x98] sm:$0xff]
        %v603 = vld [vmem:[#allocation10 + $0xa0] sm:$0xff]
        %v604 = vld [vmem:[#allocation10 + $0xa8] sm:$0xff]
        %v605 = vld [vmem:[#allocation10 + $0xb0] sm:$0xff]
        %v606 = vld [vmem:[#allocation10 + $0xb8] sm:$0xff]
        %v607 = vld [vmem:[#allocation10 + $0xc0] sm:$0xff]
        %v608 = vld [vmem:[#allocation10 + $0xc8] sm:$0xff]
        %v609 = vld [vmem:[#allocation10 + $0xd0] sm:$0xff]
        %v610 = vld [vmem:[#allocation10 + $0xd8] sm:$0xff]
        %v611 = vld [vmem:[#allocation10 + $0xe0] sm:$0xff]
        %v612 = vld [vmem:[#allocation10 + $0xe8] sm:$0xff]
        %v613 = vld [vmem:[#allocation10 + $0xf0] sm:$0xff]
        %v614 = vld [vmem:[#allocation10 + $0xf8] sm:$0xff]
        %615 = vmatpush.msra.mxu0 %v598
        %616 = vmatpush.msra.mxu0 %v597
        %617 = vmatpush.msra.mxu0 %v596
        %618 = vmatpush.msra.mxu0 %v595
        %619 = vmatpush.msra.mxu0 %v594
        %620 = vmatpush.msra.mxu0 %v593
        %621 = vmatpush.msra.mxu0 %v592
        %622 = vmatpush.msra.mxu0 %v591
        %623 = vmatpush.msra.mxu0 %v590
        %624 = vmatpush.msra.mxu0 %v589
        %625 = vmatpush.msra.mxu0 %v588
        %626 = vmatpush.msra.mxu0 %v587
        %627 = vmatpush.msra.mxu0 %v586
        %628 = vmatpush.msra.mxu0 %v585
        %629 = vmatpush.msra.mxu0 %v584
        %630 = vmatpush.msra.mxu0 %v583
        %631 = vmatmul.f32.gmra.mxu0 %v509
        %v632 = vpop.f32.mrf.mxu0
        %v633 = vadd.f32 0.0, %v632
        %634 = vdwg.mxu0
        %635 = vmatpush.msra.mxu0 %v614
        %636 = vmatpush.msra.mxu0 %v613
        %637 = vmatpush.msra.mxu0 %v612
        %638 = vmatpush.msra.mxu0 %v611
        %639 = vmatpush.msra.mxu0 %v610
        %640 = vmatpush.msra.mxu0 %v609
        %641 = vmatpush.msra.mxu0 %v608
        %642 = vmatpush.msra.mxu0 %v607
        %643 = vmatpush.msra.mxu0 %v606
        %644 = vmatpush.msra.mxu0 %v605
        %645 = vmatpush.msra.mxu0 %v604
        %646 = vmatpush.msra.mxu0 %v603
        %647 = vmatpush.msra.mxu0 %v602
        %648 = vmatpush.msra.mxu0 %v601
        %649 = vmatpush.msra.mxu0 %v600
        %650 = vmatpush.msra.mxu0 %v599
        %651 = vmatmul.f32.gmra.mxu0 %v510
        %v652 = vpop.f32.mrf.mxu0
        %v653 = vadd.f32 %v633, %v652
        %654 = vdwg.mxu0
        %vm655 = vcmask 64512
        %v657 = vsel %vm655, %v581, 0
        %v660 = vsel %vm655, %v653, 0
        %662 = vmatpush.xpose.msra.mxu0 0.0
        %663 = vmatpush.xpose.msra.mxu0 0.0
        %664 = vmatpush.xpose.msra.mxu0 0.0
        %665 = vmatpush.xpose.msra.mxu0 0.0
        %666 = vmatpush.xpose.msra.mxu0 0.0
        %667 = vmatpush.xpose.msra.mxu0 0.0
        %668 = vmatpush.xpose.msra.mxu0 0.0
        %669 = vmatpush.xpose.msra.mxu0 0.0
        %670 = vmatpush.xpose.msra.mxu0 0.0
        %671 = vmatpush.xpose.msra.mxu0 0.0
        %672 = vmatpush.xpose.msra.mxu0 0.0
        %673 = vmatpush.xpose.msra.mxu0 0.0
        %674 = vmatpush.xpose.msra.mxu0 0.0
        %675 = vmatpush.xpose.msra.mxu0 0.0
        %676 = vmatpush.xpose.msra.mxu0 0.0
        %677 = vmatpush.xpose.msra.mxu0 %v660
        %678 = vmatmul.f32.gmra.mxu0 %v657
        %v679 = vpop.f32.mrf.mxu0
        %v680 = vadd.f32 0.0, %v679
        %681 = vdwg.mxu0
        %v682 = vsel %vm655, %v680, -inf
        %683 = vmax.xlane.f32.xlu0 %v682
        %v684 = vpop.xlane.xlu0 %683
        %v685 = vsub.f32 %v680, %v684
        %v686 = vmul.f32 %v685, 1.442695
        %v687 = vpow.pop %v686
        %v688 = vsel %vm655, %v687, 0.0
        %689 = vadd.xlane.f32.xlu0 %v688
        %v690 = vpop.xlane.xlu0 %689
        %v691 = vrcp.pop %v690
        %v692 = vmul.f32 %v687, %v691
        %v694 = vsel %vm655, %v692, 0
        %696 = vmatpush.msra.mxu0 0.0
        %697 = vmatpush.msra.mxu0 0.0
        %698 = vmatpush.msra.mxu0 0.0
        %699 = vmatpush.msra.mxu0 0.0
        %700 = vmatpush.msra.mxu0 0.0
        %701 = vmatpush.msra.mxu0 0.0
        %702 = vmatpush.msra.mxu0 0.0
        %703 = vmatpush.msra.mxu0 0.0
        %704 = vmatpush.msra.mxu0 0.0
        %705 = vmatpush.msra.mxu0 0.0
        %706 = vmatpush.msra.mxu0 0.0
        %707 = vmatpush.msra.mxu0 0.0
        %708 = vmatpush.msra.mxu0 0.0
        %709 = vmatpush.msra.mxu0 0.0
        %710 = vmatpush.msra.mxu0 0.0
        %711 = vmatpush.msra.mxu0 %v509
        %712 = vmatmul.f32.gmra.mxu0 %v694
        %v713 = vpop.f32.mrf.mxu0
        %v714 = vadd.f32 0.0, %v713
        %715 = vdwg.mxu0
        %v716 = vld [vmem:[#allocation11] sm:$0xff]
        %v717 = vld [vmem:[#allocation11 + $0x8] sm:$0xff]
        %718 = vrot.lane.b32.xlu0 %v581, 120
        %v719 = vpop.permute.xlu0 %718
        %720 = vrot.lane.b32.xlu0 %v653, 120
        %v721 = vpop.permute.xlu0 %720
        %v722 = vsel %vm655, %v719, 0
        %v724 = vsel %vm655, %v721, 0
        %726 = vmatpush.xpose.msra.mxu0 0.0
        %727 = vmatpush.xpose.msra.mxu0 0.0
        %728 = vmatpush.xpose.msra.mxu0 0.0
        %729 = vmatpush.xpose.msra.mxu0 0.0
        %730 = vmatpush.xpose.msra.mxu0 0.0
        %731 = vmatpush.xpose.msra.mxu0 0.0
        %732 = vmatpush.xpose.msra.mxu0 0.0
        %733 = vmatpush.xpose.msra.mxu0 0.0
        %734 = vmatpush.xpose.msra.mxu0 0.0
        %735 = vmatpush.xpose.msra.mxu0 0.0
        %736 = vmatpush.xpose.msra.mxu0 0.0
        %737 = vmatpush.xpose.msra.mxu0 0.0
        %738 = vmatpush.xpose.msra.mxu0 0.0
        %739 = vmatpush.xpose.msra.mxu0 0.0
        %740 = vmatpush.xpose.msra.mxu0 0.0
        %741 = vmatpush.xpose.msra.mxu0 %v724
        %742 = vmatmul.f32.gmra.mxu0 %v722
        %v743 = vpop.f32.mrf.mxu0
        %v744 = vadd.f32 0.0, %v743
        %745 = vdwg.mxu0
        %v746 = vsel %vm655, %v744, -inf
        %747 = vmax.xlane.f32.xlu0 %v746
        %v748 = vpop.xlane.xlu0 %747
        %v749 = vsub.f32 %v744, %v748
        %v750 = vmul.f32 %v749, 1.442695
        %v751 = vpow.pop %v750
        %v752 = vsel %vm655, %v751, 0.0
        %753 = vadd.xlane.f32.xlu0 %v752
        %v754 = vpop.xlane.xlu0 %753
        %v755 = vrcp.pop %v754
        %v756 = vmul.f32 %v751, %v755
        %758 = vrot.lane.b32.xlu0 %v509, 112
        %v759 = vpop.permute.xlu0 %758
        %v762 = vsel %vm655, %v756, 0
        %764 = vmatpush.msra.mxu0 0.0
        %765 = vmatpush.msra.mxu0 0.0
        %766 = vmatpush.msra.mxu0 0.0
        %767 = vmatpush.msra.mxu0 0.0
        %768 = vmatpush.msra.mxu0 0.0
        %769 = vmatpush.msra.mxu0 0.0
        %770 = vmatpush.msra.mxu0 0.0
        %771 = vmatpush.msra.mxu0 0.0
        %772 = vmatpush.msra.mxu0 0.0
        %773 = vmatpush.msra.mxu0 0.0
        %774 = vmatpush.msra.mxu0 0.0
        %775 = vmatpush.msra.mxu0 0.0
        %776 = vmatpush.msra.mxu0 0.0
        %777 = vmatpush.msra.mxu0 0.0
        %778 = vmatpush.msra.mxu0 0.0
        %779 = vmatpush.msra.mxu0 %v759
        %780 = vmatmul.f32.gmra.mxu0 %v762
        %v781 = vpop.f32.mrf.mxu0
        %v782 = vadd.f32 0.0, %v781
        %783 = vdwg.mxu0
        %v784 = vld [vmem:[#allocation11 + $0x10] sm:$0xff]
        %v785 = vld [vmem:[#allocation11 + $0x18] sm:$0xff]
        %vm786 = vcmask 130048
        %v788 = vsel %vm786, %v782, 0
        %790 = vmatpush.msra.mxu0 0.0
        %791 = vmatpush.msra.mxu0 0.0
        %792 = vmatpush.msra.mxu0 0.0
        %793 = vmatpush.msra.mxu0 0.0
        %794 = vmatpush.msra.mxu0 0.0
        %795 = vmatpush.msra.mxu0 0.0
        %796 = vmatpush.msra.mxu0 0.0
        %797 = vmatpush.msra.mxu0 0.0
        %798 = vmatpush.msra.mxu0 0.0
        %799 = vmatpush.msra.mxu0 0.0
        %800 = vmatpush.msra.mxu0 0.0
        %801 = vmatpush.msra.mxu0 0.0
        %802 = vmatpush.msra.mxu0 0.0
        %803 = vmatpush.msra.mxu0 0.0
        %804 = vmatpush.msra.mxu0 %v785
        %805 = vmatpush.msra.mxu0 %v784
        %806 = vmatmul.f32.gmra.mxu0 %v788
        %v807 = vpop.f32.mrf.mxu0
        %v808 = vadd.f32 0.0, %v807
        %809 = vdwg.mxu0
        %v811 = vsel %vm786, %v714, 0
        %813 = vmatpush.msra.mxu0 0.0
        %814 = vmatpush.msra.mxu0 0.0
        %815 = vmatpush.msra.mxu0 0.0
        %816 = vmatpush.msra.mxu0 0.0
        %817 = vmatpush.msra.mxu0 0.0
        %818 = vmatpush.msra.mxu0 0.0
        %819 = vmatpush.msra.mxu0 0.0
        %820 = vmatpush.msra.mxu0 0.0
        %821 = vmatpush.msra.mxu0 0.0
        %822 = vmatpush.msra.mxu0 0.0
        %823 = vmatpush.msra.mxu0 0.0
        %824 = vmatpush.msra.mxu0 0.0
        %825 = vmatpush.msra.mxu0 0.0
        %826 = vmatpush.msra.mxu0 0.0
        %827 = vmatpush.msra.mxu0 %v717
        %828 = vmatpush.msra.mxu0 %v716
        %829 = vmatmul.f32.gmra.mxu0 %v811
        %v830 = vpop.f32.mrf.mxu0
        %v831 = vadd.f32 %v808, %v830
        %832 = vdwg.mxu0
        %833 = vrot.lane.b32.xlu0 %v581, 112
        %v834 = vpop.permute.xlu0 %833
        %835 = vrot.lane.b32.xlu0 %v653, 112
        %v836 = vpop.permute.xlu0 %835
        %v837 = vsel %vm655, %v834, 0
        %v839 = vsel %vm655, %v836, 0
        %841 = vmatpush.xpose.msra.mxu0 0.0
        %842 = vmatpush.xpose.msra.mxu0 0.0
        %843 = vmatpush.xpose.msra.mxu0 0.0
        %844 = vmatpush.xpose.msra.mxu0 0.0
        %845 = vmatpush.xpose.msra.mxu0 0.0
        %846 = vmatpush.xpose.msra.mxu0 0.0
        %847 = vmatpush.xpose.msra.mxu0 0.0
        %848 = vmatpush.xpose.msra.mxu0 0.0
        %849 = vmatpush.xpose.msra.mxu0 0.0
        %850 = vmatpush.xpose.msra.mxu0 0.0
        %851 = vmatpush.xpose.msra.mxu0 0.0
        %852 = vmatpush.xpose.msra.mxu0 0.0
        %853 = vmatpush.xpose.msra.mxu0 0.0
        %854 = vmatpush.xpose.msra.mxu0 0.0
        %855 = vmatpush.xpose.msra.mxu0 0.0
        %856 = vmatpush.xpose.msra.mxu0 %v839
        %857 = vmatmul.f32.gmra.mxu0 %v837
        %v858 = vpop.f32.mrf.mxu0
        %v859 = vadd.f32 0.0, %v858
        %860 = vdwg.mxu0
        %v861 = vsel %vm655, %v859, -inf
        %862 = vmax.xlane.f32.xlu0 %v861
        %v863 = vpop.xlane.xlu0 %862
        %v864 = vsub.f32 %v859, %v863
        %v865 = vmul.f32 %v864, 1.442695
        %v866 = vpow.pop %v865
        %v867 = vsel %vm655, %v866, 0.0
        %868 = vadd.xlane.f32.xlu0 %v867
        %v869 = vpop.xlane.xlu0 %868
        %v870 = vrcp.pop %v869
        %v871 = vmul.f32 %v866, %v870
        %872 = vrot.lane.b32.xlu0 %v509, 96
        %v873 = vpop.permute.xlu0 %872
        %v876 = vsel %vm655, %v871, 0
        %878 = vmatpush.msra.mxu0 0.0
        %879 = vmatpush.msra.mxu0 0.0
        %880 = vmatpush.msra.mxu0 0.0
        %881 = vmatpush.msra.mxu0 0.0
        %882 = vmatpush.msra.mxu0 0.0
        %883 = vmatpush.msra.mxu0 0.0
        %884 = vmatpush.msra.mxu0 0.0
        %885 = vmatpush.msra.mxu0 0.0
        %886 = vmatpush.msra.mxu0 0.0
        %887 = vmatpush.msra.mxu0 0.0
        %888 = vmatpush.msra.mxu0 0.0
        %889 = vmatpush.msra.mxu0 0.0
        %890 = vmatpush.msra.mxu0 0.0
        %891 = vmatpush.msra.mxu0 0.0
        %892 = vmatpush.msra.mxu0 0.0
        %893 = vmatpush.msra.mxu0 %v873
        %894 = vmatmul.f32.gmra.mxu0 %v876
        %v895 = vpop.f32.mrf.mxu0
        %v896 = vadd.f32 0.0, %v895
        %897 = vdwg.mxu0
        %v898 = vld [vmem:[#allocation11 + $0x20] sm:$0xff]
        %v899 = vld [vmem:[#allocation11 + $0x28] sm:$0xff]
        %v901 = vsel %vm786, %v896, 0
        %903 = vmatpush.msra.mxu0 0.0
        %904 = vmatpush.msra.mxu0 0.0
        %905 = vmatpush.msra.mxu0 0.0
        %906 = vmatpush.msra.mxu0 0.0
        %907 = vmatpush.msra.mxu0 0.0
        %908 = vmatpush.msra.mxu0 0.0
        %909 = vmatpush.msra.mxu0 0.0
        %910 = vmatpush.msra.mxu0 0.0
        %911 = vmatpush.msra.mxu0 0.0
        %912 = vmatpush.msra.mxu0 0.0
        %913 = vmatpush.msra.mxu0 0.0
        %914 = vmatpush.msra.mxu0 0.0
        %915 = vmatpush.msra.mxu0 0.0
        %916 = vmatpush.msra.mxu0 0.0
        %917 = vmatpush.msra.mxu0 %v899
        %918 = vmatpush.msra.mxu0 %v898
        %919 = vmatmul.f32.gmra.mxu0 %v901
        %v920 = vpop.f32.mrf.mxu0
        %v921 = vadd.f32 0.0, %v920
        %922 = vdwg.mxu0
        %v923 = vadd.f32 %v831, %v921
        %924 = vrot.lane.b32.xlu0 %v581, 104
        %v925 = vpop.permute.xlu0 %924
        %926 = vrot.lane.b32.xlu0 %v653, 104
        %v927 = vpop.permute.xlu0 %926
        %v928 = vsel %vm655, %v925, 0
        %v930 = vsel %vm655, %v927, 0
        %932 = vmatpush.xpose.msra.mxu0 0.0
        %933 = vmatpush.xpose.msra.mxu0 0.0
        %934 = vmatpush.xpose.msra.mxu0 0.0
        %935 = vmatpush.xpose.msra.mxu0 0.0
        %936 = vmatpush.xpose.msra.mxu0 0.0
        %937 = vmatpush.xpose.msra.mxu0 0.0
        %938 = vmatpush.xpose.msra.mxu0 0.0
        %939 = vmatpush.xpose.msra.mxu0 0.0
        %940 = vmatpush.xpose.msra.mxu0 0.0
        %941 = vmatpush.xpose.msra.mxu0 0.0
        %942 = vmatpush.xpose.msra.mxu0 0.0
        %943 = vmatpush.xpose.msra.mxu0 0.0
        %944 = vmatpush.xpose.msra.mxu0 0.0
        %945 = vmatpush.xpose.msra.mxu0 0.0
        %946 = vmatpush.xpose.msra.mxu0 0.0
        %947 = vmatpush.xpose.msra.mxu0 %v930
        %948 = vmatmul.f32.gmra.mxu0 %v928
        %v949 = vpop.f32.mrf.mxu0
        %v950 = vadd.f32 0.0, %v949
        %951 = vdwg.mxu0
        %v952 = vsel %vm655, %v950, -inf
        %953 = vmax.xlane.f32.xlu0 %v952
        %v954 = vpop.xlane.xlu0 %953
        %v955 = vsub.f32 %v950, %v954
        %v956 = vmul.f32 %v955, 1.442695
        %v957 = vpow.pop %v956
        %v958 = vsel %vm655, %v957, 0.0
        %959 = vadd.xlane.f32.xlu0 %v958
        %v960 = vpop.xlane.xlu0 %959
        %v961 = vrcp.pop %v960
        %v962 = vmul.f32 %v957, %v961
        %963 = vrot.lane.b32.xlu0 %v509, 80
        %v964 = vpop.permute.xlu0 %963
        %v967 = vsel %vm655, %v962, 0
        %969 = vmatpush.msra.mxu0 0.0
        %970 = vmatpush.msra.mxu0 0.0
        %971 = vmatpush.msra.mxu0 0.0
        %972 = vmatpush.msra.mxu0 0.0
        %973 = vmatpush.msra.mxu0 0.0
        %974 = vmatpush.msra.mxu0 0.0
        %975 = vmatpush.msra.mxu0 0.0
        %976 = vmatpush.msra.mxu0 0.0
        %977 = vmatpush.msra.mxu0 0.0
        %978 = vmatpush.msra.mxu0 0.0
        %979 = vmatpush.msra.mxu0 0.0
        %980 = vmatpush.msra.mxu0 0.0
        %981 = vmatpush.msra.mxu0 0.0
        %982 = vmatpush.msra.mxu0 0.0
        %983 = vmatpush.msra.mxu0 0.0
        %984 = vmatpush.msra.mxu0 %v964
        %985 = vmatmul.f32.gmra.mxu0 %v967
        %v986 = vpop.f32.mrf.mxu0
        %v987 = vadd.f32 0.0, %v986
        %988 = vdwg.mxu0
        %v989 = vld [vmem:[#allocation11 + $0x30] sm:$0xff]
        %v990 = vld [vmem:[#allocation11 + $0x38] sm:$0xff]
        %v992 = vsel %vm786, %v987, 0
        %994 = vmatpush.msra.mxu0 0.0
        %995 = vmatpush.msra.mxu0 0.0
        %996 = vmatpush.msra.mxu0 0.0
        %997 = vmatpush.msra.mxu0 0.0
        %998 = vmatpush.msra.mxu0 0.0
        %999 = vmatpush.msra.mxu0 0.0
        %1000 = vmatpush.msra.mxu0 0.0
        %1001 = vmatpush.msra.mxu0 0.0
        %1002 = vmatpush.msra.mxu0 0.0
        %1003 = vmatpush.msra.mxu0 0.0
        %1004 = vmatpush.msra.mxu0 0.0
        %1005 = vmatpush.msra.mxu0 0.0
        %1006 = vmatpush.msra.mxu0 0.0
        %1007 = vmatpush.msra.mxu0 0.0
        %1008 = vmatpush.msra.mxu0 %v990
        %1009 = vmatpush.msra.mxu0 %v989
        %1010 = vmatmul.f32.gmra.mxu0 %v992
        %v1011 = vpop.f32.mrf.mxu0
        %v1012 = vadd.f32 0.0, %v1011
        %1013 = vdwg.mxu0
        %v1014 = vadd.f32 %v923, %v1012
        %1015 = vrot.lane.b32.xlu0 %v581, 96
        %v1016 = vpop.permute.xlu0 %1015
        %1017 = vrot.lane.b32.xlu0 %v653, 96
        %v1018 = vpop.permute.xlu0 %1017
        %v1019 = vsel %vm655, %v1016, 0
        %v1021 = vsel %vm655, %v1018, 0
        %1023 = vmatpush.xpose.msra.mxu0 0.0
        %1024 = vmatpush.xpose.msra.mxu0 0.0
        %1025 = vmatpush.xpose.msra.mxu0 0.0
        %1026 = vmatpush.xpose.msra.mxu0 0.0
        %1027 = vmatpush.xpose.msra.mxu0 0.0
        %1028 = vmatpush.xpose.msra.mxu0 0.0
        %1029 = vmatpush.xpose.msra.mxu0 0.0
        %1030 = vmatpush.xpose.msra.mxu0 0.0
        %1031 = vmatpush.xpose.msra.mxu0 0.0
        %1032 = vmatpush.xpose.msra.mxu0 0.0
        %1033 = vmatpush.xpose.msra.mxu0 0.0
        %1034 = vmatpush.xpose.msra.mxu0 0.0
        %1035 = vmatpush.xpose.msra.mxu0 0.0
        %1036 = vmatpush.xpose.msra.mxu0 0.0
        %1037 = vmatpush.xpose.msra.mxu0 0.0
        %1038 = vmatpush.xpose.msra.mxu0 %v1021
        %1039 = vmatmul.f32.gmra.mxu0 %v1019
        %v1040 = vpop.f32.mrf.mxu0
        %v1041 = vadd.f32 0.0, %v1040
        %1042 = vdwg.mxu0
        %v1043 = vsel %vm655, %v1041, -inf
        %1044 = vmax.xlane.f32.xlu0 %v1043
        %v1045 = vpop.xlane.xlu0 %1044
        %v1046 = vsub.f32 %v1041, %v1045
        %v1047 = vmul.f32 %v1046, 1.442695
        %v1048 = vpow.pop %v1047
        %v1049 = vsel %vm655, %v1048, 0.0
        %1050 = vadd.xlane.f32.xlu0 %v1049
        %v1051 = vpop.xlane.xlu0 %1050
        %v1052 = vrcp.pop %v1051
        %v1053 = vmul.f32 %v1048, %v1052
        %1054 = vrot.lane.b32.xlu0 %v509, 64
        %v1055 = vpop.permute.xlu0 %1054
        %v1058 = vsel %vm655, %v1053, 0
        %1060 = vmatpush.msra.mxu0 0.0
        %1061 = vmatpush.msra.mxu0 0.0
        %1062 = vmatpush.msra.mxu0 0.0
        %1063 = vmatpush.msra.mxu0 0.0
        %1064 = vmatpush.msra.mxu0 0.0
        %1065 = vmatpush.msra.mxu0 0.0
        %1066 = vmatpush.msra.mxu0 0.0
        %1067 = vmatpush.msra.mxu0 0.0
        %1068 = vmatpush.msra.mxu0 0.0
        %1069 = vmatpush.msra.mxu0 0.0
        %1070 = vmatpush.msra.mxu0 0.0
        %1071 = vmatpush.msra.mxu0 0.0
        %1072 = vmatpush.msra.mxu0 0.0
        %1073 = vmatpush.msra.mxu0 0.0
        %1074 = vmatpush.msra.mxu0 0.0
        %1075 = vmatpush.msra.mxu0 %v1055
        %1076 = vmatmul.f32.gmra.mxu0 %v1058
        %v1077 = vpop.f32.mrf.mxu0
        %v1078 = vadd.f32 0.0, %v1077
        %1079 = vdwg.mxu0
        %v1080 = vld [vmem:[#allocation11 + $0x40] sm:$0xff]
        %v1081 = vld [vmem:[#allocation11 + $0x48] sm:$0xff]
        %v1083 = vsel %vm786, %v1078, 0
        %1085 = vmatpush.msra.mxu0 0.0
        %1086 = vmatpush.msra.mxu0 0.0
        %1087 = vmatpush.msra.mxu0 0.0
        %1088 = vmatpush.msra.mxu0 0.0
        %1089 = vmatpush.msra.mxu0 0.0
        %1090 = vmatpush.msra.mxu0 0.0
        %1091 = vmatpush.msra.mxu0 0.0
        %1092 = vmatpush.msra.mxu0 0.0
        %1093 = vmatpush.msra.mxu0 0.0
        %1094 = vmatpush.msra.mxu0 0.0
        %1095 = vmatpush.msra.mxu0 0.0
        %1096 = vmatpush.msra.mxu0 0.0
        %1097 = vmatpush.msra.mxu0 0.0
        %1098 = vmatpush.msra.mxu0 0.0
        %1099 = vmatpush.msra.mxu0 %v1081
        %1100 = vmatpush.msra.mxu0 %v1080
        %1101 = vmatmul.f32.gmra.mxu0 %v1083
        %v1102 = vpop.f32.mrf.mxu0
        %v1103 = vadd.f32 0.0, %v1102
        %1104 = vdwg.mxu0
        %v1105 = vadd.f32 %v1014, %v1103
        %1106 = vrot.lane.b32.xlu0 %v581, 88
        %v1107 = vpop.permute.xlu0 %1106
        %1108 = vrot.lane.b32.xlu0 %v653, 88
        %v1109 = vpop.permute.xlu0 %1108
        %v1110 = vsel %vm655, %v1107, 0
        %v1112 = vsel %vm655, %v1109, 0
        %1114 = vmatpush.xpose.msra.mxu0 0.0
        %1115 = vmatpush.xpose.msra.mxu0 0.0
        %1116 = vmatpush.xpose.msra.mxu0 0.0
        %1117 = vmatpush.xpose.msra.mxu0 0.0
        %1118 = vmatpush.xpose.msra.mxu0 0.0
        %1119 = vmatpush.xpose.msra.mxu0 0.0
        %1120 = vmatpush.xpose.msra.mxu0 0.0
        %1121 = vmatpush.xpose.msra.mxu0 0.0
        %1122 = vmatpush.xpose.msra.mxu0 0.0
        %1123 = vmatpush.xpose.msra.mxu0 0.0
        %1124 = vmatpush.xpose.msra.mxu0 0.0
        %1125 = vmatpush.xpose.msra.mxu0 0.0
        %1126 = vmatpush.xpose.msra.mxu0 0.0
        %1127 = vmatpush.xpose.msra.mxu0 0.0
        %1128 = vmatpush.xpose.msra.mxu0 0.0
        %1129 = vmatpush.xpose.msra.mxu0 %v1112
        %1130 = vmatmul.f32.gmra.mxu0 %v1110
        %v1131 = vpop.f32.mrf.mxu0
        %v1132 = vadd.f32 0.0, %v1131
        %1133 = vdwg.mxu0
        %v1134 = vsel %vm655, %v1132, -inf
        %1135 = vmax.xlane.f32.xlu0 %v1134
        %v1136 = vpop.xlane.xlu0 %1135
        %v1137 = vsub.f32 %v1132, %v1136
        %v1138 = vmul.f32 %v1137, 1.442695
        %v1139 = vpow.pop %v1138
        %v1140 = vsel %vm655, %v1139, 0.0
        %1141 = vadd.xlane.f32.xlu0 %v1140
        %v1142 = vpop.xlane.xlu0 %1141
        %v1143 = vrcp.pop %v1142
        %v1144 = vmul.f32 %v1139, %v1143
        %1145 = vrot.lane.b32.xlu0 %v509, 48
        %v1146 = vpop.permute.xlu0 %1145
        %v1149 = vsel %vm655, %v1144, 0
        %1151 = vmatpush.msra.mxu0 0.0
        %1152 = vmatpush.msra.mxu0 0.0
        %1153 = vmatpush.msra.mxu0 0.0
        %1154 = vmatpush.msra.mxu0 0.0
        %1155 = vmatpush.msra.mxu0 0.0
        %1156 = vmatpush.msra.mxu0 0.0
        %1157 = vmatpush.msra.mxu0 0.0
        %1158 = vmatpush.msra.mxu0 0.0
        %1159 = vmatpush.msra.mxu0 0.0
        %1160 = vmatpush.msra.mxu0 0.0
        %1161 = vmatpush.msra.mxu0 0.0
        %1162 = vmatpush.msra.mxu0 0.0
        %1163 = vmatpush.msra.mxu0 0.0
        %1164 = vmatpush.msra.mxu0 0.0
        %1165 = vmatpush.msra.mxu0 0.0
        %1166 = vmatpush.msra.mxu0 %v1146
        %1167 = vmatmul.f32.gmra.mxu0 %v1149
        %v1168 = vpop.f32.mrf.mxu0
        %v1169 = vadd.f32 0.0, %v1168
        %1170 = vdwg.mxu0
        %v1171 = vld [vmem:[#allocation11 + $0x50] sm:$0xff]
        %v1172 = vld [vmem:[#allocation11 + $0x58] sm:$0xff]
        %v1174 = vsel %vm786, %v1169, 0
        %1176 = vmatpush.msra.mxu0 0.0
        %1177 = vmatpush.msra.mxu0 0.0
        %1178 = vmatpush.msra.mxu0 0.0
        %1179 = vmatpush.msra.mxu0 0.0
        %1180 = vmatpush.msra.mxu0 0.0
        %1181 = vmatpush.msra.mxu0 0.0
        %1182 = vmatpush.msra.mxu0 0.0
        %1183 = vmatpush.msra.mxu0 0.0
        %1184 = vmatpush.msra.mxu0 0.0
        %1185 = vmatpush.msra.mxu0 0.0
        %1186 = vmatpush.msra.mxu0 0.0
        %1187 = vmatpush.msra.mxu0 0.0
        %1188 = vmatpush.msra.mxu0 0.0
        %1189 = vmatpush.msra.mxu0 0.0
        %1190 = vmatpush.msra.mxu0 %v1172
        %1191 = vmatpush.msra.mxu0 %v1171
        %1192 = vmatmul.f32.gmra.mxu0 %v1174
        %v1193 = vpop.f32.mrf.mxu0
        %v1194 = vadd.f32 0.0, %v1193
        %1195 = vdwg.mxu0
        %v1196 = vadd.f32 %v1105, %v1194
        %1197 = vrot.lane.b32.xlu0 %v581, 80
        %v1198 = vpop.permute.xlu0 %1197
        %1199 = vrot.lane.b32.xlu0 %v653, 80
        %v1200 = vpop.permute.xlu0 %1199
        %v1201 = vsel %vm655, %v1198, 0
        %v1203 = vsel %vm655, %v1200, 0
        %1205 = vmatpush.xpose.msra.mxu0 0.0
        %1206 = vmatpush.xpose.msra.mxu0 0.0
        %1207 = vmatpush.xpose.msra.mxu0 0.0
        %1208 = vmatpush.xpose.msra.mxu0 0.0
        %1209 = vmatpush.xpose.msra.mxu0 0.0
        %1210 = vmatpush.xpose.msra.mxu0 0.0
        %1211 = vmatpush.xpose.msra.mxu0 0.0
        %1212 = vmatpush.xpose.msra.mxu0 0.0
        %1213 = vmatpush.xpose.msra.mxu0 0.0
        %1214 = vmatpush.xpose.msra.mxu0 0.0
        %1215 = vmatpush.xpose.msra.mxu0 0.0
        %1216 = vmatpush.xpose.msra.mxu0 0.0
        %1217 = vmatpush.xpose.msra.mxu0 0.0
        %1218 = vmatpush.xpose.msra.mxu0 0.0
        %1219 = vmatpush.xpose.msra.mxu0 0.0
        %1220 = vmatpush.xpose.msra.mxu0 %v1203
        %1221 = vmatmul.f32.gmra.mxu0 %v1201
        %v1222 = vpop.f32.mrf.mxu0
        %v1223 = vadd.f32 0.0, %v1222
        %1224 = vdwg.mxu0
        %v1225 = vsel %vm655, %v1223, -inf
        %1226 = vmax.xlane.f32.xlu0 %v1225
        %v1227 = vpop.xlane.xlu0 %1226
        %v1228 = vsub.f32 %v1223, %v1227
        %v1229 = vmul.f32 %v1228, 1.442695
        %v1230 = vpow.pop %v1229
        %v1231 = vsel %vm655, %v1230, 0.0
        %1232 = vadd.xlane.f32.xlu0 %v1231
        %v1233 = vpop.xlane.xlu0 %1232
        %v1234 = vrcp.pop %v1233
        %v1235 = vmul.f32 %v1230, %v1234
        %1236 = vrot.lane.b32.xlu0 %v509, 32
        %v1237 = vpop.permute.xlu0 %1236
        %v1240 = vsel %vm655, %v1235, 0
        %1242 = vmatpush.msra.mxu0 0.0
        %1243 = vmatpush.msra.mxu0 0.0
        %1244 = vmatpush.msra.mxu0 0.0
        %1245 = vmatpush.msra.mxu0 0.0
        %1246 = vmatpush.msra.mxu0 0.0
        %1247 = vmatpush.msra.mxu0 0.0
        %1248 = vmatpush.msra.mxu0 0.0
        %1249 = vmatpush.msra.mxu0 0.0
        %1250 = vmatpush.msra.mxu0 0.0
        %1251 = vmatpush.msra.mxu0 0.0
        %1252 = vmatpush.msra.mxu0 0.0
        %1253 = vmatpush.msra.mxu0 0.0
        %1254 = vmatpush.msra.mxu0 0.0
        %1255 = vmatpush.msra.mxu0 0.0
        %1256 = vmatpush.msra.mxu0 0.0
        %1257 = vmatpush.msra.mxu0 %v1237
        %1258 = vmatmul.f32.gmra.mxu0 %v1240
        %v1259 = vpop.f32.mrf.mxu0
        %v1260 = vadd.f32 0.0, %v1259
        %1261 = vdwg.mxu0
        %v1262 = vld [vmem:[#allocation11 + $0x60] sm:$0xff]
        %v1263 = vld [vmem:[#allocation11 + $0x68] sm:$0xff]
        %v1265 = vsel %vm786, %v1260, 0
        %1267 = vmatpush.msra.mxu0 0.0
        %1268 = vmatpush.msra.mxu0 0.0
        %1269 = vmatpush.msra.mxu0 0.0
        %1270 = vmatpush.msra.mxu0 0.0
        %1271 = vmatpush.msra.mxu0 0.0
        %1272 = vmatpush.msra.mxu0 0.0
        %1273 = vmatpush.msra.mxu0 0.0
        %1274 = vmatpush.msra.mxu0 0.0
        %1275 = vmatpush.msra.mxu0 0.0
        %1276 = vmatpush.msra.mxu0 0.0
        %1277 = vmatpush.msra.mxu0 0.0
        %1278 = vmatpush.msra.mxu0 0.0
        %1279 = vmatpush.msra.mxu0 0.0
        %1280 = vmatpush.msra.mxu0 0.0
        %1281 = vmatpush.msra.mxu0 %v1263
        %1282 = vmatpush.msra.mxu0 %v1262
        %1283 = vmatmul.f32.gmra.mxu0 %v1265
        %v1284 = vpop.f32.mrf.mxu0
        %v1285 = vadd.f32 0.0, %v1284
        %1286 = vdwg.mxu0
        %v1287 = vadd.f32 %v1196, %v1285
        %1288 = vrot.lane.b32.xlu0 %v581, 72
        %v1289 = vpop.permute.xlu0 %1288
        %1290 = vrot.lane.b32.xlu0 %v653, 72
        %v1291 = vpop.permute.xlu0 %1290
        %v1292 = vsel %vm655, %v1289, 0
        %v1294 = vsel %vm655, %v1291, 0
        %1296 = vmatpush.xpose.msra.mxu0 0.0
        %1297 = vmatpush.xpose.msra.mxu0 0.0
        %1298 = vmatpush.xpose.msra.mxu0 0.0
        %1299 = vmatpush.xpose.msra.mxu0 0.0
        %1300 = vmatpush.xpose.msra.mxu0 0.0
        %1301 = vmatpush.xpose.msra.mxu0 0.0
        %1302 = vmatpush.xpose.msra.mxu0 0.0
        %1303 = vmatpush.xpose.msra.mxu0 0.0
        %1304 = vmatpush.xpose.msra.mxu0 0.0
        %1305 = vmatpush.xpose.msra.mxu0 0.0
        %1306 = vmatpush.xpose.msra.mxu0 0.0
        %1307 = vmatpush.xpose.msra.mxu0 0.0
        %1308 = vmatpush.xpose.msra.mxu0 0.0
        %1309 = vmatpush.xpose.msra.mxu0 0.0
        %1310 = vmatpush.xpose.msra.mxu0 0.0
        %1311 = vmatpush.xpose.msra.mxu0 %v1294
        %1312 = vmatmul.f32.gmra.mxu0 %v1292
        %v1313 = vpop.f32.mrf.mxu0
        %v1314 = vadd.f32 0.0, %v1313
        %1315 = vdwg.mxu0
        %v1316 = vsel %vm655, %v1314, -inf
        %1317 = vmax.xlane.f32.xlu0 %v1316
        %v1318 = vpop.xlane.xlu0 %1317
        %v1319 = vsub.f32 %v1314, %v1318
        %v1320 = vmul.f32 %v1319, 1.442695
        %v1321 = vpow.pop %v1320
        %v1322 = vsel %vm655, %v1321, 0.0
        %1323 = vadd.xlane.f32.xlu0 %v1322
        %v1324 = vpop.xlane.xlu0 %1323
        %v1325 = vrcp.pop %v1324
        %v1326 = vmul.f32 %v1321, %v1325
        %1327 = vrot.lane.b32.xlu0 %v509, 16
        %v1328 = vpop.permute.xlu0 %1327
        %v1331 = vsel %vm655, %v1326, 0
        %1333 = vmatpush.msra.mxu0 0.0
        %1334 = vmatpush.msra.mxu0 0.0
        %1335 = vmatpush.msra.mxu0 0.0
        %1336 = vmatpush.msra.mxu0 0.0
        %1337 = vmatpush.msra.mxu0 0.0
        %1338 = vmatpush.msra.mxu0 0.0
        %1339 = vmatpush.msra.mxu0 0.0
        %1340 = vmatpush.msra.mxu0 0.0
        %1341 = vmatpush.msra.mxu0 0.0
        %1342 = vmatpush.msra.mxu0 0.0
        %1343 = vmatpush.msra.mxu0 0.0
        %1344 = vmatpush.msra.mxu0 0.0
        %1345 = vmatpush.msra.mxu0 0.0
        %1346 = vmatpush.msra.mxu0 0.0
        %1347 = vmatpush.msra.mxu0 0.0
        %1348 = vmatpush.msra.mxu0 %v1328
        %1349 = vmatmul.f32.gmra.mxu0 %v1331
        %v1350 = vpop.f32.mrf.mxu0
        %v1351 = vadd.f32 0.0, %v1350
        %1352 = vdwg.mxu0
        %v1353 = vld [vmem:[#allocation11 + $0x70] sm:$0xff]
        %v1354 = vld [vmem:[#allocation11 + $0x78] sm:$0xff]
        %v1356 = vsel %vm786, %v1351, 0
        %1358 = vmatpush.msra.mxu0 0.0
        %1359 = vmatpush.msra.mxu0 0.0
        %1360 = vmatpush.msra.mxu0 0.0
        %1361 = vmatpush.msra.mxu0 0.0
        %1362 = vmatpush.msra.mxu0 0.0
        %1363 = vmatpush.msra.mxu0 0.0
        %1364 = vmatpush.msra.mxu0 0.0
        %1365 = vmatpush.msra.mxu0 0.0
        %1366 = vmatpush.msra.mxu0 0.0
        %1367 = vmatpush.msra.mxu0 0.0
        %1368 = vmatpush.msra.mxu0 0.0
        %1369 = vmatpush.msra.mxu0 0.0
        %1370 = vmatpush.msra.mxu0 0.0
        %1371 = vmatpush.msra.mxu0 0.0
        %1372 = vmatpush.msra.mxu0 %v1354
        %1373 = vmatpush.msra.mxu0 %v1353
        %1374 = vmatmul.f32.gmra.mxu0 %v1356
        %v1375 = vpop.f32.mrf.mxu0
        %v1376 = vadd.f32 0.0, %v1375
        %1377 = vdwg.mxu0
        %v1378 = vadd.f32 %v1287, %v1376
        %1379 = vrot.lane.b32.xlu0 %v581, 64
        %v1380 = vpop.permute.xlu0 %1379
        %1381 = vrot.lane.b32.xlu0 %v653, 64
        %v1382 = vpop.permute.xlu0 %1381
        %v1383 = vsel %vm655, %v1380, 0
        %v1385 = vsel %vm655, %v1382, 0
        %1387 = vmatpush.xpose.msra.mxu0 0.0
        %1388 = vmatpush.xpose.msra.mxu0 0.0
        %1389 = vmatpush.xpose.msra.mxu0 0.0
        %1390 = vmatpush.xpose.msra.mxu0 0.0
        %1391 = vmatpush.xpose.msra.mxu0 0.0
        %1392 = vmatpush.xpose.msra.mxu0 0.0
        %1393 = vmatpush.xpose.msra.mxu0 0.0
        %1394 = vmatpush.xpose.msra.mxu0 0.0
        %1395 = vmatpush.xpose.msra.mxu0 0.0
        %1396 = vmatpush.xpose.msra.mxu0 0.0
        %1397 = vmatpush.xpose.msra.mxu0 0.0
        %1398 = vmatpush.xpose.msra.mxu0 0.0
        %1399 = vmatpush.xpose.msra.mxu0 0.0
        %1400 = vmatpush.xpose.msra.mxu0 0.0
        %1401 = vmatpush.xpose.msra.mxu0 0.0
        %1402 = vmatpush.xpose.msra.mxu0 %v1385
        %1403 = vmatmul.f32.gmra.mxu0 %v1383
        %v1404 = vpop.f32.mrf.mxu0
        %v1405 = vadd.f32 0.0, %v1404
        %1406 = vdwg.mxu0
        %v1407 = vsel %vm655, %v1405, -inf
        %1408 = vmax.xlane.f32.xlu0 %v1407
        %v1409 = vpop.xlane.xlu0 %1408
        %v1410 = vsub.f32 %v1405, %v1409
        %v1411 = vmul.f32 %v1410, 1.442695
        %v1412 = vpow.pop %v1411
        %v1413 = vsel %vm655, %v1412, 0.0
        %1414 = vadd.xlane.f32.xlu0 %v1413
        %v1415 = vpop.xlane.xlu0 %1414
        %v1416 = vrcp.pop %v1415
        %v1417 = vmul.f32 %v1412, %v1416
        %v1419 = vsel %vm655, %v1417, 0
        %1421 = vmatpush.msra.mxu0 0.0
        %1422 = vmatpush.msra.mxu0 0.0
        %1423 = vmatpush.msra.mxu0 0.0
        %1424 = vmatpush.msra.mxu0 0.0
        %1425 = vmatpush.msra.mxu0 0.0
        %1426 = vmatpush.msra.mxu0 0.0
        %1427 = vmatpush.msra.mxu0 0.0
        %1428 = vmatpush.msra.mxu0 0.0
        %1429 = vmatpush.msra.mxu0 0.0
        %1430 = vmatpush.msra.mxu0 0.0
        %1431 = vmatpush.msra.mxu0 0.0
        %1432 = vmatpush.msra.mxu0 0.0
        %1433 = vmatpush.msra.mxu0 0.0
        %1434 = vmatpush.msra.mxu0 0.0
        %1435 = vmatpush.msra.mxu0 0.0
        %1436 = vmatpush.msra.mxu0 %v510
        %1437 = vmatmul.f32.gmra.mxu0 %v1419
        %v1438 = vpop.f32.mrf.mxu0
        %v1439 = vadd.f32 0.0, %v1438
        %1440 = vdwg.mxu0
        %v1441 = vld [vmem:[#allocation11 + $0x80] sm:$0xff]
        %v1442 = vld [vmem:[#allocation11 + $0x88] sm:$0xff]
        %v1444 = vsel %vm786, %v1439, 0
        %1446 = vmatpush.msra.mxu0 0.0
        %1447 = vmatpush.msra.mxu0 0.0
        %1448 = vmatpush.msra.mxu0 0.0
        %1449 = vmatpush.msra.mxu0 0.0
        %1450 = vmatpush.msra.mxu0 0.0
        %1451 = vmatpush.msra.mxu0 0.0
        %1452 = vmatpush.msra.mxu0 0.0
        %1453 = vmatpush.msra.mxu0 0.0
        %1454 = vmatpush.msra.mxu0 0.0
        %1455 = vmatpush.msra.mxu0 0.0
        %1456 = vmatpush.msra.mxu0 0.0
        %1457 = vmatpush.msra.mxu0 0.0
        %1458 = vmatpush.msra.mxu0 0.0
        %1459 = vmatpush.msra.mxu0 0.0
        %1460 = vmatpush.msra.mxu0 %v1442
        %1461 = vmatpush.msra.mxu0 %v1441
        %1462 = vmatmul.f32.gmra.mxu0 %v1444
        %v1463 = vpop.f32.mrf.mxu0
        %v1464 = vadd.f32 0.0, %v1463
        %1465 = vdwg.mxu0
        %v1466 = vadd.f32 %v1378, %v1464
        %1467 = vrot.lane.b32.xlu0 %v581, 56
        %v1468 = vpop.permute.xlu0 %1467
        %1469 = vrot.lane.b32.xlu0 %v653, 56
        %v1470 = vpop.permute.xlu0 %1469
        %v1471 = vsel %vm655, %v1468, 0
        %v1473 = vsel %vm655, %v1470, 0
        %1475 = vmatpush.xpose.msra.mxu0 0.0
        %1476 = vmatpush.xpose.msra.mxu0 0.0
        %1477 = vmatpush.xpose.msra.mxu0 0.0
        %1478 = vmatpush.xpose.msra.mxu0 0.0
        %1479 = vmatpush.xpose.msra.mxu0 0.0
        %1480 = vmatpush.xpose.msra.mxu0 0.0
        %1481 = vmatpush.xpose.msra.mxu0 0.0
        %1482 = vmatpush.xpose.msra.mxu0 0.0
        %1483 = vmatpush.xpose.msra.mxu0 0.0
        %1484 = vmatpush.xpose.msra.mxu0 0.0
        %1485 = vmatpush.xpose.msra.mxu0 0.0
        %1486 = vmatpush.xpose.msra.mxu0 0.0
        %1487 = vmatpush.xpose.msra.mxu0 0.0
        %1488 = vmatpush.xpose.msra.mxu0 0.0
        %1489 = vmatpush.xpose.msra.mxu0 0.0
        %1490 = vmatpush.xpose.msra.mxu0 %v1473
        %1491 = vmatmul.f32.gmra.mxu0 %v1471
        %v1492 = vpop.f32.mrf.mxu0
        %v1493 = vadd.f32 0.0, %v1492
        %1494 = vdwg.mxu0
        %v1495 = vsel %vm655, %v1493, -inf
        %1496 = vmax.xlane.f32.xlu0 %v1495
        %v1497 = vpop.xlane.xlu0 %1496
        %v1498 = vsub.f32 %v1493, %v1497
        %v1499 = vmul.f32 %v1498, 1.442695
        %v1500 = vpow.pop %v1499
        %v1501 = vsel %vm655, %v1500, 0.0
        %1502 = vadd.xlane.f32.xlu0 %v1501
        %v1503 = vpop.xlane.xlu0 %1502
        %v1504 = vrcp.pop %v1503
        %v1505 = vmul.f32 %v1500, %v1504
        %1507 = vrot.lane.b32.xlu0 %v510, 112
        %v1508 = vpop.permute.xlu0 %1507
        %v1511 = vsel %vm655, %v1505, 0
        %1513 = vmatpush.msra.mxu0 0.0
        %1514 = vmatpush.msra.mxu0 0.0
        %1515 = vmatpush.msra.mxu0 0.0
        %1516 = vmatpush.msra.mxu0 0.0
        %1517 = vmatpush.msra.mxu0 0.0
        %1518 = vmatpush.msra.mxu0 0.0
        %1519 = vmatpush.msra.mxu0 0.0
        %1520 = vmatpush.msra.mxu0 0.0
        %1521 = vmatpush.msra.mxu0 0.0
        %1522 = vmatpush.msra.mxu0 0.0
        %1523 = vmatpush.msra.mxu0 0.0
        %1524 = vmatpush.msra.mxu0 0.0
        %1525 = vmatpush.msra.mxu0 0.0
        %1526 = vmatpush.msra.mxu0 0.0
        %1527 = vmatpush.msra.mxu0 0.0
        %1528 = vmatpush.msra.mxu0 %v1508
        %1529 = vmatmul.f32.gmra.mxu0 %v1511
        %v1530 = vpop.f32.mrf.mxu0
        %v1531 = vadd.f32 0.0, %v1530
        %1532 = vdwg.mxu0
        %v1533 = vld [vmem:[#allocation11 + $0x90] sm:$0xff]
        %v1534 = vld [vmem:[#allocation11 + $0x98] sm:$0xff]
        %v1536 = vsel %vm786, %v1531, 0
        %1538 = vmatpush.msra.mxu0 0.0
        %1539 = vmatpush.msra.mxu0 0.0
        %1540 = vmatpush.msra.mxu0 0.0
        %1541 = vmatpush.msra.mxu0 0.0
        %1542 = vmatpush.msra.mxu0 0.0
        %1543 = vmatpush.msra.mxu0 0.0
        %1544 = vmatpush.msra.mxu0 0.0
        %1545 = vmatpush.msra.mxu0 0.0
        %1546 = vmatpush.msra.mxu0 0.0
        %1547 = vmatpush.msra.mxu0 0.0
        %1548 = vmatpush.msra.mxu0 0.0
        %1549 = vmatpush.msra.mxu0 0.0
        %1550 = vmatpush.msra.mxu0 0.0
        %1551 = vmatpush.msra.mxu0 0.0
        %1552 = vmatpush.msra.mxu0 %v1534
        %1553 = vmatpush.msra.mxu0 %v1533
        %1554 = vmatmul.f32.gmra.mxu0 %v1536
        %v1555 = vpop.f32.mrf.mxu0
        %v1556 = vadd.f32 0.0, %v1555
        %1557 = vdwg.mxu0
        %v1558 = vadd.f32 %v1466, %v1556
        %1559 = vrot.lane.b32.xlu0 %v581, 48
        %v1560 = vpop.permute.xlu0 %1559
        %1561 = vrot.lane.b32.xlu0 %v653, 48
        %v1562 = vpop.permute.xlu0 %1561
        %v1563 = vsel %vm655, %v1560, 0
        %v1565 = vsel %vm655, %v1562, 0
        %1567 = vmatpush.xpose.msra.mxu0 0.0
        %1568 = vmatpush.xpose.msra.mxu0 0.0
        %1569 = vmatpush.xpose.msra.mxu0 0.0
        %1570 = vmatpush.xpose.msra.mxu0 0.0
        %1571 = vmatpush.xpose.msra.mxu0 0.0
        %1572 = vmatpush.xpose.msra.mxu0 0.0
        %1573 = vmatpush.xpose.msra.mxu0 0.0
        %1574 = vmatpush.xpose.msra.mxu0 0.0
        %1575 = vmatpush.xpose.msra.mxu0 0.0
        %1576 = vmatpush.xpose.msra.mxu0 0.0
        %1577 = vmatpush.xpose.msra.mxu0 0.0
        %1578 = vmatpush.xpose.msra.mxu0 0.0
        %1579 = vmatpush.xpose.msra.mxu0 0.0
        %1580 = vmatpush.xpose.msra.mxu0 0.0
        %1581 = vmatpush.xpose.msra.mxu0 0.0
        %1582 = vmatpush.xpose.msra.mxu0 %v1565
        %1583 = vmatmul.f32.gmra.mxu0 %v1563
        %v1584 = vpop.f32.mrf.mxu0
        %v1585 = vadd.f32 0.0, %v1584
        %1586 = vdwg.mxu0
        %v1587 = vsel %vm655, %v1585, -inf
        %1588 = vmax.xlane.f32.xlu0 %v1587
        %v1589 = vpop.xlane.xlu0 %1588
        %v1590 = vsub.f32 %v1585, %v1589
        %v1591 = vmul.f32 %v1590, 1.442695
        %v1592 = vpow.pop %v1591
        %v1593 = vsel %vm655, %v1592, 0.0
        %1594 = vadd.xlane.f32.xlu0 %v1593
        %v1595 = vpop.xlane.xlu0 %1594
        %v1596 = vrcp.pop %v1595
        %v1597 = vmul.f32 %v1592, %v1596
        %1598 = vrot.lane.b32.xlu0 %v510, 96
        %v1599 = vpop.permute.xlu0 %1598
        %v1602 = vsel %vm655, %v1597, 0
        %1604 = vmatpush.msra.mxu0 0.0
        %1605 = vmatpush.msra.mxu0 0.0
        %1606 = vmatpush.msra.mxu0 0.0
        %1607 = vmatpush.msra.mxu0 0.0
        %1608 = vmatpush.msra.mxu0 0.0
        %1609 = vmatpush.msra.mxu0 0.0
        %1610 = vmatpush.msra.mxu0 0.0
        %1611 = vmatpush.msra.mxu0 0.0
        %1612 = vmatpush.msra.mxu0 0.0
        %1613 = vmatpush.msra.mxu0 0.0
        %1614 = vmatpush.msra.mxu0 0.0
        %1615 = vmatpush.msra.mxu0 0.0
        %1616 = vmatpush.msra.mxu0 0.0
        %1617 = vmatpush.msra.mxu0 0.0
        %1618 = vmatpush.msra.mxu0 0.0
        %1619 = vmatpush.msra.mxu0 %v1599
        %1620 = vmatmul.f32.gmra.mxu0 %v1602
        %v1621 = vpop.f32.mrf.mxu0
        %v1622 = vadd.f32 0.0, %v1621
        %1623 = vdwg.mxu0
        %v1624 = vld [vmem:[#allocation11 + $0xa0] sm:$0xff]
        %v1625 = vld [vmem:[#allocation11 + $0xa8] sm:$0xff]
        %v1627 = vsel %vm786, %v1622, 0
        %1629 = vmatpush.msra.mxu0 0.0
        %1630 = vmatpush.msra.mxu0 0.0
        %1631 = vmatpush.msra.mxu0 0.0
        %1632 = vmatpush.msra.mxu0 0.0
        %1633 = vmatpush.msra.mxu0 0.0
        %1634 = vmatpush.msra.mxu0 0.0
        %1635 = vmatpush.msra.mxu0 0.0
        %1636 = vmatpush.msra.mxu0 0.0
        %1637 = vmatpush.msra.mxu0 0.0
        %1638 = vmatpush.msra.mxu0 0.0
        %1639 = vmatpush.msra.mxu0 0.0
        %1640 = vmatpush.msra.mxu0 0.0
        %1641 = vmatpush.msra.mxu0 0.0
        %1642 = vmatpush.msra.mxu0 0.0
        %1643 = vmatpush.msra.mxu0 %v1625
        %1644 = vmatpush.msra.mxu0 %v1624
        %1645 = vmatmul.f32.gmra.mxu0 %v1627
        %v1646 = vpop.f32.mrf.mxu0
        %v1647 = vadd.f32 0.0, %v1646
        %1648 = vdwg.mxu0
        %v1649 = vadd.f32 %v1558, %v1647
        %1650 = vrot.lane.b32.xlu0 %v581, 40
        %v1651 = vpop.permute.xlu0 %1650
        %1652 = vrot.lane.b32.xlu0 %v653, 40
        %v1653 = vpop.permute.xlu0 %1652
        %v1654 = vsel %vm655, %v1651, 0
        %v1656 = vsel %vm655, %v1653, 0
        %1658 = vmatpush.xpose.msra.mxu0 0.0
        %1659 = vmatpush.xpose.msra.mxu0 0.0
        %1660 = vmatpush.xpose.msra.mxu0 0.0
        %1661 = vmatpush.xpose.msra.mxu0 0.0
        %1662 = vmatpush.xpose.msra.mxu0 0.0
        %1663 = vmatpush.xpose.msra.mxu0 0.0
        %1664 = vmatpush.xpose.msra.mxu0 0.0
        %1665 = vmatpush.xpose.msra.mxu0 0.0
        %1666 = vmatpush.xpose.msra.mxu0 0.0
        %1667 = vmatpush.xpose.msra.mxu0 0.0
        %1668 = vmatpush.xpose.msra.mxu0 0.0
        %1669 = vmatpush.xpose.msra.mxu0 0.0
        %1670 = vmatpush.xpose.msra.mxu0 0.0
        %1671 = vmatpush.xpose.msra.mxu0 0.0
        %1672 = vmatpush.xpose.msra.mxu0 0.0
        %1673 = vmatpush.xpose.msra.mxu0 %v1656
        %1674 = vmatmul.f32.gmra.mxu0 %v1654
        %v1675 = vpop.f32.mrf.mxu0
        %v1676 = vadd.f32 0.0, %v1675
        %1677 = vdwg.mxu0
        %v1678 = vsel %vm655, %v1676, -inf
        %1679 = vmax.xlane.f32.xlu0 %v1678
        %v1680 = vpop.xlane.xlu0 %1679
        %v1681 = vsub.f32 %v1676, %v1680
        %v1682 = vmul.f32 %v1681, 1.442695
        %v1683 = vpow.pop %v1682
        %v1684 = vsel %vm655, %v1683, 0.0
        %1685 = vadd.xlane.f32.xlu0 %v1684
        %v1686 = vpop.xlane.xlu0 %1685
        %v1687 = vrcp.pop %v1686
        %v1688 = vmul.f32 %v1683, %v1687
        %1689 = vrot.lane.b32.xlu0 %v510, 80
        %v1690 = vpop.permute.xlu0 %1689
        %v1693 = vsel %vm655, %v1688, 0
        %1695 = vmatpush.msra.mxu0 0.0
        %1696 = vmatpush.msra.mxu0 0.0
        %1697 = vmatpush.msra.mxu0 0.0
        %1698 = vmatpush.msra.mxu0 0.0
        %1699 = vmatpush.msra.mxu0 0.0
        %1700 = vmatpush.msra.mxu0 0.0
        %1701 = vmatpush.msra.mxu0 0.0
        %1702 = vmatpush.msra.mxu0 0.0
        %1703 = vmatpush.msra.mxu0 0.0
        %1704 = vmatpush.msra.mxu0 0.0
        %1705 = vmatpush.msra.mxu0 0.0
        %1706 = vmatpush.msra.mxu0 0.0
        %1707 = vmatpush.msra.mxu0 0.0
        %1708 = vmatpush.msra.mxu0 0.0
        %1709 = vmatpush.msra.mxu0 0.0
        %1710 = vmatpush.msra.mxu0 %v1690
        %1711 = vmatmul.f32.gmra.mxu0 %v1693
        %v1712 = vpop.f32.mrf.mxu0
        %v1713 = vadd.f32 0.0, %v1712
        %1714 = vdwg.mxu0
        %v1715 = vld [vmem:[#allocation11 + $0xb0] sm:$0xff]
        %v1716 = vld [vmem:[#allocation11 + $0xb8] sm:$0xff]
        %v1718 = vsel %vm786, %v1713, 0
        %1720 = vmatpush.msra.mxu0 0.0
        %1721 = vmatpush.msra.mxu0 0.0
        %1722 = vmatpush.msra.mxu0 0.0
        %1723 = vmatpush.msra.mxu0 0.0
        %1724 = vmatpush.msra.mxu0 0.0
        %1725 = vmatpush.msra.mxu0 0.0
        %1726 = vmatpush.msra.mxu0 0.0
        %1727 = vmatpush.msra.mxu0 0.0
        %1728 = vmatpush.msra.mxu0 0.0
        %1729 = vmatpush.msra.mxu0 0.0
        %1730 = vmatpush.msra.mxu0 0.0
        %1731 = vmatpush.msra.mxu0 0.0
        %1732 = vmatpush.msra.mxu0 0.0
        %1733 = vmatpush.msra.mxu0 0.0
        %1734 = vmatpush.msra.mxu0 %v1716
        %1735 = vmatpush.msra.mxu0 %v1715
        %1736 = vmatmul.f32.gmra.mxu0 %v1718
        %v1737 = vpop.f32.mrf.mxu0
        %v1738 = vadd.f32 0.0, %v1737
        %1739 = vdwg.mxu0
        %v1740 = vadd.f32 %v1649, %v1738
        %1741 = vrot.lane.b32.xlu0 %v581, 32
        %v1742 = vpop.permute.xlu0 %1741
        %1743 = vrot.lane.b32.xlu0 %v653, 32
        %v1744 = vpop.permute.xlu0 %1743
        %v1745 = vsel %vm655, %v1742, 0
        %v1747 = vsel %vm655, %v1744, 0
        %1749 = vmatpush.xpose.msra.mxu0 0.0
        %1750 = vmatpush.xpose.msra.mxu0 0.0
        %1751 = vmatpush.xpose.msra.mxu0 0.0
        %1752 = vmatpush.xpose.msra.mxu0 0.0
        %1753 = vmatpush.xpose.msra.mxu0 0.0
        %1754 = vmatpush.xpose.msra.mxu0 0.0
        %1755 = vmatpush.xpose.msra.mxu0 0.0
        %1756 = vmatpush.xpose.msra.mxu0 0.0
        %1757 = vmatpush.xpose.msra.mxu0 0.0
        %1758 = vmatpush.xpose.msra.mxu0 0.0
        %1759 = vmatpush.xpose.msra.mxu0 0.0
        %1760 = vmatpush.xpose.msra.mxu0 0.0
        %1761 = vmatpush.xpose.msra.mxu0 0.0
        %1762 = vmatpush.xpose.msra.mxu0 0.0
        %1763 = vmatpush.xpose.msra.mxu0 0.0
        %1764 = vmatpush.xpose.msra.mxu0 %v1747
        %1765 = vmatmul.f32.gmra.mxu0 %v1745
        %v1766 = vpop.f32.mrf.mxu0
        %v1767 = vadd.f32 0.0, %v1766
        %1768 = vdwg.mxu0
        %v1769 = vsel %vm655, %v1767, -inf
        %1770 = vmax.xlane.f32.xlu0 %v1769
        %v1771 = vpop.xlane.xlu0 %1770
        %v1772 = vsub.f32 %v1767, %v1771
        %v1773 = vmul.f32 %v1772, 1.442695
        %v1774 = vpow.pop %v1773
        %v1775 = vsel %vm655, %v1774, 0.0
        %1776 = vadd.xlane.f32.xlu0 %v1775
        %v1777 = vpop.xlane.xlu0 %1776
        %v1778 = vrcp.pop %v1777
        %v1779 = vmul.f32 %v1774, %v1778
        %1780 = vrot.lane.b32.xlu0 %v510, 64
        %v1781 = vpop.permute.xlu0 %1780
        %v1784 = vsel %vm655, %v1779, 0
        %1786 = vmatpush.msra.mxu0 0.0
        %1787 = vmatpush.msra.mxu0 0.0
        %1788 = vmatpush.msra.mxu0 0.0
        %1789 = vmatpush.msra.mxu0 0.0
        %1790 = vmatpush.msra.mxu0 0.0
        %1791 = vmatpush.msra.mxu0 0.0
        %1792 = vmatpush.msra.mxu0 0.0
        %1793 = vmatpush.msra.mxu0 0.0
        %1794 = vmatpush.msra.mxu0 0.0
        %1795 = vmatpush.msra.mxu0 0.0
        %1796 = vmatpush.msra.mxu0 0.0
        %1797 = vmatpush.msra.mxu0 0.0
        %1798 = vmatpush.msra.mxu0 0.0
        %1799 = vmatpush.msra.mxu0 0.0
        %1800 = vmatpush.msra.mxu0 0.0
        %1801 = vmatpush.msra.mxu0 %v1781
        %1802 = vmatmul.f32.gmra.mxu0 %v1784
        %v1803 = vpop.f32.mrf.mxu0
        %v1804 = vadd.f32 0.0, %v1803
        %1805 = vdwg.mxu0
        %v1806 = vld [vmem:[#allocation11 + $0xc0] sm:$0xff]
        %v1807 = vld [vmem:[#allocation11 + $0xc8] sm:$0xff]
        %v1809 = vsel %vm786, %v1804, 0
        %1811 = vmatpush.msra.mxu0 0.0
        %1812 = vmatpush.msra.mxu0 0.0
        %1813 = vmatpush.msra.mxu0 0.0
        %1814 = vmatpush.msra.mxu0 0.0
        %1815 = vmatpush.msra.mxu0 0.0
        %1816 = vmatpush.msra.mxu0 0.0
        %1817 = vmatpush.msra.mxu0 0.0
        %1818 = vmatpush.msra.mxu0 0.0
        %1819 = vmatpush.msra.mxu0 0.0
        %1820 = vmatpush.msra.mxu0 0.0
        %1821 = vmatpush.msra.mxu0 0.0
        %1822 = vmatpush.msra.mxu0 0.0
        %1823 = vmatpush.msra.mxu0 0.0
        %1824 = vmatpush.msra.mxu0 0.0
        %1825 = vmatpush.msra.mxu0 %v1807
        %1826 = vmatpush.msra.mxu0 %v1806
        %1827 = vmatmul.f32.gmra.mxu0 %v1809
        %v1828 = vpop.f32.mrf.mxu0
        %v1829 = vadd.f32 0.0, %v1828
        %1830 = vdwg.mxu0
        %v1831 = vadd.f32 %v1740, %v1829
        %1832 = vrot.lane.b32.xlu0 %v581, 24
        %v1833 = vpop.permute.xlu0 %1832
        %1834 = vrot.lane.b32.xlu0 %v653, 24
        %v1835 = vpop.permute.xlu0 %1834
        %v1836 = vsel %vm655, %v1833, 0
        %v1838 = vsel %vm655, %v1835, 0
        %1840 = vmatpush.xpose.msra.mxu0 0.0
        %1841 = vmatpush.xpose.msra.mxu0 0.0
        %1842 = vmatpush.xpose.msra.mxu0 0.0
        %1843 = vmatpush.xpose.msra.mxu0 0.0
        %1844 = vmatpush.xpose.msra.mxu0 0.0
        %1845 = vmatpush.xpose.msra.mxu0 0.0
        %1846 = vmatpush.xpose.msra.mxu0 0.0
        %1847 = vmatpush.xpose.msra.mxu0 0.0
        %1848 = vmatpush.xpose.msra.mxu0 0.0
        %1849 = vmatpush.xpose.msra.mxu0 0.0
        %1850 = vmatpush.xpose.msra.mxu0 0.0
        %1851 = vmatpush.xpose.msra.mxu0 0.0
        %1852 = vmatpush.xpose.msra.mxu0 0.0
        %1853 = vmatpush.xpose.msra.mxu0 0.0
        %1854 = vmatpush.xpose.msra.mxu0 0.0
        %1855 = vmatpush.xpose.msra.mxu0 %v1838
        %1856 = vmatmul.f32.gmra.mxu0 %v1836
        %v1857 = vpop.f32.mrf.mxu0
        %v1858 = vadd.f32 0.0, %v1857
        %1859 = vdwg.mxu0
        %v1860 = vsel %vm655, %v1858, -inf
        %1861 = vmax.xlane.f32.xlu0 %v1860
        %v1862 = vpop.xlane.xlu0 %1861
        %v1863 = vsub.f32 %v1858, %v1862
        %v1864 = vmul.f32 %v1863, 1.442695
        %v1865 = vpow.pop %v1864
        %v1866 = vsel %vm655, %v1865, 0.0
        %1867 = vadd.xlane.f32.xlu0 %v1866
        %v1868 = vpop.xlane.xlu0 %1867
        %v1869 = vrcp.pop %v1868
        %v1870 = vmul.f32 %v1865, %v1869
        %1871 = vrot.lane.b32.xlu0 %v510, 48
        %v1872 = vpop.permute.xlu0 %1871
        %v1875 = vsel %vm655, %v1870, 0
        %1877 = vmatpush.msra.mxu0 0.0
        %1878 = vmatpush.msra.mxu0 0.0
        %1879 = vmatpush.msra.mxu0 0.0
        %1880 = vmatpush.msra.mxu0 0.0
        %1881 = vmatpush.msra.mxu0 0.0
        %1882 = vmatpush.msra.mxu0 0.0
        %1883 = vmatpush.msra.mxu0 0.0
        %1884 = vmatpush.msra.mxu0 0.0
        %1885 = vmatpush.msra.mxu0 0.0
        %1886 = vmatpush.msra.mxu0 0.0
        %1887 = vmatpush.msra.mxu0 0.0
        %1888 = vmatpush.msra.mxu0 0.0
        %1889 = vmatpush.msra.mxu0 0.0
        %1890 = vmatpush.msra.mxu0 0.0
        %1891 = vmatpush.msra.mxu0 0.0
        %1892 = vmatpush.msra.mxu0 %v1872
        %1893 = vmatmul.f32.gmra.mxu0 %v1875
        %v1894 = vpop.f32.mrf.mxu0
        %v1895 = vadd.f32 0.0, %v1894
        %1896 = vdwg.mxu0
        %v1897 = vld [vmem:[#allocation11 + $0xd0] sm:$0xff]
        %v1898 = vld [vmem:[#allocation11 + $0xd8] sm:$0xff]
        %v1900 = vsel %vm786, %v1895, 0
        %1902 = vmatpush.msra.mxu0 0.0
        %1903 = vmatpush.msra.mxu0 0.0
        %1904 = vmatpush.msra.mxu0 0.0
        %1905 = vmatpush.msra.mxu0 0.0
        %1906 = vmatpush.msra.mxu0 0.0
        %1907 = vmatpush.msra.mxu0 0.0
        %1908 = vmatpush.msra.mxu0 0.0
        %1909 = vmatpush.msra.mxu0 0.0
        %1910 = vmatpush.msra.mxu0 0.0
        %1911 = vmatpush.msra.mxu0 0.0
        %1912 = vmatpush.msra.mxu0 0.0
        %1913 = vmatpush.msra.mxu0 0.0
        %1914 = vmatpush.msra.mxu0 0.0
        %1915 = vmatpush.msra.mxu0 0.0
        %1916 = vmatpush.msra.mxu0 %v1898
        %1917 = vmatpush.msra.mxu0 %v1897
        %1918 = vmatmul.f32.gmra.mxu0 %v1900
        %v1919 = vpop.f32.mrf.mxu0
        %v1920 = vadd.f32 0.0, %v1919
        %1921 = vdwg.mxu0
        %v1922 = vadd.f32 %v1831, %v1920
        %1923 = vrot.lane.b32.xlu0 %v581, 16
        %v1924 = vpop.permute.xlu0 %1923
        %1925 = vrot.lane.b32.xlu0 %v653, 16
        %v1926 = vpop.permute.xlu0 %1925
        %v1927 = vsel %vm655, %v1924, 0
        %v1929 = vsel %vm655, %v1926, 0
        %1931 = vmatpush.xpose.msra.mxu0 0.0
        %1932 = vmatpush.xpose.msra.mxu0 0.0
        %1933 = vmatpush.xpose.msra.mxu0 0.0
        %1934 = vmatpush.xpose.msra.mxu0 0.0
        %1935 = vmatpush.xpose.msra.mxu0 0.0
        %1936 = vmatpush.xpose.msra.mxu0 0.0
        %1937 = vmatpush.xpose.msra.mxu0 0.0
        %1938 = vmatpush.xpose.msra.mxu0 0.0
        %1939 = vmatpush.xpose.msra.mxu0 0.0
        %1940 = vmatpush.xpose.msra.mxu0 0.0
        %1941 = vmatpush.xpose.msra.mxu0 0.0
        %1942 = vmatpush.xpose.msra.mxu0 0.0
        %1943 = vmatpush.xpose.msra.mxu0 0.0
        %1944 = vmatpush.xpose.msra.mxu0 0.0
        %1945 = vmatpush.xpose.msra.mxu0 0.0
        %1946 = vmatpush.xpose.msra.mxu0 %v1929
        %1947 = vmatmul.f32.gmra.mxu0 %v1927
        %v1948 = vpop.f32.mrf.mxu0
        %v1949 = vadd.f32 0.0, %v1948
        %1950 = vdwg.mxu0
        %v1951 = vsel %vm655, %v1949, -inf
        %1952 = vmax.xlane.f32.xlu0 %v1951
        %v1953 = vpop.xlane.xlu0 %1952
        %v1954 = vsub.f32 %v1949, %v1953
        %v1955 = vmul.f32 %v1954, 1.442695
        %v1956 = vpow.pop %v1955
        %v1957 = vsel %vm655, %v1956, 0.0
        %1958 = vadd.xlane.f32.xlu0 %v1957
        %v1959 = vpop.xlane.xlu0 %1958
        %v1960 = vrcp.pop %v1959
        %v1961 = vmul.f32 %v1956, %v1960
        %1962 = vrot.lane.b32.xlu0 %v510, 32
        %v1963 = vpop.permute.xlu0 %1962
        %v1966 = vsel %vm655, %v1961, 0
        %1968 = vmatpush.msra.mxu0 0.0
        %1969 = vmatpush.msra.mxu0 0.0
        %1970 = vmatpush.msra.mxu0 0.0
        %1971 = vmatpush.msra.mxu0 0.0
        %1972 = vmatpush.msra.mxu0 0.0
        %1973 = vmatpush.msra.mxu0 0.0
        %1974 = vmatpush.msra.mxu0 0.0
        %1975 = vmatpush.msra.mxu0 0.0
        %1976 = vmatpush.msra.mxu0 0.0
        %1977 = vmatpush.msra.mxu0 0.0
        %1978 = vmatpush.msra.mxu0 0.0
        %1979 = vmatpush.msra.mxu0 0.0
        %1980 = vmatpush.msra.mxu0 0.0
        %1981 = vmatpush.msra.mxu0 0.0
        %1982 = vmatpush.msra.mxu0 0.0
        %1983 = vmatpush.msra.mxu0 %v1963
        %1984 = vmatmul.f32.gmra.mxu0 %v1966
        %v1985 = vpop.f32.mrf.mxu0
        %v1986 = vadd.f32 0.0, %v1985
        %1987 = vdwg.mxu0
        %v1988 = vld [vmem:[#allocation11 + $0xe0] sm:$0xff]
        %v1989 = vld [vmem:[#allocation11 + $0xe8] sm:$0xff]
        %v1991 = vsel %vm786, %v1986, 0
        %1993 = vmatpush.msra.mxu0 0.0
        %1994 = vmatpush.msra.mxu0 0.0
        %1995 = vmatpush.msra.mxu0 0.0
        %1996 = vmatpush.msra.mxu0 0.0
        %1997 = vmatpush.msra.mxu0 0.0
        %1998 = vmatpush.msra.mxu0 0.0
        %1999 = vmatpush.msra.mxu0 0.0
        %2000 = vmatpush.msra.mxu0 0.0
        %2001 = vmatpush.msra.mxu0 0.0
        %2002 = vmatpush.msra.mxu0 0.0
        %2003 = vmatpush.msra.mxu0 0.0
        %2004 = vmatpush.msra.mxu0 0.0
        %2005 = vmatpush.msra.mxu0 0.0
        %2006 = vmatpush.msra.mxu0 0.0
        %2007 = vmatpush.msra.mxu0 %v1989
        %2008 = vmatpush.msra.mxu0 %v1988
        %2009 = vmatmul.f32.gmra.mxu0 %v1991
        %v2010 = vpop.f32.mrf.mxu0
        %v2011 = vadd.f32 0.0, %v2010
        %2012 = vdwg.mxu0
        %v2013 = vadd.f32 %v1922, %v2011
        %2014 = vrot.lane.b32.xlu0 %v581, 8
        %v2015 = vpop.permute.xlu0 %2014
        %2016 = vrot.lane.b32.xlu0 %v653, 8
        %v2017 = vpop.permute.xlu0 %2016
        %v2018 = vsel %vm655, %v2015, 0
        %v2020 = vsel %vm655, %v2017, 0
        %2022 = vmatpush.xpose.msra.mxu0 0.0
        %2023 = vmatpush.xpose.msra.mxu0 0.0
        %2024 = vmatpush.xpose.msra.mxu0 0.0
        %2025 = vmatpush.xpose.msra.mxu0 0.0
        %2026 = vmatpush.xpose.msra.mxu0 0.0
        %2027 = vmatpush.xpose.msra.mxu0 0.0
        %2028 = vmatpush.xpose.msra.mxu0 0.0
        %2029 = vmatpush.xpose.msra.mxu0 0.0
        %2030 = vmatpush.xpose.msra.mxu0 0.0
        %2031 = vmatpush.xpose.msra.mxu0 0.0
        %2032 = vmatpush.xpose.msra.mxu0 0.0
        %2033 = vmatpush.xpose.msra.mxu0 0.0
        %2034 = vmatpush.xpose.msra.mxu0 0.0
        %2035 = vmatpush.xpose.msra.mxu0 0.0
        %2036 = vmatpush.xpose.msra.mxu0 0.0
        %2037 = vmatpush.xpose.msra.mxu0 %v2020
        %2038 = vmatmul.f32.gmra.mxu0 %v2018
        %v2039 = vpop.f32.mrf.mxu0
        %v2040 = vadd.f32 0.0, %v2039
        %2041 = vdwg.mxu0
        %v2042 = vsel %vm655, %v2040, -inf
        %2043 = vmax.xlane.f32.xlu0 %v2042
        %v2044 = vpop.xlane.xlu0 %2043
        %v2045 = vsub.f32 %v2040, %v2044
        %v2046 = vmul.f32 %v2045, 1.442695
        %v2047 = vpow.pop %v2046
        %v2048 = vsel %vm655, %v2047, 0.0
        %2049 = vadd.xlane.f32.xlu0 %v2048
        %v2050 = vpop.xlane.xlu0 %2049
        %v2051 = vrcp.pop %v2050
        %v2052 = vmul.f32 %v2047, %v2051
        %2053 = vrot.lane.b32.xlu0 %v510, 16
        %v2054 = vpop.permute.xlu0 %2053
        %v2057 = vsel %vm655, %v2052, 0
        %2059 = vmatpush.msra.mxu0 0.0
        %2060 = vmatpush.msra.mxu0 0.0
        %2061 = vmatpush.msra.mxu0 0.0
        %2062 = vmatpush.msra.mxu0 0.0
        %2063 = vmatpush.msra.mxu0 0.0
        %2064 = vmatpush.msra.mxu0 0.0
        %2065 = vmatpush.msra.mxu0 0.0
        %2066 = vmatpush.msra.mxu0 0.0
        %2067 = vmatpush.msra.mxu0 0.0
        %2068 = vmatpush.msra.mxu0 0.0
        %2069 = vmatpush.msra.mxu0 0.0
        %2070 = vmatpush.msra.mxu0 0.0
        %2071 = vmatpush.msra.mxu0 0.0
        %2072 = vmatpush.msra.mxu0 0.0
        %2073 = vmatpush.msra.mxu0 0.0
        %2074 = vmatpush.msra.mxu0 %v2054
        %2075 = vmatmul.f32.gmra.mxu0 %v2057
        %v2076 = vpop.f32.mrf.mxu0
        %v2077 = vadd.f32 0.0, %v2076
        %2078 = vdwg.mxu0
        %v2079 = vld [vmem:[#allocation11 + $0xf0] sm:$0xff]
        %v2080 = vld [vmem:[#allocation11 + $0xf8] sm:$0xff]
        %v2082 = vsel %vm786, %v2077, 0
        %2084 = vmatpush.msra.mxu0 0.0
        %2085 = vmatpush.msra.mxu0 0.0
        %2086 = vmatpush.msra.mxu0 0.0
        %2087 = vmatpush.msra.mxu0 0.0
        %2088 = vmatpush.msra.mxu0 0.0
        %2089 = vmatpush.msra.mxu0 0.0
        %2090 = vmatpush.msra.mxu0 0.0
        %2091 = vmatpush.msra.mxu0 0.0
        %2092 = vmatpush.msra.mxu0 0.0
        %2093 = vmatpush.msra.mxu0 0.0
        %2094 = vmatpush.msra.mxu0 0.0
        %2095 = vmatpush.msra.mxu0 0.0
        %2096 = vmatpush.msra.mxu0 0.0
        %2097 = vmatpush.msra.mxu0 0.0
        %2098 = vmatpush.msra.mxu0 %v2080
        %2099 = vmatpush.msra.mxu0 %v2079
        %2100 = vmatmul.f32.gmra.mxu0 %v2082
        %v2101 = vpop.f32.mrf.mxu0
        %v2102 = vadd.f32 0.0, %v2101
        %2103 = vdwg.mxu0
        %v2104 = vadd.f32 %v2013, %v2102
        %v2105 = vrot.slane %v2104, 4
        %v2106 = vmax.f32 %v2104, %v2105
        %v2107 = vrot.slane %v2106, 2
        %v2108 = vmax.f32 %v2106, %v2107
        %v2109 = vrot.slane %v2108, 1
        %v2110 = vmax.f32 %v2108, %v2109
        %v2111 = vld [vmem:[%s7] sm:$0x1]
        %v2112 = vadd.f32 %v2110, %v2111
        %2113 = vst [vmem:[%s427] sm:$0x1] %v2112
        %s2114 = sand.u32 %s216, 1
        %s2115 = scalar_lea.sflag [#allocation4], %s2114
        %s2116 = sand.u32 %s216, 1
        %s2117 = scalar_lea.vmem [#allocation13], %s2116
        // Predicated region
        $region77: #{tpu_custom_call.1} parent=51 // pred_check
          %p2118 = pneg %p226
        $region78: #{tpu_custom_call.1} parent=51 // pred_check_branch
          %2120 = sbr.rel (%p2118) target = $region80
        $region79: #{tpu_custom_call.1} parent=51 // pred_region
          %2122 = vsyncadd %s2115, 0
          %s2123 = scalar_lea.hbm %s8, %s30
          %s2125 = sshll.u32 %s2117, 4
          %s2126 = int_to_ptr.vmem [resolvable:$true] %s2125
          %s2127 = sshll.u32 %s2123, 4
          %s2128 = int_to_ptr.hbm [resolvable:$true] %s2127
          %2130 = dma.vmem_to_hbm [thread:$0]  %s2126, 16, %s2128, %s2115
        $region80: #{tpu_custom_call.1} parent=51 // pred_fallthru
          _
      $region52: #{tpu_custom_call.1} parent=5 // pred_fallthru
        _
      %p2131 = scmp.le.s32.totalorder 2, %s25
      // Predicated region
      $region81: #{tpu_custom_call.1} parent=5 // pred_check
        %p2132 = pneg %p2131
      $region82: #{tpu_custom_call.1} parent=5 // pred_check_branch
        %2134 = sbr.rel (%p2132) target = $region84
      $region83: #{tpu_custom_call.1} parent=5 // pred_region
        %s2135 = ssub.s32 %s25, 2
        // Predicated region
        $region85: #{tpu_custom_call.1} parent=83 // pred_check
          %p2136 = pneg %p232
        $region86: #{tpu_custom_call.1} parent=83 // pred_check_branch
          %2138 = sbr.rel (%p2136) target = $region88
        $region87: #{tpu_custom_call.1} parent=83 // pred_region
          %s2139 = sand.u32 %s217, 1
          %s2140 = scalar_lea.sflag [#allocation4], %s2139
          %s2141 = sand.u32 %s217, 1
          %s2142 = scalar_lea.vmem [#allocation13], %s2141
          %2144 = dma.done %s2140, 16
        $region88: #{tpu_custom_call.1} parent=83 // pred_fallthru
          _
      $region84: #{tpu_custom_call.1} parent=5 // pred_fallthru
        _
    $region6: #{tpu_custom_call.1} parent=1 // loop_footer
      %s29 = sadd.s32 1, %s25
    $region7: #{tpu_custom_call.1} parent=1 // loop_footer_branch
      %24 = sbr.rel target = $region3
    $region8: #{tpu_custom_call.1} parent=1 // loop_exit
      _
    %2145 = vsyncpa [#allocation3], 1
    %s2146 = scalar_lea.sflag [#allocation3], 1
    %2147 = vsyncpa %s2146, 1
    %2148 = vsyncpa [#allocation6], 1
    %s2149 = scalar_lea.sflag [#allocation6], 1
    %2150 = vsyncpa %s2149, 1
    %2151 = vsyncpa [#allocation9], 1
    %2152 = vsyncpa [#allocation12], 1
    %2153 = vsyncpa [#allocation4], 1
    %s2154 = scalar_lea.sflag [#allocation4], 1
    %2155 = vsyncpa %s2154, 1

</llo_original>
